<compile_context>
chip_gen: v7x
topology: tpu7x:2x2x1
jax: 0.10.0
libtpu: 0.0.40
codegen_flags: <defaults>
</compile_context>

<pallas_src>
import functools
import math

import jax
import jax.numpy as jnp
from jax.experimental import pallas as pl
from jax.experimental.pallas import tpu as pltpu


def mha_flash_kernel(q_ref, k_ref, v_ref,
                     wq_ref, bq_ref, wk_ref, bk_ref, wv_ref, bv_ref,
                     wo_ref, bo_ref, o_ref,
                     q_scratch, m_scratch, l_scratch, acc_scratch,
                     *, num_heads, query_dim, key_dim):
    del key_dim  # == query_dim (asserted in the wrapper)
    H = num_heads
    ki = pl.program_id(2)
    nk = pl.num_programs(2)
    scale = 1.0 / math.sqrt(float(query_dim))   # PyTorch: QK^T / sqrt(query.size(-1))
    cdt = q_scratch.dtype                       # MXU operand dtype (bf16 by default)

    # ---- per-(batch, q-tile) init: project Q once, reset online-softmax state.
    @pl.when(ki == 0)
    def _init():
        m_scratch[...] = jnp.full(m_scratch.shape, -jnp.inf, m_scratch.dtype)
        l_scratch[...] = jnp.zeros(l_scratch.shape, l_scratch.dtype)
        acc_scratch[...] = jnp.zeros(acc_scratch.shape, acc_scratch.dtype)
        # (1, tq, D) -> (H, tq, D): head-batched projection, canonical bmk,bkn->bmn.
        xq = jnp.broadcast_to(q_ref[...], (H,) + q_ref.shape[1:])
        Q = jnp.einsum("htd,hdq->htq", xq, wq_ref[...],
                       preferred_element_type=jnp.float32) + bq_ref[...]
        # Fold the 1/sqrt(Dq) scale into Q once (f32), then store as MXU operand.
        q_scratch[...] = (Q * scale).astype(cdt)

    # ---- project this KV tile for all heads (head-major, no lane slicing).
    xk = jnp.broadcast_to(k_ref[...], (H,) + k_ref.shape[1:])
    xv = jnp.broadcast_to(v_ref[...], (H,) + v_ref.shape[1:])
    K = (jnp.einsum("htd,hdk->htk", xk, wk_ref[...],
                    preferred_element_type=jnp.float32) + bk_ref[...]).astype(cdt)
    V = (jnp.einsum("htd,hdk->htk", xv, wv_ref[...],
                    preferred_element_type=jnp.float32) + bv_ref[...]).astype(cdt)

    # ---- online softmax over the kv axis (all math in f32).
    s = jnp.einsum("hqd,hkd->hqk", q_scratch[...], K,
                   preferred_element_type=jnp.float32)            # (H, tq, tk)
    m_prev = m_scratch[...]
    m_new = jnp.maximum(m_prev, jnp.max(s, axis=-1, keepdims=True))
    alpha = jnp.exp(m_prev - m_new)
    p = jnp.exp(s - m_new)
    l_scratch[...] = alpha * l_scratch[...] + jnp.sum(p, axis=-1, keepdims=True)
    acc_scratch[...] = alpha * acc_scratch[...] + jnp.einsum(
        "hqk,hkd->hqd", p.astype(cdt), V, preferred_element_type=jnp.float32)
    m_scratch[...] = m_new

    # ---- finalize: normalize, output projection (head-batched) + bias, one store.
    @pl.when(ki == nk - 1)
    def _finalize():
        ctx = acc_scratch[...] * pl.reciprocal(l_scratch[...], approx=True)  # (H,tq,Dk)
        per_head = jnp.einsum("hqd,hdo->hqo", ctx.astype(cdt), wo_ref[...],
                              preferred_element_type=jnp.float32)            # (H,tq,D)
        o_ref[0] = (jnp.sum(per_head, axis=0) + bo_ref[...]).astype(o_ref.dtype)


def _pick_tile(s):
    # v5e MXU is 4x128x128, v6e/v7x 2x256x256: prefer 256/128-multiples; fall back
    # to the full (small) sequence, which satisfies the full-dim exemption.
    for t in (512, 256, 128):
        if s % t == 0:
            return t
    return s


def _build_call(*, B, S, D, H, Dq, Dk, tq, tk, compute_dtype, vmem_limit_bytes,
                single_buffer_weights, kernel):
    def resident(shape):
        nd = len(shape)
        kwargs = {}
        if single_buffer_weights:
            # Constant index_map => DMA'd exactly once; no need to double-buffer.
            kwargs["pipeline_mode"] = pl.Buffered(1)
        return pl.BlockSpec(shape, lambda b, qi, ki: (0,) * nd, **kwargs)

    in_specs = [
        pl.BlockSpec((1, tq, D), lambda b, qi, ki: (b, qi, 0)),   # query
        pl.BlockSpec((1, tk, D), lambda b, qi, ki: (b, ki, 0)),   # key
        pl.BlockSpec((1, tk, D), lambda b, qi, ki: (b, ki, 0)),   # value
        resident((H, D, Dq)),   # wq  (head-major)
        resident((H, 1, Dq)),   # bq
        resident((H, D, Dk)),   # wk
        resident((H, 1, Dk)),   # bk
        resident((H, D, Dk)),   # wv
        resident((H, 1, Dk)),   # bv
        resident((H, Dk, D)),   # wo  (head-major)
        resident((1, D)),       # bo
    ]
    out_specs = pl.BlockSpec((1, tq, D), lambda b, qi, ki: (b, qi, 0))
    scratch_shapes = [
        pltpu.VMEM((H, tq, Dq), compute_dtype),   # scaled projected Q (head-major)
        pltpu.VMEM((H, tq, 1), jnp.float32),      # running max
        pltpu.VMEM((H, tq, 1), jnp.float32),      # running sum
        pltpu.VMEM((H, tq, Dk), jnp.float32),     # context accumulator
    ]
    return pl.pallas_call(
        kernel,
        out_shape=jax.ShapeDtypeStruct((B, S, D), jnp.float32),
        grid_spec=pltpu.PrefetchScalarGridSpec(
            num_scalar_prefetch=0,
            grid=(B, S // tq, S // tk),
            in_specs=in_specs,
            out_specs=out_specs,
            scratch_shapes=scratch_shapes,
        ),
        compiler_params=pltpu.CompilerParams(
            dimension_semantics=("parallel", "parallel", "arbitrary"),
            vmem_limit_bytes=vmem_limit_bytes,
        ),
    )


def multi_head_attention(q, k, v, params, num_heads, *,
                         compute_dtype=jnp.bfloat16, q_tile=None, kv_tile=None):
    B, S, D = q.shape
    H, _, Dq = params["wq"].shape
    Dk = params["wk"].shape[-1]
    assert H == num_heads
    # The score contraction Q @ K^T silently requires query_dim == key_dim.
    assert Dq == Dk, "scaled_dot_product_attention requires query_dim == key_dim"
    assert params["wo"].shape == (H, Dk, D)

    tq = q_tile or _pick_tile(S)
    tk = kv_tile or _pick_tile(S)
    assert S % tq == 0 and S % tk == 0

    cdt = jnp.dtype(compute_dtype)
    # bf16 MXU operands (weights + activations); biases stay f32 (added post-matmul).
    qc, kc, vc = (x.astype(cdt) for x in (q, k, v))
    wq, wk, wv, wo = (params[n].astype(cdt) for n in ("wq", "wk", "wv", "wo"))
    bq, bk, bv, bo = (params[n].astype(jnp.float32) for n in ("bq", "bk", "bv", "bo"))

    # Explicit scoped-VMEM budget from the actual block footprint (+ headroom).
    isz = cdt.itemsize
    est = (
        (wq.size + wk.size + wv.size + wo.size) * isz
        + (bq.size + bk.size + bv.size + bo.size) * 4
        + 2 * (tq * D + 2 * tk * D) * isz          # double-buffered q/k/v blocks
        + 2 * (tq * D) * 4                         # double-buffered output block
        + H * tq * Dq * isz + 2 * H * tq * 4 + H * tq * Dk * 4   # scratch
        + 2 * H * tq * tk * 4                      # scores / probabilities
        + 2 * H * tk * Dk * 4 + 3 * H * max(tq, tk) * D * isz    # K/V proj + bcast x
    )
    vmem_limit = int(min(96 * 2**20, max(32 * 2**20, 2 * est)))

    kernel = functools.partial(mha_flash_kernel, num_heads=H,
                               query_dim=Dq, key_dim=Dk)
    common = dict(B=B, S=S, D=D, H=H, Dq=Dq, Dk=Dk, tq=tq, tk=tk,
                  compute_dtype=cdt, vmem_limit_bytes=vmem_limit, kernel=kernel)
    args = (qc, kc, vc, wq, bq, wk, bk, wv, bv, wo, bo)
    try:
        return _build_call(single_buffer_weights=True, **common)(*args)
    except Exception:
        # TODO(synk): pl.Buffered(1) single-buffering of the resident weights is a
        # pure-VMEM optimization; fall back to default buffering if this JAX build
        # rejects pipeline_mode on pallas_call BlockSpecs.
        return _build_call(single_buffer_weights=False, **common)(*args)


def init_params(key, num_heads, input_dim, query_dim, key_dim):
    """Deterministic nn.Linear-style init (uniform +-1/sqrt(fan_in)), head-major."""
    ks = jax.random.split(key, 8)
    bnd_in = 1.0 / math.sqrt(input_dim)
    bnd_cat = 1.0 / math.sqrt(num_heads * key_dim)
    u = lambda k, shape, b: jax.random.uniform(k, shape, jnp.float32, -b, b)
    return {
        "wq": u(ks[0], (num_heads, input_dim, query_dim), bnd_in),
        "bq": u(ks[1], (num_heads, 1, query_dim), bnd_in),
        "wk": u(ks[2], (num_heads, input_dim, key_dim), bnd_in),
        "bk": u(ks[3], (num_heads, 1, key_dim), bnd_in),
        "wv": u(ks[4], (num_heads, input_dim, key_dim), bnd_in),
        "bv": u(ks[5], (num_heads, 1, key_dim), bnd_in),
        "wo": u(ks[6], (num_heads, key_dim, input_dim), bnd_cat),
        "bo": u(ks[7], (1, input_dim), bnd_cat),
    }


def mha_reference(q, k, v, params, num_heads):
    """Pure-JAX f32 reference mirroring the PyTorch forward (per-head loop + concat)."""
    H, _, Dq = params["wq"].shape
    Dk = params["wk"].shape[-1]
    heads = []
    for h in range(H):
        Q = q @ params["wq"][h] + params["bq"][h, 0]
        K = k @ params["wk"][h] + params["bk"][h, 0]
        V = v @ params["wv"][h] + params["bv"][h, 0]
        s = jnp.einsum("bsd,btd->bst", Q, K) / math.sqrt(Dq)
        p = jax.nn.softmax(s, axis=-1)
        heads.append(jnp.einsum("bst,btd->bsd", p, V))
    cat = jnp.concatenate(heads, axis=-1)
    return cat @ params["wo"].reshape(H * Dk, -1) + params["bo"]


if __name__ == "__main__":
    B, S, D = 2, 8, 32
    num_heads, query_dim, key_dim = 4, 16, 16   # query_dim == key_dim (required)

    key = jax.random.PRNGKey(0)
    kq, kk, kv, kp = jax.random.split(key, 4)
    q = jax.random.normal(kq, (B, S, D), jnp.float32)
    k = jax.random.normal(kk, (B, S, D), jnp.float32)
    v = jax.random.normal(kv, (B, S, D), jnp.float32)
    params = init_params(kp, num_heads, D, query_dim, key_dim)

    ref = mha_reference(q, k, v, params, num_heads)

    # f32 compute path: near-exact parity with the PyTorch forward
    # (tolerance only covers the approx EUP reciprocal in the softmax denom).
    out_f32 = jax.block_until_ready(
        multi_head_attention(q, k, v, params, num_heads, compute_dtype=jnp.float32))
    assert out_f32.shape == (B, S, D)
    err32 = jnp.max(jnp.abs(out_f32 - ref))
    assert jnp.allclose(out_f32, ref, atol=2e-3, rtol=2e-3), f"f32 max abs err = {err32}"

    # bf16 MXU-operand path (default perf config): f32 accumulation + f32 softmax.
    out_bf16 = jax.block_until_ready(
        multi_head_attention(q, k, v, params, num_heads))
    assert out_bf16.shape == (B, S, D)
    err16 = jnp.max(jnp.abs(out_bf16 - ref))
    assert jnp.allclose(out_bf16, ref, atol=5e-2, rtol=5e-2), f"bf16 max abs err = {err16}"

    print("KERNEL_OK")
</pallas_src>

<mosaic_0001>
module attributes {stable_mosaic.version = 11 : i64} {
  func.func @mha_flash_kernel(%arg0: i32, %arg1: i32, %arg2: i32, %arg3: memref<1x8x32xf32, #tpu.memory_space<vmem>>, %arg4: memref<1x8x32xf32, #tpu.memory_space<vmem>>, %arg5: memref<1x8x32xf32, #tpu.memory_space<vmem>>, %arg6: memref<4x32x16xf32, #tpu.memory_space<vmem>>, %arg7: memref<4x1x16xf32, #tpu.memory_space<vmem>>, %arg8: memref<4x32x16xf32, #tpu.memory_space<vmem>>, %arg9: memref<4x1x16xf32, #tpu.memory_space<vmem>>, %arg10: memref<4x32x16xf32, #tpu.memory_space<vmem>>, %arg11: memref<4x1x16xf32, #tpu.memory_space<vmem>>, %arg12: memref<4x16x32xf32, #tpu.memory_space<vmem>>, %arg13: memref<1x32xf32, #tpu.memory_space<vmem>>, %arg14: memref<1x8x32xf32, #tpu.memory_space<vmem>>, %arg15: memref<4x8x16xf32, #tpu.memory_space<vmem>>, %arg16: memref<4x8x1xf32, #tpu.memory_space<vmem>>, %arg17: memref<4x8x1xf32, #tpu.memory_space<vmem>>, %arg18: memref<4x8x16xf32, #tpu.memory_space<vmem>>) attributes {dimension_semantics = [#tpu.dimension_semantics<parallel>, #tpu.dimension_semantics<parallel>, #tpu.dimension_semantics<arbitrary>], iteration_bounds = array<i64: 2, 1, 1>, scalar_prefetch = 0 : i64, scratch_operands = 4 : i64, tpu.core_type = #tpu.core_type<tc>, window_params = [{transform_indices = @transform_0, window_bounds = array<i64: 1, 8, 32>}, {transform_indices = @transform_1, window_bounds = array<i64: 1, 8, 32>}, {transform_indices = @transform_2, window_bounds = array<i64: 1, 8, 32>}, {pipeline_mode = #tpu.pipeline_mode<synchronous>, transform_indices = @transform_3, window_bounds = array<i64: 4, 32, 16>}, {pipeline_mode = #tpu.pipeline_mode<synchronous>, transform_indices = @transform_4, window_bounds = array<i64: 4, 1, 16>}, {pipeline_mode = #tpu.pipeline_mode<synchronous>, transform_indices = @transform_5, window_bounds = array<i64: 4, 32, 16>}, {pipeline_mode = #tpu.pipeline_mode<synchronous>, transform_indices = @transform_6, window_bounds = array<i64: 4, 1, 16>}, {pipeline_mode = #tpu.pipeline_mode<synchronous>, transform_indices = @transform_7, window_bounds = array<i64: 4, 32, 16>}, {pipeline_mode = #tpu.pipeline_mode<synchronous>, transform_indices = @transform_8, window_bounds = array<i64: 4, 1, 16>}, {pipeline_mode = #tpu.pipeline_mode<synchronous>, transform_indices = @transform_9, window_bounds = array<i64: 4, 16, 32>}, {pipeline_mode = #tpu.pipeline_mode<synchronous>, transform_indices = @transform_10, window_bounds = array<i64: 1, 32>}, {transform_indices = @transform_11, window_bounds = array<i64: 1, 8, 32>}]} {
    %c0_i32 = arith.constant 0 : i32
    %0 = arith.cmpi eq, %arg2, %c0_i32 : i32
    %1 = arith.extui %0 : i1 to i32
    %c0_i32_0 = arith.constant 0 : i32
    %2 = arith.cmpi ne, %1, %c0_i32_0 : i32
    scf.if %2 {
      %cst_46 = arith.constant 0xFF800000 : f32
      %46 = vector.broadcast %cst_46 : f32 to vector<4x8x1xf32>
      %c0_47 = arith.constant 0 : index
      %c0_48 = arith.constant 0 : index
      %c0_49 = arith.constant 0 : index
      %47 = vector.load %arg16[%c0_47, %c0_48, %c0_49] : memref<4x8x1xf32, #tpu.memory_space<vmem>>, vector<4x8x1xf32>
      tpu.vector_store %arg16[%c0_47, %c0_48, %c0_49], %46 {strides = array<i32>} : memref<4x8x1xf32, #tpu.memory_space<vmem>>, vector<4x8x1xf32>,
      %cst_50 = arith.constant 0.000000e+00 : f32
      %48 = vector.broadcast %cst_50 : f32 to vector<4x8x1xf32>
      %c0_51 = arith.constant 0 : index
      %c0_52 = arith.constant 0 : index
      %c0_53 = arith.constant 0 : index
      %49 = vector.load %arg17[%c0_51, %c0_52, %c0_53] : memref<4x8x1xf32, #tpu.memory_space<vmem>>, vector<4x8x1xf32>
      tpu.vector_store %arg17[%c0_51, %c0_52, %c0_53], %48 {strides = array<i32>} : memref<4x8x1xf32, #tpu.memory_space<vmem>>, vector<4x8x1xf32>,
      %cst_54 = arith.constant 0.000000e+00 : f32
      %50 = vector.broadcast %cst_54 : f32 to vector<4x8x16xf32>
      %c0_55 = arith.constant 0 : index
      %c0_56 = arith.constant 0 : index
      %c0_57 = arith.constant 0 : index
      %51 = vector.load %arg18[%c0_55, %c0_56, %c0_57] : memref<4x8x16xf32, #tpu.memory_space<vmem>>, vector<4x8x16xf32>
      tpu.vector_store %arg18[%c0_55, %c0_56, %c0_57], %50 {strides = array<i32>} : memref<4x8x16xf32, #tpu.memory_space<vmem>>, vector<4x8x16xf32>,
      %c0_58 = arith.constant 0 : index
      %c0_59 = arith.constant 0 : index
      %c0_60 = arith.constant 0 : index
      %52 = vector.load %arg3[%c0_58, %c0_59, %c0_60] : memref<1x8x32xf32, #tpu.memory_space<vmem>>, vector<1x8x32xf32>
      %53 = vector.shape_cast %52 : vector<1x8x32xf32> to vector<1x8x32xf32>
      %54 = vector.broadcast %53 : vector<1x8x32xf32> to vector<4x8x32xf32>
      %c0_61 = arith.constant 0 : index
      %c0_62 = arith.constant 0 : index
      %c0_63 = arith.constant 0 : index
      %55 = vector.load %arg6[%c0_61, %c0_62, %c0_63] : memref<4x32x16xf32, #tpu.memory_space<vmem>>, vector<4x32x16xf32>
      "tpu.trace_start"() <{level = 10 : i32, message = "htd,hdq->htq"}> : () -> ()
      %cst_64 = arith.constant dense<0.000000e+00> : vector<4x8x16xf32>
      %56 = tpu.matmul %54, %55, %cst_64 {dimension_numbers = #tpu.dot_dimension_numbers<[2], [1], [1], [2], [0, 0, 0, 1, 1, 2], [0], [0]>} : vector<4x8x32xf32>, vector<4x32x16xf32>, vector<4x8x16xf32> -> vector<4x8x16xf32>
      "tpu.trace_stop"() : () -> ()
      %c0_65 = arith.constant 0 : index
      %c0_66 = arith.constant 0 : index
      %c0_67 = arith.constant 0 : index
      %57 = vector.load %arg7[%c0_65, %c0_66, %c0_67] : memref<4x1x16xf32, #tpu.memory_space<vmem>>, vector<4x1x16xf32>
      %58 = vector.broadcast %57 : vector<4x1x16xf32> to vector<4x8x16xf32>
      %59 = arith.addf %56, %58 : vector<4x8x16xf32>
      %cst_68 = arith.constant 2.500000e-01 : f32
      %60 = vector.broadcast %cst_68 : f32 to vector<4x8x16xf32>
      %61 = arith.mulf %59, %60 : vector<4x8x16xf32>
      %c0_69 = arith.constant 0 : index
      %c0_70 = arith.constant 0 : index
      %c0_71 = arith.constant 0 : index
      %62 = vector.load %arg15[%c0_69, %c0_70, %c0_71] : memref<4x8x16xf32, #tpu.memory_space<vmem>>, vector<4x8x16xf32>
      tpu.vector_store %arg15[%c0_69, %c0_70, %c0_71], %61 {strides = array<i32>} : memref<4x8x16xf32, #tpu.memory_space<vmem>>, vector<4x8x16xf32>,
    } else {
    }
    %c0 = arith.constant 0 : index
    %c0_1 = arith.constant 0 : index
    %c0_2 = arith.constant 0 : index
    %3 = vector.load %arg4[%c0, %c0_1, %c0_2] : memref<1x8x32xf32, #tpu.memory_space<vmem>>, vector<1x8x32xf32>
    %4 = vector.shape_cast %3 : vector<1x8x32xf32> to vector<1x8x32xf32>
    %5 = vector.broadcast %4 : vector<1x8x32xf32> to vector<4x8x32xf32>
    %c0_3 = arith.constant 0 : index
    %c0_4 = arith.constant 0 : index
    %c0_5 = arith.constant 0 : index
    %6 = vector.load %arg5[%c0_3, %c0_4, %c0_5] : memref<1x8x32xf32, #tpu.memory_space<vmem>>, vector<1x8x32xf32>
    %7 = vector.shape_cast %6 : vector<1x8x32xf32> to vector<1x8x32xf32>
    %8 = vector.broadcast %7 : vector<1x8x32xf32> to vector<4x8x32xf32>
    %c0_6 = arith.constant 0 : index
    %c0_7 = arith.constant 0 : index
    %c0_8 = arith.constant 0 : index
    %9 = vector.load %arg8[%c0_6, %c0_7, %c0_8] : memref<4x32x16xf32, #tpu.memory_space<vmem>>, vector<4x32x16xf32>
    "tpu.trace_start"() <{level = 10 : i32, message = "htd,hdk->htk"}> : () -> ()
    %cst = arith.constant dense<0.000000e+00> : vector<4x8x16xf32>
    %10 = tpu.matmul %5, %9, %cst {dimension_numbers = #tpu.dot_dimension_numbers<[2], [1], [1], [2], [0, 0, 0, 1, 1, 2], [0], [0]>} : vector<4x8x32xf32>, vector<4x32x16xf32>, vector<4x8x16xf32> -> vector<4x8x16xf32>
    "tpu.trace_stop"() : () -> ()
    %c0_9 = arith.constant 0 : index
    %c0_10 = arith.constant 0 : index
    %c0_11 = arith.constant 0 : index
    %11 = vector.load %arg9[%c0_9, %c0_10, %c0_11] : memref<4x1x16xf32, #tpu.memory_space<vmem>>, vector<4x1x16xf32>
    %12 = vector.broadcast %11 : vector<4x1x16xf32> to vector<4x8x16xf32>
    %13 = arith.addf %10, %12 : vector<4x8x16xf32>
    %c0_12 = arith.constant 0 : index
    %c0_13 = arith.constant 0 : index
    %c0_14 = arith.constant 0 : index
    %14 = vector.load %arg10[%c0_12, %c0_13, %c0_14] : memref<4x32x16xf32, #tpu.memory_space<vmem>>, vector<4x32x16xf32>
    "tpu.trace_start"() <{level = 10 : i32, message = "htd,hdk->htk"}> : () -> ()
    %cst_15 = arith.constant dense<0.000000e+00> : vector<4x8x16xf32>
    %15 = tpu.matmul %8, %14, %cst_15 {dimension_numbers = #tpu.dot_dimension_numbers<[2], [1], [1], [2], [0, 0, 0, 1, 1, 2], [0], [0]>} : vector<4x8x32xf32>, vector<4x32x16xf32>, vector<4x8x16xf32> -> vector<4x8x16xf32>
    "tpu.trace_stop"() : () -> ()
    %c0_16 = arith.constant 0 : index
    %c0_17 = arith.constant 0 : index
    %c0_18 = arith.constant 0 : index
    %16 = vector.load %arg11[%c0_16, %c0_17, %c0_18] : memref<4x1x16xf32, #tpu.memory_space<vmem>>, vector<4x1x16xf32>
    %17 = vector.broadcast %16 : vector<4x1x16xf32> to vector<4x8x16xf32>
    %18 = arith.addf %15, %17 : vector<4x8x16xf32>
    %c0_19 = arith.constant 0 : index
    %c0_20 = arith.constant 0 : index
    %c0_21 = arith.constant 0 : index
    %19 = vector.load %arg15[%c0_19, %c0_20, %c0_21] : memref<4x8x16xf32, #tpu.memory_space<vmem>>, vector<4x8x16xf32>
    "tpu.trace_start"() <{level = 10 : i32, message = "hqd,hkd->hqk"}> : () -> ()
    %cst_22 = arith.constant dense<0.000000e+00> : vector<4x8x8xf32>
    %20 = tpu.matmul %19, %13, %cst_22 {dimension_numbers = #tpu.dot_dimension_numbers<[2], [2], [1], [1], [0, 0, 0, 1, 1, 1], [0], [0]>} : vector<4x8x16xf32>, vector<4x8x16xf32>, vector<4x8x8xf32> -> vector<4x8x8xf32>
    "tpu.trace_stop"() : () -> ()
    %c0_23 = arith.constant 0 : index
    %c0_24 = arith.constant 0 : index
    %c0_25 = arith.constant 0 : index
    %21 = vector.load %arg16[%c0_23, %c0_24, %c0_25] : memref<4x8x1xf32, #tpu.memory_space<vmem>>, vector<4x8x1xf32>
    %cst_26 = arith.constant dense<0xFF800000> : vector<4x8xf32>
    %22 = vector.multi_reduction <maximumf>, %20, %cst_26 [2] : vector<4x8x8xf32> to vector<4x8xf32>
    %23 = vector.shape_cast %22 : vector<4x8xf32> to vector<4x8x1xf32>
    %24 = arith.maximumf %21, %23 : vector<4x8x1xf32>
    %25 = arith.subf %21, %24 : vector<4x8x1xf32>
    %26 = math.exp %25 : vector<4x8x1xf32>
    %27 = vector.broadcast %24 : vector<4x8x1xf32> to vector<4x8x8xf32>
    %28 = arith.subf %20, %27 : vector<4x8x8xf32>
    %29 = math.exp %28 : vector<4x8x8xf32>
    %c0_27 = arith.constant 0 : index
    %c0_28 = arith.constant 0 : index
    %c0_29 = arith.constant 0 : index
    %30 = vector.load %arg17[%c0_27, %c0_28, %c0_29] : memref<4x8x1xf32, #tpu.memory_space<vmem>>, vector<4x8x1xf32>
    %31 = arith.mulf %26, %30 : vector<4x8x1xf32>
    %cst_30 = arith.constant dense<0.000000e+00> : vector<4x8xf32>
    %32 = vector.multi_reduction <add>, %29, %cst_30 [2] : vector<4x8x8xf32> to vector<4x8xf32>
    %33 = vector.shape_cast %32 : vector<4x8xf32> to vector<4x8x1xf32>
    %34 = arith.addf %31, %33 : vector<4x8x1xf32>
    %c0_31 = arith.constant 0 : index
    %c0_32 = arith.constant 0 : index
    %c0_33 = arith.constant 0 : index
    %35 = vector.load %arg17[%c0_31, %c0_32, %c0_33] : memref<4x8x1xf32, #tpu.memory_space<vmem>>, vector<4x8x1xf32>
    tpu.vector_store %arg17[%c0_31, %c0_32, %c0_33], %34 {strides = array<i32>} : memref<4x8x1xf32, #tpu.memory_space<vmem>>, vector<4x8x1xf32>,
    %c0_34 = arith.constant 0 : index
    %c0_35 = arith.constant 0 : index
    %c0_36 = arith.constant 0 : index
    %36 = vector.load %arg18[%c0_34, %c0_35, %c0_36] : memref<4x8x16xf32, #tpu.memory_space<vmem>>, vector<4x8x16xf32>
    %37 = vector.broadcast %26 : vector<4x8x1xf32> to vector<4x8x16xf32>
    %38 = arith.mulf %37, %36 : vector<4x8x16xf32>
    "tpu.trace_start"() <{level = 10 : i32, message = "hqk,hkd->hqd"}> : () -> ()
    %cst_37 = arith.constant dense<0.000000e+00> : vector<4x8x16xf32>
    %39 = tpu.matmul %29, %18, %cst_37 {dimension_numbers = #tpu.dot_dimension_numbers<[2], [1], [1], [2], [0, 0, 0, 1, 1, 2], [0], [0]>} : vector<4x8x8xf32>, vector<4x8x16xf32>, vector<4x8x16xf32> -> vector<4x8x16xf32>
    "tpu.trace_stop"() : () -> ()
    %40 = arith.addf %38, %39 : vector<4x8x16xf32>
    %c0_38 = arith.constant 0 : index
    %c0_39 = arith.constant 0 : index
    %c0_40 = arith.constant 0 : index
    %41 = vector.load %arg18[%c0_38, %c0_39, %c0_40] : memref<4x8x16xf32, #tpu.memory_space<vmem>>, vector<4x8x16xf32>
    tpu.vector_store %arg18[%c0_38, %c0_39, %c0_40], %40 {strides = array<i32>} : memref<4x8x16xf32, #tpu.memory_space<vmem>>, vector<4x8x16xf32>,
    %c0_41 = arith.constant 0 : index
    %c0_42 = arith.constant 0 : index
    %c0_43 = arith.constant 0 : index
    %42 = vector.load %arg16[%c0_41, %c0_42, %c0_43] : memref<4x8x1xf32, #tpu.memory_space<vmem>>, vector<4x8x1xf32>
    tpu.vector_store %arg16[%c0_41, %c0_42, %c0_43], %24 {strides = array<i32>} : memref<4x8x1xf32, #tpu.memory_space<vmem>>, vector<4x8x1xf32>,
    %c0_i32_44 = arith.constant 0 : i32
    %43 = arith.cmpi eq, %arg2, %c0_i32_44 : i32
    %44 = arith.extui %43 : i1 to i32
    %c0_i32_45 = arith.constant 0 : i32
    %45 = arith.cmpi ne, %44, %c0_i32_45 : i32
    scf.if %45 {
      %c0_46 = arith.constant 0 : index
      %c0_47 = arith.constant 0 : index
      %c0_48 = arith.constant 0 : index
      %46 = vector.load %arg18[%c0_46, %c0_47, %c0_48] : memref<4x8x16xf32, #tpu.memory_space<vmem>>, vector<4x8x16xf32>
      %c0_49 = arith.constant 0 : index
      %c0_50 = arith.constant 0 : index
      %c0_51 = arith.constant 0 : index
      %47 = vector.load %arg17[%c0_49, %c0_50, %c0_51] : memref<4x8x1xf32, #tpu.memory_space<vmem>>, vector<4x8x1xf32>
      %48 = tpu.reciprocal %47 {approx = true} : vector<4x8x1xf32> -> vector<4x8x1xf32>
      %49 = vector.broadcast %48 : vector<4x8x1xf32> to vector<4x8x16xf32>
      %50 = arith.mulf %46, %49 : vector<4x8x16xf32>
      %c0_52 = arith.constant 0 : index
      %c0_53 = arith.constant 0 : index
      %c0_54 = arith.constant 0 : index
      %51 = vector.load %arg12[%c0_52, %c0_53, %c0_54] : memref<4x16x32xf32, #tpu.memory_space<vmem>>, vector<4x16x32xf32>
      "tpu.trace_start"() <{level = 10 : i32, message = "hqd,hdo->hqo"}> : () -> ()
      %cst_55 = arith.constant dense<0.000000e+00> : vector<4x8x32xf32>
      %52 = tpu.matmul %50, %51, %cst_55 {dimension_numbers = #tpu.dot_dimension_numbers<[2], [1], [1], [2], [0, 0, 0, 1, 1, 2], [0], [0]>} : vector<4x8x16xf32>, vector<4x16x32xf32>, vector<4x8x32xf32> -> vector<4x8x32xf32>
      "tpu.trace_stop"() : () -> ()
      %cst_56 = arith.constant dense<0.000000e+00> : vector<8x32xf32>
      %53 = vector.multi_reduction <add>, %52, %cst_56 [0] : vector<4x8x32xf32> to vector<8x32xf32>
      %c0_57 = arith.constant 0 : index
      %c0_58 = arith.constant 0 : index
      %54 = vector.load %arg13[%c0_57, %c0_58] : memref<1x32xf32, #tpu.memory_space<vmem>>, vector<1x32xf32>
      %55 = vector.broadcast %54 : vector<1x32xf32> to vector<8x32xf32>
      %56 = arith.addf %53, %55 : vector<8x32xf32>
      %c0_59 = arith.constant 0 : index
      %c0_60 = arith.constant 0 : index
      %c0_61 = arith.constant 0 : index
      %57 = vector.load %arg14[%c0_59, %c0_60, %c0_61] : memref<1x8x32xf32, #tpu.memory_space<vmem>>, vector<1x8x32xf32>
      %58 = vector.shape_cast %57 : vector<1x8x32xf32> to vector<8x32xf32>
      %59 = vector.shape_cast %56 : vector<8x32xf32> to vector<1x8x32xf32>
      tpu.vector_store %arg14[%c0_59, %c0_60, %c0_61], %59 {strides = array<i32>} : memref<1x8x32xf32, #tpu.memory_space<vmem>>, vector<1x8x32xf32>,
    } else {
    }
    return
  }
  func.func @transform_0(%arg0: i32, %arg1: i32, %arg2: i32) -> (i32, i32, i32) {
    %c0_i32 = arith.constant 0 : i32
    %c0_i32_0 = arith.constant 0 : i32
    return %arg0, %arg1, %c0_i32 : i32, i32, i32
  }
  func.func @transform_1(%arg0: i32, %arg1: i32, %arg2: i32) -> (i32, i32, i32) {
    %c0_i32 = arith.constant 0 : i32
    %c0_i32_0 = arith.constant 0 : i32
    return %arg0, %arg2, %c0_i32 : i32, i32, i32
  }
  func.func @transform_2(%arg0: i32, %arg1: i32, %arg2: i32) -> (i32, i32, i32) {
    %c0_i32 = arith.constant 0 : i32
    %c0_i32_0 = arith.constant 0 : i32
    return %arg0, %arg2, %c0_i32 : i32, i32, i32
  }
  func.func @transform_3(%arg0: i32, %arg1: i32, %arg2: i32) -> (i32, i32, i32) {
    %c0_i32 = arith.constant 0 : i32
    %c0_i32_0 = arith.constant 0 : i32
    %c0_i32_1 = arith.constant 0 : i32
    %c0_i32_2 = arith.constant 0 : i32
    return %c0_i32, %c0_i32_0, %c0_i32_1 : i32, i32, i32
  }
  func.func @transform_4(%arg0: i32, %arg1: i32, %arg2: i32) -> (i32, i32, i32) {
    %c0_i32 = arith.constant 0 : i32
    %c0_i32_0 = arith.constant 0 : i32
    %c0_i32_1 = arith.constant 0 : i32
    %c0_i32_2 = arith.constant 0 : i32
    return %c0_i32, %c0_i32_0, %c0_i32_1 : i32, i32, i32
  }
  func.func @transform_5(%arg0: i32, %arg1: i32, %arg2: i32) -> (i32, i32, i32) {
    %c0_i32 = arith.constant 0 : i32
    %c0_i32_0 = arith.constant 0 : i32
    %c0_i32_1 = arith.constant 0 : i32
    %c0_i32_2 = arith.constant 0 : i32
    return %c0_i32, %c0_i32_0, %c0_i32_1 : i32, i32, i32
  }
  func.func @transform_6(%arg0: i32, %arg1: i32, %arg2: i32) -> (i32, i32, i32) {
    %c0_i32 = arith.constant 0 : i32
    %c0_i32_0 = arith.constant 0 : i32
    %c0_i32_1 = arith.constant 0 : i32
    %c0_i32_2 = arith.constant 0 : i32
    return %c0_i32, %c0_i32_0, %c0_i32_1 : i32, i32, i32
  }
  func.func @transform_7(%arg0: i32, %arg1: i32, %arg2: i32) -> (i32, i32, i32) {
    %c0_i32 = arith.constant 0 : i32
    %c0_i32_0 = arith.constant 0 : i32
    %c0_i32_1 = arith.constant 0 : i32
    %c0_i32_2 = arith.constant 0 : i32
    return %c0_i32, %c0_i32_0, %c0_i32_1 : i32, i32, i32
  }
  func.func @transform_8(%arg0: i32, %arg1: i32, %arg2: i32) -> (i32, i32, i32) {
    %c0_i32 = arith.constant 0 : i32
    %c0_i32_0 = arith.constant 0 : i32
    %c0_i32_1 = arith.constant 0 : i32
    %c0_i32_2 = arith.constant 0 : i32
    return %c0_i32, %c0_i32_0, %c0_i32_1 : i32, i32, i32
  }
  func.func @transform_9(%arg0: i32, %arg1: i32, %arg2: i32) -> (i32, i32, i32) {
    %c0_i32 = arith.constant 0 : i32
    %c0_i32_0 = arith.constant 0 : i32
    %c0_i32_1 = arith.constant 0 : i32
    %c0_i32_2 = arith.constant 0 : i32
    return %c0_i32, %c0_i32_0, %c0_i32_1 : i32, i32, i32
  }
  func.func @transform_10(%arg0: i32, %arg1: i32, %arg2: i32) -> (i32, i32) {
    %c0_i32 = arith.constant 0 : i32
    %c0_i32_0 = arith.constant 0 : i32
    %c0_i32_1 = arith.constant 0 : i32
    return %c0_i32, %c0_i32_0 : i32, i32
  }
  func.func @transform_11(%arg0: i32, %arg1: i32, %arg2: i32) -> (i32, i32, i32) {
    %c0_i32 = arith.constant 0 : i32
    %c0_i32_0 = arith.constant 0 : i32
    return %arg0, %arg1, %c0_i32 : i32, i32, i32
  }
}

module attributes {stable_mosaic.version = 11 : i64} {
  func.func @mha_flash_kernel(%arg0: i32, %arg1: i32, %arg2: i32, %arg3: memref<1x8x32xf32, #tpu.memory_space<vmem>>, %arg4: memref<1x8x32xf32, #tpu.memory_space<vmem>>, %arg5: memref<1x8x32xf32, #tpu.memory_space<vmem>>, %arg6: memref<4x32x16xf32, #tpu.memory_space<vmem>>, %arg7: memref<4x1x16xf32, #tpu.memory_space<vmem>>, %arg8: memref<4x32x16xf32, #tpu.memory_space<vmem>>, %arg9: memref<4x1x16xf32, #tpu.memory_space<vmem>>, %arg10: memref<4x32x16xf32, #tpu.memory_space<vmem>>, %arg11: memref<4x1x16xf32, #tpu.memory_space<vmem>>, %arg12: memref<4x16x32xf32, #tpu.memory_space<vmem>>, %arg13: memref<1x32xf32, #tpu.memory_space<vmem>>, %arg14: memref<1x8x32xf32, #tpu.memory_space<vmem>>, %arg15: memref<4x8x16xf32, #tpu.memory_space<vmem>>, %arg16: memref<4x8x1xf32, #tpu.memory_space<vmem>>, %arg17: memref<4x8x1xf32, #tpu.memory_space<vmem>>, %arg18: memref<4x8x16xf32, #tpu.memory_space<vmem>>) attributes {dimension_semantics = [#tpu.dimension_semantics<parallel>, #tpu.dimension_semantics<parallel>, #tpu.dimension_semantics<arbitrary>], iteration_bounds = array<i64: 2, 1, 1>, scalar_prefetch = 0 : i64, scratch_operands = 4 : i64, tpu.core_type = #tpu.core_type<tc>, window_params = [{transform_indices = @transform_0, window_bounds = array<i64: 1, 8, 32>}, {transform_indices = @transform_1, window_bounds = array<i64: 1, 8, 32>}, {transform_indices = @transform_2, window_bounds = array<i64: 1, 8, 32>}, {pipeline_mode = #tpu.pipeline_mode<synchronous>, transform_indices = @transform_3, window_bounds = array<i64: 4, 32, 16>}, {pipeline_mode = #tpu.pipeline_mode<synchronous>, transform_indices = @transform_4, window_bounds = array<i64: 4, 1, 16>}, {pipeline_mode = #tpu.pipeline_mode<synchronous>, transform_indices = @transform_5, window_bounds = array<i64: 4, 32, 16>}, {pipeline_mode = #tpu.pipeline_mode<synchronous>, transform_indices = @transform_6, window_bounds = array<i64: 4, 1, 16>}, {pipeline_mode = #tpu.pipeline_mode<synchronous>, transform_indices = @transform_7, window_bounds = array<i64: 4, 32, 16>}, {pipeline_mode = #tpu.pipeline_mode<synchronous>, transform_indices = @transform_8, window_bounds = array<i64: 4, 1, 16>}, {pipeline_mode = #tpu.pipeline_mode<synchronous>, transform_indices = @transform_9, window_bounds = array<i64: 4, 16, 32>}, {pipeline_mode = #tpu.pipeline_mode<synchronous>, transform_indices = @transform_10, window_bounds = array<i64: 1, 32>}, {transform_indices = @transform_11, window_bounds = array<i64: 1, 8, 32>}]} {
    %c0_i32 = arith.constant 0 : i32
    %0 = arith.cmpi eq, %arg2, %c0_i32 : i32
    %1 = arith.extui %0 : i1 to i32
    %c0_i32_0 = arith.constant 0 : i32
    %2 = arith.cmpi ne, %1, %c0_i32_0 : i32
    scf.if %2 {
      %cst_46 = arith.constant 0xFF800000 : f32
      %46 = vector.broadcast %cst_46 : f32 to vector<4x8x1xf32>
      %c0_47 = arith.constant 0 : index
      %c0_48 = arith.constant 0 : index
      %c0_49 = arith.constant 0 : index
      %47 = vector.load %arg16[%c0_47, %c0_48, %c0_49] : memref<4x8x1xf32, #tpu.memory_space<vmem>>, vector<4x8x1xf32>
      tpu.vector_store %arg16[%c0_47, %c0_48, %c0_49], %46 {strides = array<i32>} : memref<4x8x1xf32, #tpu.memory_space<vmem>>, vector<4x8x1xf32>,
      %cst_50 = arith.constant 0.000000e+00 : f32
      %48 = vector.broadcast %cst_50 : f32 to vector<4x8x1xf32>
      %c0_51 = arith.constant 0 : index
      %c0_52 = arith.constant 0 : index
      %c0_53 = arith.constant 0 : index
      %49 = vector.load %arg17[%c0_51, %c0_52, %c0_53] : memref<4x8x1xf32, #tpu.memory_space<vmem>>, vector<4x8x1xf32>
      tpu.vector_store %arg17[%c0_51, %c0_52, %c0_53], %48 {strides = array<i32>} : memref<4x8x1xf32, #tpu.memory_space<vmem>>, vector<4x8x1xf32>,
      %cst_54 = arith.constant 0.000000e+00 : f32
      %50 = vector.broadcast %cst_54 : f32 to vector<4x8x16xf32>
      %c0_55 = arith.constant 0 : index
      %c0_56 = arith.constant 0 : index
      %c0_57 = arith.constant 0 : index
      %51 = vector.load %arg18[%c0_55, %c0_56, %c0_57] : memref<4x8x16xf32, #tpu.memory_space<vmem>>, vector<4x8x16xf32>
      tpu.vector_store %arg18[%c0_55, %c0_56, %c0_57], %50 {strides = array<i32>} : memref<4x8x16xf32, #tpu.memory_space<vmem>>, vector<4x8x16xf32>,
      %c0_58 = arith.constant 0 : index
      %c0_59 = arith.constant 0 : index
      %c0_60 = arith.constant 0 : index
      %52 = vector.load %arg3[%c0_58, %c0_59, %c0_60] : memref<1x8x32xf32, #tpu.memory_space<vmem>>, vector<1x8x32xf32>
      %53 = vector.shape_cast %52 : vector<1x8x32xf32> to vector<1x8x32xf32>
      %54 = vector.broadcast %53 : vector<1x8x32xf32> to vector<4x8x32xf32>
      %c0_61 = arith.constant 0 : index
      %c0_62 = arith.constant 0 : index
      %c0_63 = arith.constant 0 : index
      %55 = vector.load %arg6[%c0_61, %c0_62, %c0_63] : memref<4x32x16xf32, #tpu.memory_space<vmem>>, vector<4x32x16xf32>
      "tpu.trace_start"() <{level = 10 : i32, message = "htd,hdq->htq"}> : () -> ()
      %cst_64 = arith.constant dense<0.000000e+00> : vector<4x8x16xf32>
      %56 = tpu.matmul %54, %55, %cst_64 {dimension_numbers = #tpu.dot_dimension_numbers<[2], [1], [1], [2], [0, 0, 0, 1, 1, 2], [0], [0]>} : vector<4x8x32xf32>, vector<4x32x16xf32>, vector<4x8x16xf32> -> vector<4x8x16xf32>
      "tpu.trace_stop"() : () -> ()
      %c0_65 = arith.constant 0 : index
      %c0_66 = arith.constant 0 : index
      %c0_67 = arith.constant 0 : index
      %57 = vector.load %arg7[%c0_65, %c0_66, %c0_67] : memref<4x1x16xf32, #tpu.memory_space<vmem>>, vector<4x1x16xf32>
      %58 = vector.broadcast %57 : vector<4x1x16xf32> to vector<4x8x16xf32>
      %59 = arith.addf %56, %58 : vector<4x8x16xf32>
      %cst_68 = arith.constant 2.500000e-01 : f32
      %60 = vector.broadcast %cst_68 : f32 to vector<4x8x16xf32>
      %61 = arith.mulf %59, %60 : vector<4x8x16xf32>
      %c0_69 = arith.constant 0 : index
      %c0_70 = arith.constant 0 : index
      %c0_71 = arith.constant 0 : index
      %62 = vector.load %arg15[%c0_69, %c0_70, %c0_71] : memref<4x8x16xf32, #tpu.memory_space<vmem>>, vector<4x8x16xf32>
      tpu.vector_store %arg15[%c0_69, %c0_70, %c0_71], %61 {strides = array<i32>} : memref<4x8x16xf32, #tpu.memory_space<vmem>>, vector<4x8x16xf32>,
    } else {
    }
    %c0 = arith.constant 0 : index
    %c0_1 = arith.constant 0 : index
    %c0_2 = arith.constant 0 : index
    %3 = vector.load %arg4[%c0, %c0_1, %c0_2] : memref<1x8x32xf32, #tpu.memory_space<vmem>>, vector<1x8x32xf32>
    %4 = vector.shape_cast %3 : vector<1x8x32xf32> to vector<1x8x32xf32>
    %5 = vector.broadcast %4 : vector<1x8x32xf32> to vector<4x8x32xf32>
    %c0_3 = arith.constant 0 : index
    %c0_4 = arith.constant 0 : index
    %c0_5 = arith.constant 0 : index
    %6 = vector.load %arg5[%c0_3, %c0_4, %c0_5] : memref<1x8x32xf32, #tpu.memory_space<vmem>>, vector<1x8x32xf32>
    %7 = vector.shape_cast %6 : vector<1x8x32xf32> to vector<1x8x32xf32>
    %8 = vector.broadcast %7 : vector<1x8x32xf32> to vector<4x8x32xf32>
    %c0_6 = arith.constant 0 : index
    %c0_7 = arith.constant 0 : index
    %c0_8 = arith.constant 0 : index
    %9 = vector.load %arg8[%c0_6, %c0_7, %c0_8] : memref<4x32x16xf32, #tpu.memory_space<vmem>>, vector<4x32x16xf32>
    "tpu.trace_start"() <{level = 10 : i32, message = "htd,hdk->htk"}> : () -> ()
    %cst = arith.constant dense<0.000000e+00> : vector<4x8x16xf32>
    %10 = tpu.matmul %5, %9, %cst {dimension_numbers = #tpu.dot_dimension_numbers<[2], [1], [1], [2], [0, 0, 0, 1, 1, 2], [0], [0]>} : vector<4x8x32xf32>, vector<4x32x16xf32>, vector<4x8x16xf32> -> vector<4x8x16xf32>
    "tpu.trace_stop"() : () -> ()
    %c0_9 = arith.constant 0 : index
    %c0_10 = arith.constant 0 : index
    %c0_11 = arith.constant 0 : index
    %11 = vector.load %arg9[%c0_9, %c0_10, %c0_11] : memref<4x1x16xf32, #tpu.memory_space<vmem>>, vector<4x1x16xf32>
    %12 = vector.broadcast %11 : vector<4x1x16xf32> to vector<4x8x16xf32>
    %13 = arith.addf %10, %12 : vector<4x8x16xf32>
    %c0_12 = arith.constant 0 : index
    %c0_13 = arith.constant 0 : index
    %c0_14 = arith.constant 0 : index
    %14 = vector.load %arg10[%c0_12, %c0_13, %c0_14] : memref<4x32x16xf32, #tpu.memory_space<vmem>>, vector<4x32x16xf32>
    "tpu.trace_start"() <{level = 10 : i32, message = "htd,hdk->htk"}> : () -> ()
    %cst_15 = arith.constant dense<0.000000e+00> : vector<4x8x16xf32>
    %15 = tpu.matmul %8, %14, %cst_15 {dimension_numbers = #tpu.dot_dimension_numbers<[2], [1], [1], [2], [0, 0, 0, 1, 1, 2], [0], [0]>} : vector<4x8x32xf32>, vector<4x32x16xf32>, vector<4x8x16xf32> -> vector<4x8x16xf32>
    "tpu.trace_stop"() : () -> ()
    %c0_16 = arith.constant 0 : index
    %c0_17 = arith.constant 0 : index
    %c0_18 = arith.constant 0 : index
    %16 = vector.load %arg11[%c0_16, %c0_17, %c0_18] : memref<4x1x16xf32, #tpu.memory_space<vmem>>, vector<4x1x16xf32>
    %17 = vector.broadcast %16 : vector<4x1x16xf32> to vector<4x8x16xf32>
    %18 = arith.addf %15, %17 : vector<4x8x16xf32>
    %c0_19 = arith.constant 0 : index
    %c0_20 = arith.constant 0 : index
    %c0_21 = arith.constant 0 : index
    %19 = vector.load %arg15[%c0_19, %c0_20, %c0_21] : memref<4x8x16xf32, #tpu.memory_space<vmem>>, vector<4x8x16xf32>
    "tpu.trace_start"() <{level = 10 : i32, message = "hqd,hkd->hqk"}> : () -> ()
    %cst_22 = arith.constant dense<0.000000e+00> : vector<4x8x8xf32>
    %20 = tpu.matmul %19, %13, %cst_22 {dimension_numbers = #tpu.dot_dimension_numbers<[2], [2], [1], [1], [0, 0, 0, 1, 1, 1], [0], [0]>} : vector<4x8x16xf32>, vector<4x8x16xf32>, vector<4x8x8xf32> -> vector<4x8x8xf32>
    "tpu.trace_stop"() : () -> ()
    %c0_23 = arith.constant 0 : index
    %c0_24 = arith.constant 0 : index
    %c0_25 = arith.constant 0 : index
    %21 = vector.load %arg16[%c0_23, %c0_24, %c0_25] : memref<4x8x1xf32, #tpu.memory_space<vmem>>, vector<4x8x1xf32>
    %cst_26 = arith.constant dense<0xFF800000> : vector<4x8xf32>
    %22 = vector.multi_reduction <maximumf>, %20, %cst_26 [2] : vector<4x8x8xf32> to vector<4x8xf32>
    %23 = vector.shape_cast %22 : vector<4x8xf32> to vector<4x8x1xf32>
    %24 = arith.maximumf %21, %23 : vector<4x8x1xf32>
    %25 = arith.subf %21, %24 : vector<4x8x1xf32>
    %26 = math.exp %25 : vector<4x8x1xf32>
    %27 = vector.broadcast %24 : vector<4x8x1xf32> to vector<4x8x8xf32>
    %28 = arith.subf %20, %27 : vector<4x8x8xf32>
    %29 = math.exp %28 : vector<4x8x8xf32>
    %c0_27 = arith.constant 0 : index
    %c0_28 = arith.constant 0 : index
    %c0_29 = arith.constant 0 : index
    %30 = vector.load %arg17[%c0_27, %c0_28, %c0_29] : memref<4x8x1xf32, #tpu.memory_space<vmem>>, vector<4x8x1xf32>
    %31 = arith.mulf %26, %30 : vector<4x8x1xf32>
    %cst_30 = arith.constant dense<0.000000e+00> : vector<4x8xf32>
    %32 = vector.multi_reduction <add>, %29, %cst_30 [2] : vector<4x8x8xf32> to vector<4x8xf32>
    %33 = vector.shape_cast %32 : vector<4x8xf32> to vector<4x8x1xf32>
    %34 = arith.addf %31, %33 : vector<4x8x1xf32>
    %c0_31 = arith.constant 0 : index
    %c0_32 = arith.constant 0 : index
    %c0_33 = arith.constant 0 : index
    %35 = vector.load %arg17[%c0_31, %c0_32, %c0_33] : memref<4x8x1xf32, #tpu.memory_space<vmem>>, vector<4x8x1xf32>
    tpu.vector_store %arg17[%c0_31, %c0_32, %c0_33], %34 {strides = array<i32>} : memref<4x8x1xf32, #tpu.memory_space<vmem>>, vector<4x8x1xf32>,
    %c0_34 = arith.constant 0 : index
    %c0_35 = arith.constant 0 : index
    %c0_36 = arith.constant 0 : index
    %36 = vector.load %arg18[%c0_34, %c0_35, %c0_36] : memref<4x8x16xf32, #tpu.memory_space<vmem>>, vector<4x8x16xf32>
    %37 = vector.broadcast %26 : vector<4x8x1xf32> to vector<4x8x16xf32>
    %38 = arith.mulf %37, %36 : vector<4x8x16xf32>
    "tpu.trace_start"() <{level = 10 : i32, message = "hqk,hkd->hqd"}> : () -> ()
    %cst_37 = arith.constant dense<0.000000e+00> : vector<4x8x16xf32>
    %39 = tpu.matmul %29, %18, %cst_37 {dimension_numbers = #tpu.dot_dimension_numbers<[2], [1], [1], [2], [0, 0, 0, 1, 1, 2], [0], [0]>} : vector<4x8x8xf32>, vector<4x8x16xf32>, vector<4x8x16xf32> -> vector<4x8x16xf32>
    "tpu.trace_stop"() : () -> ()
    %40 = arith.addf %38, %39 : vector<4x8x16xf32>
    %c0_38 = arith.constant 0 : index
    %c0_39 = arith.constant 0 : index
    %c0_40 = arith.constant 0 : index
    %41 = vector.load %arg18[%c0_38, %c0_39, %c0_40] : memref<4x8x16xf32, #tpu.memory_space<vmem>>, vector<4x8x16xf32>
    tpu.vector_store %arg18[%c0_38, %c0_39, %c0_40], %40 {strides = array<i32>} : memref<4x8x16xf32, #tpu.memory_space<vmem>>, vector<4x8x16xf32>,
    %c0_41 = arith.constant 0 : index
    %c0_42 = arith.constant 0 : index
    %c0_43 = arith.constant 0 : index
    %42 = vector.load %arg16[%c0_41, %c0_42, %c0_43] : memref<4x8x1xf32, #tpu.memory_space<vmem>>, vector<4x8x1xf32>
    tpu.vector_store %arg16[%c0_41, %c0_42, %c0_43], %24 {strides = array<i32>} : memref<4x8x1xf32, #tpu.memory_space<vmem>>, vector<4x8x1xf32>,
    %c0_i32_44 = arith.constant 0 : i32
    %43 = arith.cmpi eq, %arg2, %c0_i32_44 : i32
    %44 = arith.extui %43 : i1 to i32
    %c0_i32_45 = arith.constant 0 : i32
    %45 = arith.cmpi ne, %44, %c0_i32_45 : i32
    scf.if %45 {
      %c0_46 = arith.constant 0 : index
      %c0_47 = arith.constant 0 : index
      %c0_48 = arith.constant 0 : index
      %46 = vector.load %arg18[%c0_46, %c0_47, %c0_48] : memref<4x8x16xf32, #tpu.memory_space<vmem>>, vector<4x8x16xf32>
      %c0_49 = arith.constant 0 : index
      %c0_50 = arith.constant 0 : index
      %c0_51 = arith.constant 0 : index
      %47 = vector.load %arg17[%c0_49, %c0_50, %c0_51] : memref<4x8x1xf32, #tpu.memory_space<vmem>>, vector<4x8x1xf32>
      %48 = tpu.reciprocal %47 {approx = true} : vector<4x8x1xf32> -> vector<4x8x1xf32>
      %49 = vector.broadcast %48 : vector<4x8x1xf32> to vector<4x8x16xf32>
      %50 = arith.mulf %46, %49 : vector<4x8x16xf32>
      %c0_52 = arith.constant 0 : index
      %c0_53 = arith.constant 0 : index
      %c0_54 = arith.constant 0 : index
      %51 = vector.load %arg12[%c0_52, %c0_53, %c0_54] : memref<4x16x32xf32, #tpu.memory_space<vmem>>, vector<4x16x32xf32>
      "tpu.trace_start"() <{level = 10 : i32, message = "hqd,hdo->hqo"}> : () -> ()
      %cst_55 = arith.constant dense<0.000000e+00> : vector<4x8x32xf32>
      %52 = tpu.matmul %50, %51, %cst_55 {dimension_numbers = #tpu.dot_dimension_numbers<[2], [1], [1], [2], [0, 0, 0, 1, 1, 2], [0], [0]>} : vector<4x8x16xf32>, vector<4x16x32xf32>, vector<4x8x32xf32> -> vector<4x8x32xf32>
      "tpu.trace_stop"() : () -> ()
      %cst_56 = arith.constant dense<0.000000e+00> : vector<8x32xf32>
      %53 = vector.multi_reduction <add>, %52, %cst_56 [0] : vector<4x8x32xf32> to vector<8x32xf32>
      %c0_57 = arith.constant 0 : index
      %c0_58 = arith.constant 0 : index
      %54 = vector.load %arg13[%c0_57, %c0_58] : memref<1x32xf32, #tpu.memory_space<vmem>>, vector<1x32xf32>
      %55 = vector.broadcast %54 : vector<1x32xf32> to vector<8x32xf32>
      %56 = arith.addf %53, %55 : vector<8x32xf32>
      %c0_59 = arith.constant 0 : index
      %c0_60 = arith.constant 0 : index
      %c0_61 = arith.constant 0 : index
      %57 = vector.load %arg14[%c0_59, %c0_60, %c0_61] : memref<1x8x32xf32, #tpu.memory_space<vmem>>, vector<1x8x32xf32>
      %58 = vector.shape_cast %57 : vector<1x8x32xf32> to vector<8x32xf32>
      %59 = vector.shape_cast %56 : vector<8x32xf32> to vector<1x8x32xf32>
      tpu.vector_store %arg14[%c0_59, %c0_60, %c0_61], %59 {strides = array<i32>} : memref<1x8x32xf32, #tpu.memory_space<vmem>>, vector<1x8x32xf32>,
    } else {
    }
    return
  }
  func.func @transform_0(%arg0: i32, %arg1: i32, %arg2: i32) -> (i32, i32, i32) {
    %c0_i32 = arith.constant 0 : i32
    %c0_i32_0 = arith.constant 0 : i32
    return %arg0, %arg1, %c0_i32 : i32, i32, i32
  }
  func.func @transform_1(%arg0: i32, %arg1: i32, %arg2: i32) -> (i32, i32, i32) {
    %c0_i32 = arith.constant 0 : i32
    %c0_i32_0 = arith.constant 0 : i32
    return %arg0, %arg2, %c0_i32 : i32, i32, i32
  }
  func.func @transform_2(%arg0: i32, %arg1: i32, %arg2: i32) -> (i32, i32, i32) {
    %c0_i32 = arith.constant 0 : i32
    %c0_i32_0 = arith.constant 0 : i32
    return %arg0, %arg2, %c0_i32 : i32, i32, i32
  }
  func.func @transform_3(%arg0: i32, %arg1: i32, %arg2: i32) -> (i32, i32, i32) {
    %c0_i32 = arith.constant 0 : i32
    %c0_i32_0 = arith.constant 0 : i32
    %c0_i32_1 = arith.constant 0 : i32
    %c0_i32_2 = arith.constant 0 : i32
    return %c0_i32, %c0_i32_0, %c0_i32_1 : i32, i32, i32
  }
  func.func @transform_4(%arg0: i32, %arg1: i32, %arg2: i32) -> (i32, i32, i32) {
    %c0_i32 = arith.constant 0 : i32
    %c0_i32_0 = arith.constant 0 : i32
    %c0_i32_1 = arith.constant 0 : i32
    %c0_i32_2 = arith.constant 0 : i32
    return %c0_i32, %c0_i32_0, %c0_i32_1 : i32, i32, i32
  }
  func.func @transform_5(%arg0: i32, %arg1: i32, %arg2: i32) -> (i32, i32, i32) {
    %c0_i32 = arith.constant 0 : i32
    %c0_i32_0 = arith.constant 0 : i32
    %c0_i32_1 = arith.constant 0 : i32
    %c0_i32_2 = arith.constant 0 : i32
    return %c0_i32, %c0_i32_0, %c0_i32_1 : i32, i32, i32
  }
  func.func @transform_6(%arg0: i32, %arg1: i32, %arg2: i32) -> (i32, i32, i32) {
    %c0_i32 = arith.constant 0 : i32
    %c0_i32_0 = arith.constant 0 : i32
    %c0_i32_1 = arith.constant 0 : i32
    %c0_i32_2 = arith.constant 0 : i32
    return %c0_i32, %c0_i32_0, %c0_i32_1 : i32, i32, i32
  }
  func.func @transform_7(%arg0: i32, %arg1: i32, %arg2: i32) -> (i32, i32, i32) {
    %c0_i32 = arith.constant 0 : i32
    %c0_i32_0 = arith.constant 0 : i32
    %c0_i32_1 = arith.constant 0 : i32
    %c0_i32_2 = arith.constant 0 : i32
    return %c0_i32, %c0_i32_0, %c0_i32_1 : i32, i32, i32
  }
  func.func @transform_8(%arg0: i32, %arg1: i32, %arg2: i32) -> (i32, i32, i32) {
    %c0_i32 = arith.constant 0 : i32
    %c0_i32_0 = arith.constant 0 : i32
    %c0_i32_1 = arith.constant 0 : i32
    %c0_i32_2 = arith.constant 0 : i32
    return %c0_i32, %c0_i32_0, %c0_i32_1 : i32, i32, i32
  }
  func.func @transform_9(%arg0: i32, %arg1: i32, %arg2: i32) -> (i32, i32, i32) {
    %c0_i32 = arith.constant 0 : i32
    %c0_i32_0 = arith.constant 0 : i32
    %c0_i32_1 = arith.constant 0 : i32
    %c0_i32_2 = arith.constant 0 : i32
    return %c0_i32, %c0_i32_0, %c0_i32_1 : i32, i32, i32
  }
  func.func @transform_10(%arg0: i32, %arg1: i32, %arg2: i32) -> (i32, i32) {
    %c0_i32 = arith.constant 0 : i32
    %c0_i32_0 = arith.constant 0 : i32
    %c0_i32_1 = arith.constant 0 : i32
    return %c0_i32, %c0_i32_0 : i32, i32
  }
  func.func @transform_11(%arg0: i32, %arg1: i32, %arg2: i32) -> (i32, i32, i32) {
    %c0_i32 = arith.constant 0 : i32
    %c0_i32_0 = arith.constant 0 : i32
    return %arg0, %arg1, %c0_i32 : i32, i32, i32
  }
}

</mosaic_0001>

<llo_original>
// kernel: tpu_custom_call.1
$region0: #{tpu_custom_call.1}
  #allocation0 [shape = 'u32[]', space=smem, size = 0x4, offset = 0x4, fixed_abs, tag = 'smem constant byte address 0x4 - core index']
  #allocation1 [shape = 'u32[144,128]{1,0:T(1,128)}', space=vmem, size = 0x12000, scoped, tag = 'internal scratch']
  #allocation2 [shape = 'f32[4,8,16]{2,1,0:T(8,128)}', space=vmem, size = 0x4000, scoped, tag = 'scratch operand']
  #allocation3 [shape = 'f32[4,8,1]{2,1,0:T(8,128)}', space=vmem, size = 0x4000, scoped, tag = 'scratch operand']
  #allocation4 [shape = 'f32[4,8,1]{2,1,0:T(8,128)}', space=vmem, size = 0x4000, scoped, tag = 'scratch operand']
  #allocation5 [shape = 'f32[4,8,16]{2,1,0:T(8,128)}', space=vmem, size = 0x4000, scoped, tag = 'scratch operand']
  %s0 = inlined_call_operand.vmem [shape: f32[2,8,32], index: 0, kind: input, shape index: {}]
  %s1 = inlined_call_operand.vmem [shape: f32[2,8,32], index: 1, kind: input, shape index: {}]
  %s2 = inlined_call_operand.vmem [shape: f32[2,8,32], index: 2, kind: input, shape index: {}]
  %s3 = inlined_call_operand.vmem [shape: f32[4,32,16], index: 3, kind: input, shape index: {}]
  %s4 = inlined_call_operand.vmem [shape: f32[4,1,16], index: 4, kind: input, shape index: {}]
  %s5 = inlined_call_operand.vmem [shape: f32[4,32,16], index: 5, kind: input, shape index: {}]
  %s6 = inlined_call_operand.vmem [shape: f32[4,1,16], index: 6, kind: input, shape index: {}]
  %s7 = inlined_call_operand.vmem [shape: f32[4,32,16], index: 7, kind: input, shape index: {}]
  %s8 = inlined_call_operand.vmem [shape: f32[4,1,16], index: 8, kind: input, shape index: {}]
  %s9 = inlined_call_operand.vmem [shape: f32[4,16,32], index: 9, kind: input, shape index: {}]
  %s10 = inlined_call_operand.vmem [shape: f32[1,32], index: 10, kind: input, shape index: {}]
  %s11 = inlined_call_operand.hbm [shape: f32[2,8,32], index: 11, kind: output, shape index: {}]
  %s12 = sld [smem:[#allocation0]]
  $region85: #{tpu_custom_call.1} parent=0
    _
  %s14 = ssub.s32 1, %s12
  %s15 = scalar_select 0, %s14, %s12
  $region1: #{tpu_custom_call.1} parent=0
    #allocation6 [shape = 'u8[8192]{0}', space=vmem, size = 0x2000, scoped, tag = 'output window, operand 0']
    #allocation7 [shape = 's32[2]{0}', space=sflag, size = 0x8, scoped, tag = 'scoped memory for tpu_custom_call.1']
    %16 = vsyncpa [#allocation7], 0
    %s17 = scalar_lea.sflag [#allocation7], 1
    %18 = vsyncpa %s17, 0
    loop: start=0, step=1, limit=4
    $region2: #{tpu_custom_call.1} parent=1 // loop_pre_header
      _
    $region3: #{tpu_custom_call.1} parent=1 // loop_header
      %s20 = sphi 0, %s24
      %p21 = scmp.ge.s32.totalorder %s20, 4
      %s27 = sphi 0, %s46
      %s28 = sphi 0, %s42
      %s29 = sphi 0, %s38
      %s30 = sphi 0, %s27
      %s31 = sphi 0, %s28
      %s32 = sphi 0, %s29
      %s33 = sphi 0, %s30
      %s34 = sphi 0, %s31
      %s35 = sphi 0, %s32
      %s51 = sphi 0, %s53
      %s54 = sphi 0, %s51
      %s55 = sphi 0, %s54
      %s71 = sphi 0, %s55
      %s79 = sphi 0, %s81
      %s82 = sphi 0, %s79
      %s83 = sphi 0, %s82
      %s99 = sphi 0, %s83
      %s107 = sphi 0, %s109
      %s110 = sphi 0, %s107
      %s111 = sphi 0, %s110
      %s127 = sphi 0, %s111
      %s131 = sphi 0, %s131
      %s133 = sphi 0, %s131
      %s134 = sphi 0, %s133
      %s148 = sphi 0, %s134
      %s152 = sphi 0, %s152
      %s154 = sphi 0, %s152
      %s155 = sphi 0, %s154
      %s169 = sphi 0, %s155
      %s173 = sphi 0, %s173
      %s175 = sphi 0, %s173
      %s176 = sphi 0, %s175
      %s190 = sphi 0, %s176
      %s194 = sphi 0, %s194
      %s196 = sphi 0, %s194
      %s197 = sphi 0, %s196
      %s211 = sphi 0, %s197
      %s215 = sphi 0, %s215
      %s217 = sphi 0, %s215
      %s218 = sphi 0, %s217
      %s232 = sphi 0, %s218
      %s236 = sphi 0, %s236
      %s238 = sphi 0, %s236
      %s239 = sphi 0, %s238
      %s253 = sphi 0, %s239
      %s257 = sphi 0, %s257
      %s259 = sphi 0, %s257
      %s260 = sphi 0, %s259
      %s274 = sphi 0, %s260
      %s278 = sphi 0, %s278
      %s280 = sphi 0, %s278
      %s281 = sphi 0, %s280
      %s295 = sphi 0, %s281
      %s303 = sphi 0, %s305
      %s306 = sphi 0, %s303
      %s307 = sphi 0, %s306
      %s323 = sphi 0, %s307
    $region4: #{tpu_custom_call.1} parent=1 // loop_header_branch
      %23 = sbr.rel (%p21) target = $region8
    $region5: #{tpu_custom_call.1} parent=1 // loop_body
      %s25 = ssub.s32 %s20, 1
      %s26 = ssub.s32 %s20, 2
      %s36 = sadd.s32 1, %s29
      %p37 = scmp.ge.s32.totalorder %s36, 1
      %s38 = scalar_select %p37, 0, %s36
      %s39 = sadd.s32 1, %s28
      %s40 = scalar_select %p37, %s39, %s28
      %p41 = scmp.ge.s32.totalorder %s40, 1
      %s42 = scalar_select %p41, 0, %s40
      %s43 = sadd.s32 1, %s27
      %s44 = scalar_select %p41, %s43, %s27
      %p45 = scmp.ge.s32.totalorder %s44, 2
      %s46 = scalar_select %p45, 0, %s44
      %s47 = ssub.s32 %s27, %s46
      %s48 = ssub.s32 %s28, %s42
      %s49 = sor.u32 %s47, %s48
      %p50 = scmp.eq.s32.totalorder %s49, 0
      %s52 = sadd.s32 %s51, 1
      %s53 = scalar_select %p50, %s51, %s52
      %p56 = pneg %p50
      %p57 = scmp.eq.s32.totalorder %s20, 1
      %p58 = por %p56, %p57
      %p59 = scmp.ne.s32.totalorder %s51, %s54
      %p60 = scmp.eq.s32.totalorder %s20, 0
      %p61 = por %p59, %p60
      %p62 = scmp.ne.s32.totalorder %s51, %s54
      %p63 = scmp.eq.s32.totalorder %s25, 1
      %p64 = por %p62, %p63
      %p65 = scmp.ne.s32.totalorder %s54, %s55
      %p66 = scmp.eq.s32.totalorder %s25, 0
      %p67 = por %p65, %p66
      %p68 = scmp.ne.s32.totalorder %s54, %s55
      %p69 = scmp.eq.s32.totalorder %s26, 1
      %p70 = por %p68, %p69
      %p72 = scmp.ne.s32.totalorder %s55, %s71
      %p73 = scmp.eq.s32.totalorder %s26, 0
      %p74 = por %p72, %p73
      %s75 = ssub.s32 %s27, %s46
      %s76 = ssub.s32 %s29, %s38
      %s77 = sor.u32 %s75, %s76
      %p78 = scmp.eq.s32.totalorder %s77, 0
      %s80 = sadd.s32 %s79, 1
      %s81 = scalar_select %p78, %s79, %s80
      %p84 = pneg %p78
      %p85 = scmp.eq.s32.totalorder %s20, 1
      %p86 = por %p84, %p85
      %p87 = scmp.ne.s32.totalorder %s79, %s82
      %p88 = scmp.eq.s32.totalorder %s20, 0
      %p89 = por %p87, %p88
      %p90 = scmp.ne.s32.totalorder %s79, %s82
      %p91 = scmp.eq.s32.totalorder %s25, 1
      %p92 = por %p90, %p91
      %p93 = scmp.ne.s32.totalorder %s82, %s83
      %p94 = scmp.eq.s32.totalorder %s25, 0
      %p95 = por %p93, %p94
      %p96 = scmp.ne.s32.totalorder %s82, %s83
      %p97 = scmp.eq.s32.totalorder %s26, 1
      %p98 = por %p96, %p97
      %p100 = scmp.ne.s32.totalorder %s83, %s99
      %p101 = scmp.eq.s32.totalorder %s26, 0
      %p102 = por %p100, %p101
      %s103 = ssub.s32 %s27, %s46
      %s104 = ssub.s32 %s29, %s38
      %s105 = sor.u32 %s103, %s104
      %p106 = scmp.eq.s32.totalorder %s105, 0
      %s108 = sadd.s32 %s107, 1
      %s109 = scalar_select %p106, %s107, %s108
      %p112 = pneg %p106
      %p113 = scmp.eq.s32.totalorder %s20, 1
      %p114 = por %p112, %p113
      %p115 = scmp.ne.s32.totalorder %s107, %s110
      %p116 = scmp.eq.s32.totalorder %s20, 0
      %p117 = por %p115, %p116
      %p118 = scmp.ne.s32.totalorder %s107, %s110
      %p119 = scmp.eq.s32.totalorder %s25, 1
      %p120 = por %p118, %p119
      %p121 = scmp.ne.s32.totalorder %s110, %s111
      %p122 = scmp.eq.s32.totalorder %s25, 0
      %p123 = por %p121, %p122
      %p124 = scmp.ne.s32.totalorder %s110, %s111
      %p125 = scmp.eq.s32.totalorder %s26, 1
      %p126 = por %p124, %p125
      %p128 = scmp.ne.s32.totalorder %s111, %s127
      %p129 = scmp.eq.s32.totalorder %s26, 0
      %p130 = por %p128, %p129
      %s132 = sadd.s32 %s131, 1
      %p135 = scmp.eq.s32.totalorder %s20, 1
      %p136 = scmp.ne.s32.totalorder %s131, %s133
      %p137 = scmp.eq.s32.totalorder %s20, 0
      %p138 = por %p136, %p137
      %p139 = scmp.ne.s32.totalorder %s131, %s133
      %p140 = scmp.eq.s32.totalorder %s25, 1
      %p141 = por %p139, %p140
      %p142 = scmp.ne.s32.totalorder %s133, %s134
      %p143 = scmp.eq.s32.totalorder %s25, 0
      %p144 = por %p142, %p143
      %p145 = scmp.ne.s32.totalorder %s133, %s134
      %p146 = scmp.eq.s32.totalorder %s26, 1
      %p147 = por %p145, %p146
      %p149 = scmp.ne.s32.totalorder %s134, %s148
      %p150 = scmp.eq.s32.totalorder %s26, 0
      %p151 = por %p149, %p150
      %s153 = sadd.s32 %s152, 1
      %p156 = scmp.eq.s32.totalorder %s20, 1
      %p157 = scmp.ne.s32.totalorder %s152, %s154
      %p158 = scmp.eq.s32.totalorder %s20, 0
      %p159 = por %p157, %p158
      %p160 = scmp.ne.s32.totalorder %s152, %s154
      %p161 = scmp.eq.s32.totalorder %s25, 1
      %p162 = por %p160, %p161
      %p163 = scmp.ne.s32.totalorder %s154, %s155
      %p164 = scmp.eq.s32.totalorder %s25, 0
      %p165 = por %p163, %p164
      %p166 = scmp.ne.s32.totalorder %s154, %s155
      %p167 = scmp.eq.s32.totalorder %s26, 1
      %p168 = por %p166, %p167
      %p170 = scmp.ne.s32.totalorder %s155, %s169
      %p171 = scmp.eq.s32.totalorder %s26, 0
      %p172 = por %p170, %p171
      %s174 = sadd.s32 %s173, 1
      %p177 = scmp.eq.s32.totalorder %s20, 1
      %p178 = scmp.ne.s32.totalorder %s173, %s175
      %p179 = scmp.eq.s32.totalorder %s20, 0
      %p180 = por %p178, %p179
      %p181 = scmp.ne.s32.totalorder %s173, %s175
      %p182 = scmp.eq.s32.totalorder %s25, 1
      %p183 = por %p181, %p182
      %p184 = scmp.ne.s32.totalorder %s175, %s176
      %p185 = scmp.eq.s32.totalorder %s25, 0
      %p186 = por %p184, %p185
      %p187 = scmp.ne.s32.totalorder %s175, %s176
      %p188 = scmp.eq.s32.totalorder %s26, 1
      %p189 = por %p187, %p188
      %p191 = scmp.ne.s32.totalorder %s176, %s190
      %p192 = scmp.eq.s32.totalorder %s26, 0
      %p193 = por %p191, %p192
      %s195 = sadd.s32 %s194, 1
      %p198 = scmp.eq.s32.totalorder %s20, 1
      %p199 = scmp.ne.s32.totalorder %s194, %s196
      %p200 = scmp.eq.s32.totalorder %s20, 0
      %p201 = por %p199, %p200
      %p202 = scmp.ne.s32.totalorder %s194, %s196
      %p203 = scmp.eq.s32.totalorder %s25, 1
      %p204 = por %p202, %p203
      %p205 = scmp.ne.s32.totalorder %s196, %s197
      %p206 = scmp.eq.s32.totalorder %s25, 0
      %p207 = por %p205, %p206
      %p208 = scmp.ne.s32.totalorder %s196, %s197
      %p209 = scmp.eq.s32.totalorder %s26, 1
      %p210 = por %p208, %p209
      %p212 = scmp.ne.s32.totalorder %s197, %s211
      %p213 = scmp.eq.s32.totalorder %s26, 0
      %p214 = por %p212, %p213
      %s216 = sadd.s32 %s215, 1
      %p219 = scmp.eq.s32.totalorder %s20, 1
      %p220 = scmp.ne.s32.totalorder %s215, %s217
      %p221 = scmp.eq.s32.totalorder %s20, 0
      %p222 = por %p220, %p221
      %p223 = scmp.ne.s32.totalorder %s215, %s217
      %p224 = scmp.eq.s32.totalorder %s25, 1
      %p225 = por %p223, %p224
      %p226 = scmp.ne.s32.totalorder %s217, %s218
      %p227 = scmp.eq.s32.totalorder %s25, 0
      %p228 = por %p226, %p227
      %p229 = scmp.ne.s32.totalorder %s217, %s218
      %p230 = scmp.eq.s32.totalorder %s26, 1
      %p231 = por %p229, %p230
      %p233 = scmp.ne.s32.totalorder %s218, %s232
      %p234 = scmp.eq.s32.totalorder %s26, 0
      %p235 = por %p233, %p234
      %s237 = sadd.s32 %s236, 1
      %p240 = scmp.eq.s32.totalorder %s20, 1
      %p241 = scmp.ne.s32.totalorder %s236, %s238
      %p242 = scmp.eq.s32.totalorder %s20, 0
      %p243 = por %p241, %p242
      %p244 = scmp.ne.s32.totalorder %s236, %s238
      %p245 = scmp.eq.s32.totalorder %s25, 1
      %p246 = por %p244, %p245
      %p247 = scmp.ne.s32.totalorder %s238, %s239
      %p248 = scmp.eq.s32.totalorder %s25, 0
      %p249 = por %p247, %p248
      %p250 = scmp.ne.s32.totalorder %s238, %s239
      %p251 = scmp.eq.s32.totalorder %s26, 1
      %p252 = por %p250, %p251
      %p254 = scmp.ne.s32.totalorder %s239, %s253
      %p255 = scmp.eq.s32.totalorder %s26, 0
      %p256 = por %p254, %p255
      %s258 = sadd.s32 %s257, 1
      %p261 = scmp.eq.s32.totalorder %s20, 1
      %p262 = scmp.ne.s32.totalorder %s257, %s259
      %p263 = scmp.eq.s32.totalorder %s20, 0
      %p264 = por %p262, %p263
      %p265 = scmp.ne.s32.totalorder %s257, %s259
      %p266 = scmp.eq.s32.totalorder %s25, 1
      %p267 = por %p265, %p266
      %p268 = scmp.ne.s32.totalorder %s259, %s260
      %p269 = scmp.eq.s32.totalorder %s25, 0
      %p270 = por %p268, %p269
      %p271 = scmp.ne.s32.totalorder %s259, %s260
      %p272 = scmp.eq.s32.totalorder %s26, 1
      %p273 = por %p271, %p272
      %p275 = scmp.ne.s32.totalorder %s260, %s274
      %p276 = scmp.eq.s32.totalorder %s26, 0
      %p277 = por %p275, %p276
      %s279 = sadd.s32 %s278, 1
      %p282 = scmp.eq.s32.totalorder %s20, 1
      %p283 = scmp.ne.s32.totalorder %s278, %s280
      %p284 = scmp.eq.s32.totalorder %s20, 0
      %p285 = por %p283, %p284
      %p286 = scmp.ne.s32.totalorder %s278, %s280
      %p287 = scmp.eq.s32.totalorder %s25, 1
      %p288 = por %p286, %p287
      %p289 = scmp.ne.s32.totalorder %s280, %s281
      %p290 = scmp.eq.s32.totalorder %s25, 0
      %p291 = por %p289, %p290
      %p292 = scmp.ne.s32.totalorder %s280, %s281
      %p293 = scmp.eq.s32.totalorder %s26, 1
      %p294 = por %p292, %p293
      %p296 = scmp.ne.s32.totalorder %s281, %s295
      %p297 = scmp.eq.s32.totalorder %s26, 0
      %p298 = por %p296, %p297
      %s299 = ssub.s32 %s27, %s46
      %s300 = ssub.s32 %s28, %s42
      %s301 = sor.u32 %s299, %s300
      %p302 = scmp.eq.s32.totalorder %s301, 0
      %s304 = sadd.s32 %s303, 1
      %s305 = scalar_select %p302, %s303, %s304
      %p308 = pneg %p302
      %p309 = scmp.eq.s32.totalorder %s20, 1
      %p310 = por %p308, %p309
      %p311 = scmp.ne.s32.totalorder %s303, %s306
      %p312 = scmp.eq.s32.totalorder %s20, 0
      %p313 = por %p311, %p312
      %p314 = scmp.ne.s32.totalorder %s303, %s306
      %p315 = scmp.eq.s32.totalorder %s25, 1
      %p316 = por %p314, %p315
      %p317 = scmp.ne.s32.totalorder %s306, %s307
      %p318 = scmp.eq.s32.totalorder %s25, 0
      %p319 = por %p317, %p318
      %p320 = scmp.ne.s32.totalorder %s306, %s307
      %p321 = scmp.eq.s32.totalorder %s26, 1
      %p322 = por %p320, %p321
      %p324 = scmp.ne.s32.totalorder %s307, %s323
      %p325 = scmp.eq.s32.totalorder %s26, 0
      %p326 = por %p324, %p325
      %p327 = scmp.le.s32.totalorder 1, %s20
      %p328 = scmp.lt.s32.totalorder %s20, 3
      %p329 = pnand %p327, %p328
      %p330 = pneg %p329
      // Predicated region
      $region9: #{tpu_custom_call.1} parent=5 // pred_check
        _
      $region10: #{tpu_custom_call.1} parent=5 // pred_check_branch
        %332 = sbr.rel (%p329) target = $region12
      $region11: #{tpu_custom_call.1} parent=5 // pred_region
        %s333 = ssub.s32 %s20, 1
        // Predicated region
        $region13: #{tpu_custom_call.1} parent=11 // pred_check
          %p334 = pneg %p144
        $region14: #{tpu_custom_call.1} parent=11 // pred_check_branch
          %336 = sbr.rel (%p334) target = $region16
        $region15: #{tpu_custom_call.1} parent=11 // pred_region
          _
        $region16: #{tpu_custom_call.1} parent=11 // pred_fallthru
          _
        // Predicated region
        $region17: #{tpu_custom_call.1} parent=11 // pred_check
          %p337 = pneg %p165
        $region18: #{tpu_custom_call.1} parent=11 // pred_check_branch
          %339 = sbr.rel (%p337) target = $region20
        $region19: #{tpu_custom_call.1} parent=11 // pred_region
          _
        $region20: #{tpu_custom_call.1} parent=11 // pred_fallthru
          _
        // Predicated region
        $region21: #{tpu_custom_call.1} parent=11 // pred_check
          %p340 = pneg %p186
        $region22: #{tpu_custom_call.1} parent=11 // pred_check_branch
          %342 = sbr.rel (%p340) target = $region24
        $region23: #{tpu_custom_call.1} parent=11 // pred_region
          _
        $region24: #{tpu_custom_call.1} parent=11 // pred_fallthru
          _
        // Predicated region
        $region25: #{tpu_custom_call.1} parent=11 // pred_check
          %p343 = pneg %p207
        $region26: #{tpu_custom_call.1} parent=11 // pred_check_branch
          %345 = sbr.rel (%p343) target = $region28
        $region27: #{tpu_custom_call.1} parent=11 // pred_region
          _
        $region28: #{tpu_custom_call.1} parent=11 // pred_fallthru
          _
        // Predicated region
        $region29: #{tpu_custom_call.1} parent=11 // pred_check
          %p346 = pneg %p228
        $region30: #{tpu_custom_call.1} parent=11 // pred_check_branch
          %348 = sbr.rel (%p346) target = $region32
        $region31: #{tpu_custom_call.1} parent=11 // pred_region
          _
        $region32: #{tpu_custom_call.1} parent=11 // pred_fallthru
          _
        // Predicated region
        $region33: #{tpu_custom_call.1} parent=11 // pred_check
          %p349 = pneg %p249
        $region34: #{tpu_custom_call.1} parent=11 // pred_check_branch
          %351 = sbr.rel (%p349) target = $region36
        $region35: #{tpu_custom_call.1} parent=11 // pred_region
          _
        $region36: #{tpu_custom_call.1} parent=11 // pred_fallthru
          _
        // Predicated region
        $region37: #{tpu_custom_call.1} parent=11 // pred_check
          %p352 = pneg %p270
        $region38: #{tpu_custom_call.1} parent=11 // pred_check_branch
          %354 = sbr.rel (%p352) target = $region40
        $region39: #{tpu_custom_call.1} parent=11 // pred_region
          _
        $region40: #{tpu_custom_call.1} parent=11 // pred_fallthru
          _
        // Predicated region
        $region41: #{tpu_custom_call.1} parent=11 // pred_check
          %p355 = pneg %p291
        $region42: #{tpu_custom_call.1} parent=11 // pred_check_branch
          %357 = sbr.rel (%p355) target = $region44
        $region43: #{tpu_custom_call.1} parent=11 // pred_region
          _
        $region44: #{tpu_custom_call.1} parent=11 // pred_fallthru
          _
      $region12: #{tpu_custom_call.1} parent=5 // pred_fallthru
        _
      %p358 = scmp.lt.s32.totalorder %s20, 2
      // Predicated region
      $region45: #{tpu_custom_call.1} parent=5 // pred_check
        %p359 = pneg %p358
      $region46: #{tpu_custom_call.1} parent=5 // pred_check_branch
        %361 = sbr.rel (%p359) target = $region48
      $region47: #{tpu_custom_call.1} parent=5 // pred_region
        // Predicated region
        $region49: #{tpu_custom_call.1} parent=47 // pred_check
          %p362 = pneg %p61
        $region50: #{tpu_custom_call.1} parent=47 // pred_check_branch
          %364 = sbr.rel (%p362) target = $region52
        $region51: #{tpu_custom_call.1} parent=47 // pred_region
          %p365 = scmp.lt.s32.totalorder %s27, 1
          %s366 = scalar_select %p365, %s27, 1
          %p367 = scmp.lt.s32.totalorder %s28, 0
          %s368 = scalar_select %p367, %s28, 0
          %s369 = sadd.s32 %s368, %s366
          %s370 = smul.addr %s369, 8
          %s371 = scalar_lea.vmem %s0, %s370
        $region52: #{tpu_custom_call.1} parent=47 // pred_fallthru
          _
        // Predicated region
        $region53: #{tpu_custom_call.1} parent=47 // pred_check
          %p372 = pneg %p89
        $region54: #{tpu_custom_call.1} parent=47 // pred_check_branch
          %374 = sbr.rel (%p372) target = $region56
        $region55: #{tpu_custom_call.1} parent=47 // pred_region
          %p375 = scmp.lt.s32.totalorder %s27, 1
          %s376 = scalar_select %p375, %s27, 1
          %p377 = scmp.lt.s32.totalorder %s29, 0
          %s378 = scalar_select %p377, %s29, 0
          %s379 = sadd.s32 %s378, %s376
          %s380 = smul.addr %s379, 8
          %s381 = scalar_lea.vmem %s1, %s380
        $region56: #{tpu_custom_call.1} parent=47 // pred_fallthru
          _
        // Predicated region
        $region57: #{tpu_custom_call.1} parent=47 // pred_check
          %p382 = pneg %p117
        $region58: #{tpu_custom_call.1} parent=47 // pred_check_branch
          %384 = sbr.rel (%p382) target = $region60
        $region59: #{tpu_custom_call.1} parent=47 // pred_region
          %p385 = scmp.lt.s32.totalorder %s27, 1
          %s386 = scalar_select %p385, %s27, 1
          %p387 = scmp.lt.s32.totalorder %s29, 0
          %s388 = scalar_select %p387, %s29, 0
          %s389 = sadd.s32 %s388, %s386
          %s390 = smul.addr %s389, 8
          %s391 = scalar_lea.vmem %s2, %s390
        $region60: #{tpu_custom_call.1} parent=47 // pred_fallthru
          _
      $region48: #{tpu_custom_call.1} parent=5 // pred_fallthru
        _
      %p392 = scmp.le.s32.totalorder 1, %s20
      %p393 = scmp.lt.s32.totalorder %s20, 3
      %p394 = pnand %p392, %p393
      %p395 = pneg %p394
      // Predicated region
      $region61: #{tpu_custom_call.1} parent=5 // pred_check
        _
      $region62: #{tpu_custom_call.1} parent=5 // pred_check_branch
        %397 = sbr.rel (%p394) target = $region64
      $region63: #{tpu_custom_call.1} parent=5 // pred_region
        %s398 = ssub.s32 %s20, 1
        %p399 = scmp.lt.s32.totalorder %s30, 1
        %s400 = scalar_select %p399, %s30, 1
        %p401 = scmp.lt.s32.totalorder %s31, 0
        %s402 = scalar_select %p401, %s31, 0
        %s403 = sadd.s32 %s402, %s400
        %s404 = smul.addr %s403, 8
        %s405 = scalar_lea.vmem %s0, %s404
        %p406 = pneg %p67
        %p407 = pneg %p64
        %p408 = scmp.lt.s32.totalorder %s30, 1
        %s409 = scalar_select %p408, %s30, 1
        %p410 = scmp.lt.s32.totalorder %s32, 0
        %s411 = scalar_select %p410, %s32, 0
        %s412 = sadd.s32 %s411, %s409
        %s413 = smul.addr %s412, 8
        %s414 = scalar_lea.vmem %s1, %s413
        %p415 = pneg %p95
        %p416 = pneg %p92
        %p417 = scmp.lt.s32.totalorder %s30, 1
        %s418 = scalar_select %p417, %s30, 1
        %p419 = scmp.lt.s32.totalorder %s32, 0
        %s420 = scalar_select %p419, %s32, 0
        %s421 = sadd.s32 %s420, %s418
        %s422 = smul.addr %s421, 8
        %s423 = scalar_lea.vmem %s2, %s422
        %p424 = pneg %p123
        %p425 = pneg %p120
        %p426 = pneg %p144
        %p427 = pneg %p141
        %p428 = pneg %p165
        %p429 = pneg %p162
        %p430 = pneg %p186
        %p431 = pneg %p183
        %p432 = pneg %p207
        %p433 = pneg %p204
        %p434 = pneg %p228
        %p435 = pneg %p225
        %p436 = pneg %p249
        %p437 = pneg %p246
        %p438 = pneg %p270
        %p439 = pneg %p267
        %p440 = pneg %p291
        %p441 = pneg %p288
        %p442 = pneg %p319
        %p443 = pneg %p316
        %s444 = sand.u32 %s306, 1
        %s445 = scalar_lea.sflag [#allocation7], %s444
        %s446 = sand.u32 %s306, 1
        %s447 = smul.addr %s446, 8
        %s448 = scalar_lea.vmem [#allocation6], %s447
        %p449 = scmp.lt.s32.totalorder %s30, 1
        %s450 = scalar_select %p449, %s30, 1
        %p451 = scmp.lt.s32.totalorder %s31, 0
        %s452 = scalar_select %p451, %s31, 0
        %s453 = sadd.s32 %s452, %s450
        %s454 = smul.addr %s453, 8
        %s455 = scalar_lea.vmem %s0, %s454
        %p456 = scmp.lt.s32.totalorder %s30, 1
        %s457 = scalar_select %p456, %s30, 1
        %p458 = scmp.lt.s32.totalorder %s32, 0
        %s459 = scalar_select %p458, %s32, 0
        %s460 = sadd.s32 %s459, %s457
        %s461 = smul.addr %s460, 8
        %s462 = scalar_lea.vmem %s1, %s461
        %p463 = scmp.lt.s32.totalorder %s30, 1
        %s464 = scalar_select %p463, %s30, 1
        %p465 = scmp.lt.s32.totalorder %s32, 0
        %s466 = scalar_select %p465, %s32, 0
        %s467 = sadd.s32 %s466, %s464
        %s468 = smul.addr %s467, 8
        %s469 = scalar_lea.vmem %s2, %s468
        %p470 = scmp.eq.s32.totalorder %s32, 0
        // Predicated region
        $region65: #{tpu_custom_call.1} parent=63 // pred_check
          %p471 = pneg %p470
        $region66: #{tpu_custom_call.1} parent=63 // pred_check_branch
          %473 = sbr.rel (%p471) target = $region68
        $region67: #{tpu_custom_call.1} parent=63 // pred_region
          %vm474 = vcmask 7168
          %475 = vst.msk [vmem:[#allocation3] sm:$0xff] %vm474, -inf
          %476 = vst.msk [vmem:[#allocation3 + $0x8] sm:$0xff] %vm474, -inf
          %477 = vst.msk [vmem:[#allocation3 + $0x10] sm:$0xff] %vm474, -inf
          %478 = vst.msk [vmem:[#allocation3 + $0x18] sm:$0xff] %vm474, -inf
          %479 = vst.msk [vmem:[#allocation4] sm:$0xff] %vm474, 0.0
          %480 = vst.msk [vmem:[#allocation4 + $0x8] sm:$0xff] %vm474, 0.0
          %481 = vst.msk [vmem:[#allocation4 + $0x10] sm:$0xff] %vm474, 0.0
          %482 = vst.msk [vmem:[#allocation4 + $0x18] sm:$0xff] %vm474, 0.0
          %vm483 = vcmask 130048
          %484 = vst.msk [vmem:[#allocation5] sm:$0xff] %vm483, 0.0
          %485 = vst.msk [vmem:[#allocation5 + $0x8] sm:$0xff] %vm483, 0.0
          %486 = vst.msk [vmem:[#allocation5 + $0x10] sm:$0xff] %vm483, 0.0
          %487 = vst.msk [vmem:[#allocation5 + $0x18] sm:$0xff] %vm483, 0.0
          %v488 = vld [vmem:[%s455] sm:$0xff]
          %v489 = vld [vmem:[%s3] sm:$0xff]
          %v490 = vld [vmem:[%s3 + $0x8] sm:$0xff]
          %v491 = vld [vmem:[%s3 + $0x10] sm:$0xff]
          %v492 = vld [vmem:[%s3 + $0x18] sm:$0xff]
          %v493 = vld [vmem:[%s3 + $0x20] sm:$0xff]
          %v494 = vld [vmem:[%s3 + $0x28] sm:$0xff]
          %v495 = vld [vmem:[%s3 + $0x30] sm:$0xff]
          %v496 = vld [vmem:[%s3 + $0x38] sm:$0xff]
          %v497 = vld [vmem:[%s3 + $0x40] sm:$0xff]
          %v498 = vld [vmem:[%s3 + $0x48] sm:$0xff]
          %v499 = vld [vmem:[%s3 + $0x50] sm:$0xff]
          %v500 = vld [vmem:[%s3 + $0x58] sm:$0xff]
          %v501 = vld [vmem:[%s3 + $0x60] sm:$0xff]
          %v502 = vld [vmem:[%s3 + $0x68] sm:$0xff]
          %v503 = vld [vmem:[%s3 + $0x70] sm:$0xff]
          %v504 = vld [vmem:[%s3 + $0x78] sm:$0xff]
          %v505 = vld [vmem:[%s4] sm:$0x1]
          %v506 = vld [vmem:[%s4 + $0x1] sm:$0x1]
          %v507 = vld [vmem:[%s4 + $0x2] sm:$0x1]
          %v508 = vld [vmem:[%s4 + $0x3] sm:$0x1]
          %v513 = vlaneseq
          %v514 = vshrl.u32 %v513, 7
          %v515 = vsub.s32 0, %v514
          %v516 = vrot.slane %v505, %v515
          %v517 = vlaneseq
          %v518 = vshrl.u32 %v517, 7
          %v519 = vsub.s32 0, %v518
          %v520 = vrot.slane %v506, %v519
          %v521 = vlaneseq
          %v522 = vshrl.u32 %v521, 7
          %v523 = vsub.s32 0, %v522
          %v524 = vrot.slane %v507, %v523
          %v525 = vlaneseq
          %v526 = vshrl.u32 %v525, 7
          %v527 = vsub.s32 0, %v526
          %v528 = vrot.slane %v508, %v527
          %vm533 = vcmask 261120
          %v535 = vsel %vm533, %v488, 0
          %537 = vmatprep.subr.mxu0 0.0
          %538 = vmatpush1.msra.mxu0 %v489
          %539 = vmatprep.subr.mxu0 0.0
          %540 = vmatpush1.msra.mxu0 %v490
          %541 = vmatprep.subr.mxu0 0.0
          %542 = vmatpush1.msra.mxu0 %v491
          %543 = vmatprep.subr.mxu0 0.0
          %544 = vmatpush1.msra.mxu0 %v492
          %545 = vmatprep.subr.mxu0 0.0
          %546 = vmatpush1.msra.mxu0 0.0
          %547 = vmatprep.subr.mxu0 0.0
          %548 = vmatpush1.msra.mxu0 0.0
          %549 = vmatprep.subr.mxu0 0.0
          %550 = vmatpush1.msra.mxu0 0.0
          %551 = vmatprep.subr.mxu0 0.0
          %552 = vmatpush1.msra.mxu0 0.0
          %553 = vmatprep.subr.mxu0 0.0
          %554 = vmatpush1.msra.mxu0 0.0
          %555 = vmatprep.subr.mxu0 0.0
          %556 = vmatpush1.msra.mxu0 0.0
          %557 = vmatprep.subr.mxu0 0.0
          %558 = vmatpush1.msra.mxu0 0.0
          %559 = vmatprep.subr.mxu0 0.0
          %560 = vmatpush1.msra.mxu0 0.0
          %561 = vmatprep.subr.mxu0 0.0
          %562 = vmatpush1.msra.mxu0 0.0
          %563 = vmatprep.subr.mxu0 0.0
          %564 = vmatpush1.msra.mxu0 0.0
          %565 = vmatprep.subr.mxu0 0.0
          %566 = vmatpush1.msra.mxu0 0.0
          %567 = vmatprep.subr.mxu0 0.0
          %568 = vmatpush1.msra.mxu0 0.0
          %569 = vmatprep.subr.mxu0 0.0
          %570 = vmatpush1.msra.mxu0 0.0
          %571 = vmatprep.subr.mxu0 0.0
          %572 = vmatpush1.msra.mxu0 0.0
          %573 = vmatprep.subr.mxu0 0.0
          %574 = vmatpush1.msra.mxu0 0.0
          %575 = vmatprep.subr.mxu0 0.0
          %576 = vmatpush1.msra.mxu0 0.0
          %577 = vmatprep.subr.mxu0 0.0
          %578 = vmatpush1.msra.mxu0 0.0
          %579 = vmatprep.subr.mxu0 0.0
          %580 = vmatpush1.msra.mxu0 0.0
          %581 = vmatprep.subr.mxu0 0.0
          %582 = vmatpush1.msra.mxu0 0.0
          %583 = vmatprep.subr.mxu0 0.0
          %584 = vmatpush1.msra.mxu0 0.0
          %585 = vmatprep.subr.mxu0 0.0
          %586 = vmatpush1.msra.mxu0 0.0
          %587 = vmatprep.subr.mxu0 0.0
          %588 = vmatpush1.msra.mxu0 0.0
          %589 = vmatprep.subr.mxu0 0.0
          %590 = vmatpush1.msra.mxu0 0.0
          %591 = vmatprep.subr.mxu0 0.0
          %592 = vmatpush1.msra.mxu0 0.0
          %593 = vmatprep.subr.mxu0 0.0
          %594 = vmatpush1.msra.mxu0 0.0
          %595 = vmatprep.subr.mxu0 0.0
          %596 = vmatpush1.msra.mxu0 0.0
          %597 = vmatprep.subr.mxu0 0.0
          %598 = vmatpush1.msra.mxu0 0.0
          %599 = vmatprep.subr.mxu0 0.0
          %600 = vmatpush1.msra.mxu0 0.0
          %601 = vmatprep.mubr.f32.mxu0 0.0
          %602 = vmatmul.mubr.f32.gmra.mrb[0].mxu0 %v535
          %v603 = vpop.f32.mrb[0].mxu0
          %v604 = vadd.f32 %v516, %v603
          %v605 = vpop.f32.mrb[0].mxu0
          %606 = vdwg.mxu0
          %607 = vmatprep.subr.mxu0 0.0
          %608 = vmatpush1.msra.mxu0 %v493
          %609 = vmatprep.subr.mxu0 0.0
          %610 = vmatpush1.msra.mxu0 %v494
          %611 = vmatprep.subr.mxu0 0.0
          %612 = vmatpush1.msra.mxu0 %v495
          %613 = vmatprep.subr.mxu0 0.0
          %614 = vmatpush1.msra.mxu0 %v496
          %615 = vmatprep.subr.mxu0 0.0
          %616 = vmatpush1.msra.mxu0 0.0
          %617 = vmatprep.subr.mxu0 0.0
          %618 = vmatpush1.msra.mxu0 0.0
          %619 = vmatprep.subr.mxu0 0.0
          %620 = vmatpush1.msra.mxu0 0.0
          %621 = vmatprep.subr.mxu0 0.0
          %622 = vmatpush1.msra.mxu0 0.0
          %623 = vmatprep.subr.mxu0 0.0
          %624 = vmatpush1.msra.mxu0 0.0
          %625 = vmatprep.subr.mxu0 0.0
          %626 = vmatpush1.msra.mxu0 0.0
          %627 = vmatprep.subr.mxu0 0.0
          %628 = vmatpush1.msra.mxu0 0.0
          %629 = vmatprep.subr.mxu0 0.0
          %630 = vmatpush1.msra.mxu0 0.0
          %631 = vmatprep.subr.mxu0 0.0
          %632 = vmatpush1.msra.mxu0 0.0
          %633 = vmatprep.subr.mxu0 0.0
          %634 = vmatpush1.msra.mxu0 0.0
          %635 = vmatprep.subr.mxu0 0.0
          %636 = vmatpush1.msra.mxu0 0.0
          %637 = vmatprep.subr.mxu0 0.0
          %638 = vmatpush1.msra.mxu0 0.0
          %639 = vmatprep.subr.mxu0 0.0
          %640 = vmatpush1.msra.mxu0 0.0
          %641 = vmatprep.subr.mxu0 0.0
          %642 = vmatpush1.msra.mxu0 0.0
          %643 = vmatprep.subr.mxu0 0.0
          %644 = vmatpush1.msra.mxu0 0.0
          %645 = vmatprep.subr.mxu0 0.0
          %646 = vmatpush1.msra.mxu0 0.0
          %647 = vmatprep.subr.mxu0 0.0
          %648 = vmatpush1.msra.mxu0 0.0
          %649 = vmatprep.subr.mxu0 0.0
          %650 = vmatpush1.msra.mxu0 0.0
          %651 = vmatprep.subr.mxu0 0.0
          %652 = vmatpush1.msra.mxu0 0.0
          %653 = vmatprep.subr.mxu0 0.0
          %654 = vmatpush1.msra.mxu0 0.0
          %655 = vmatprep.subr.mxu0 0.0
          %656 = vmatpush1.msra.mxu0 0.0
          %657 = vmatprep.subr.mxu0 0.0
          %658 = vmatpush1.msra.mxu0 0.0
          %659 = vmatprep.subr.mxu0 0.0
          %660 = vmatpush1.msra.mxu0 0.0
          %661 = vmatprep.subr.mxu0 0.0
          %662 = vmatpush1.msra.mxu0 0.0
          %663 = vmatprep.subr.mxu0 0.0
          %664 = vmatpush1.msra.mxu0 0.0
          %665 = vmatprep.subr.mxu0 0.0
          %666 = vmatpush1.msra.mxu0 0.0
          %667 = vmatprep.subr.mxu0 0.0
          %668 = vmatpush1.msra.mxu0 0.0
          %669 = vmatprep.subr.mxu0 0.0
          %670 = vmatpush1.msra.mxu0 0.0
          %671 = vmatprep.mubr.f32.mxu0 0.0
          %672 = vmatmul.mubr.f32.gmra.mrb[0].mxu0 %v535
          %v673 = vpop.f32.mrb[0].mxu0
          %v674 = vadd.f32 %v520, %v673
          %v675 = vpop.f32.mrb[0].mxu0
          %676 = vdwg.mxu0
          %677 = vmatprep.subr.mxu0 0.0
          %678 = vmatpush1.msra.mxu0 %v497
          %679 = vmatprep.subr.mxu0 0.0
          %680 = vmatpush1.msra.mxu0 %v498
          %681 = vmatprep.subr.mxu0 0.0
          %682 = vmatpush1.msra.mxu0 %v499
          %683 = vmatprep.subr.mxu0 0.0
          %684 = vmatpush1.msra.mxu0 %v500
          %685 = vmatprep.subr.mxu0 0.0
          %686 = vmatpush1.msra.mxu0 0.0
          %687 = vmatprep.subr.mxu0 0.0
          %688 = vmatpush1.msra.mxu0 0.0
          %689 = vmatprep.subr.mxu0 0.0
          %690 = vmatpush1.msra.mxu0 0.0
          %691 = vmatprep.subr.mxu0 0.0
          %692 = vmatpush1.msra.mxu0 0.0
          %693 = vmatprep.subr.mxu0 0.0
          %694 = vmatpush1.msra.mxu0 0.0
          %695 = vmatprep.subr.mxu0 0.0
          %696 = vmatpush1.msra.mxu0 0.0
          %697 = vmatprep.subr.mxu0 0.0
          %698 = vmatpush1.msra.mxu0 0.0
          %699 = vmatprep.subr.mxu0 0.0
          %700 = vmatpush1.msra.mxu0 0.0
          %701 = vmatprep.subr.mxu0 0.0
          %702 = vmatpush1.msra.mxu0 0.0
          %703 = vmatprep.subr.mxu0 0.0
          %704 = vmatpush1.msra.mxu0 0.0
          %705 = vmatprep.subr.mxu0 0.0
          %706 = vmatpush1.msra.mxu0 0.0
          %707 = vmatprep.subr.mxu0 0.0
          %708 = vmatpush1.msra.mxu0 0.0
          %709 = vmatprep.subr.mxu0 0.0
          %710 = vmatpush1.msra.mxu0 0.0
          %711 = vmatprep.subr.mxu0 0.0
          %712 = vmatpush1.msra.mxu0 0.0
          %713 = vmatprep.subr.mxu0 0.0
          %714 = vmatpush1.msra.mxu0 0.0
          %715 = vmatprep.subr.mxu0 0.0
          %716 = vmatpush1.msra.mxu0 0.0
          %717 = vmatprep.subr.mxu0 0.0
          %718 = vmatpush1.msra.mxu0 0.0
          %719 = vmatprep.subr.mxu0 0.0
          %720 = vmatpush1.msra.mxu0 0.0
          %721 = vmatprep.subr.mxu0 0.0
          %722 = vmatpush1.msra.mxu0 0.0
          %723 = vmatprep.subr.mxu0 0.0
          %724 = vmatpush1.msra.mxu0 0.0
          %725 = vmatprep.subr.mxu0 0.0
          %726 = vmatpush1.msra.mxu0 0.0
          %727 = vmatprep.subr.mxu0 0.0
          %728 = vmatpush1.msra.mxu0 0.0
          %729 = vmatprep.subr.mxu0 0.0
          %730 = vmatpush1.msra.mxu0 0.0
          %731 = vmatprep.subr.mxu0 0.0
          %732 = vmatpush1.msra.mxu0 0.0
          %733 = vmatprep.subr.mxu0 0.0
          %734 = vmatpush1.msra.mxu0 0.0
          %735 = vmatprep.subr.mxu0 0.0
          %736 = vmatpush1.msra.mxu0 0.0
          %737 = vmatprep.subr.mxu0 0.0
          %738 = vmatpush1.msra.mxu0 0.0
          %739 = vmatprep.subr.mxu0 0.0
          %740 = vmatpush1.msra.mxu0 0.0
          %741 = vmatprep.mubr.f32.mxu0 0.0
          %742 = vmatmul.mubr.f32.gmra.mrb[0].mxu0 %v535
          %v743 = vpop.f32.mrb[0].mxu0
          %v744 = vadd.f32 %v524, %v743
          %v745 = vpop.f32.mrb[0].mxu0
          %746 = vdwg.mxu0
          %747 = vmatprep.subr.mxu0 0.0
          %748 = vmatpush1.msra.mxu0 %v501
          %749 = vmatprep.subr.mxu0 0.0
          %750 = vmatpush1.msra.mxu0 %v502
          %751 = vmatprep.subr.mxu0 0.0
          %752 = vmatpush1.msra.mxu0 %v503
          %753 = vmatprep.subr.mxu0 0.0
          %754 = vmatpush1.msra.mxu0 %v504
          %755 = vmatprep.subr.mxu0 0.0
          %756 = vmatpush1.msra.mxu0 0.0
          %757 = vmatprep.subr.mxu0 0.0
          %758 = vmatpush1.msra.mxu0 0.0
          %759 = vmatprep.subr.mxu0 0.0
          %760 = vmatpush1.msra.mxu0 0.0
          %761 = vmatprep.subr.mxu0 0.0
          %762 = vmatpush1.msra.mxu0 0.0
          %763 = vmatprep.subr.mxu0 0.0
          %764 = vmatpush1.msra.mxu0 0.0
          %765 = vmatprep.subr.mxu0 0.0
          %766 = vmatpush1.msra.mxu0 0.0
          %767 = vmatprep.subr.mxu0 0.0
          %768 = vmatpush1.msra.mxu0 0.0
          %769 = vmatprep.subr.mxu0 0.0
          %770 = vmatpush1.msra.mxu0 0.0
          %771 = vmatprep.subr.mxu0 0.0
          %772 = vmatpush1.msra.mxu0 0.0
          %773 = vmatprep.subr.mxu0 0.0
          %774 = vmatpush1.msra.mxu0 0.0
          %775 = vmatprep.subr.mxu0 0.0
          %776 = vmatpush1.msra.mxu0 0.0
          %777 = vmatprep.subr.mxu0 0.0
          %778 = vmatpush1.msra.mxu0 0.0
          %779 = vmatprep.subr.mxu0 0.0
          %780 = vmatpush1.msra.mxu0 0.0
          %781 = vmatprep.subr.mxu0 0.0
          %782 = vmatpush1.msra.mxu0 0.0
          %783 = vmatprep.subr.mxu0 0.0
          %784 = vmatpush1.msra.mxu0 0.0
          %785 = vmatprep.subr.mxu0 0.0
          %786 = vmatpush1.msra.mxu0 0.0
          %787 = vmatprep.subr.mxu0 0.0
          %788 = vmatpush1.msra.mxu0 0.0
          %789 = vmatprep.subr.mxu0 0.0
          %790 = vmatpush1.msra.mxu0 0.0
          %791 = vmatprep.subr.mxu0 0.0
          %792 = vmatpush1.msra.mxu0 0.0
          %793 = vmatprep.subr.mxu0 0.0
          %794 = vmatpush1.msra.mxu0 0.0
          %795 = vmatprep.subr.mxu0 0.0
          %796 = vmatpush1.msra.mxu0 0.0
          %797 = vmatprep.subr.mxu0 0.0
          %798 = vmatpush1.msra.mxu0 0.0
          %799 = vmatprep.subr.mxu0 0.0
          %800 = vmatpush1.msra.mxu0 0.0
          %801 = vmatprep.subr.mxu0 0.0
          %802 = vmatpush1.msra.mxu0 0.0
          %803 = vmatprep.subr.mxu0 0.0
          %804 = vmatpush1.msra.mxu0 0.0
          %805 = vmatprep.subr.mxu0 0.0
          %806 = vmatpush1.msra.mxu0 0.0
          %807 = vmatprep.subr.mxu0 0.0
          %808 = vmatpush1.msra.mxu0 0.0
          %809 = vmatprep.subr.mxu0 0.0
          %810 = vmatpush1.msra.mxu0 0.0
          %811 = vmatprep.mubr.f32.mxu0 0.0
          %812 = vmatmul.mubr.f32.gmra.mrb[0].mxu0 %v535
          %v813 = vpop.f32.mrb[0].mxu0
          %v814 = vadd.f32 %v528, %v813
          %v815 = vpop.f32.mrb[0].mxu0
          %816 = vdwg.mxu0
          %v817 = vmul.f32 %v604, 0.25
          %v818 = vmul.f32 %v674, 0.25
          %v819 = vmul.f32 %v744, 0.25
          %v820 = vmul.f32 %v814, 0.25
          %821 = vst.msk [vmem:[#allocation2] sm:$0xff] %vm483, %v817
          %822 = vst.msk [vmem:[#allocation2 + $0x8] sm:$0xff] %vm483, %v818
          %823 = vst.msk [vmem:[#allocation2 + $0x10] sm:$0xff] %vm483, %v819
          %824 = vst.msk [vmem:[#allocation2 + $0x18] sm:$0xff] %vm483, %v820
        $region68: #{tpu_custom_call.1} parent=63 // pred_fallthru
          _
        %v825 = vld [vmem:[%s462] sm:$0xff]
        %v826 = vld [vmem:[%s469] sm:$0xff]
        %v827 = vld [vmem:[%s5] sm:$0xff]
        %v828 = vld [vmem:[%s5 + $0x8] sm:$0xff]
        %v829 = vld [vmem:[%s5 + $0x10] sm:$0xff]
        %v830 = vld [vmem:[%s5 + $0x18] sm:$0xff]
        %v831 = vld [vmem:[%s5 + $0x20] sm:$0xff]
        %v832 = vld [vmem:[%s5 + $0x28] sm:$0xff]
        %v833 = vld [vmem:[%s5 + $0x30] sm:$0xff]
        %v834 = vld [vmem:[%s5 + $0x38] sm:$0xff]
        %v835 = vld [vmem:[%s5 + $0x40] sm:$0xff]
        %v836 = vld [vmem:[%s5 + $0x48] sm:$0xff]
        %v837 = vld [vmem:[%s5 + $0x50] sm:$0xff]
        %v838 = vld [vmem:[%s5 + $0x58] sm:$0xff]
        %v839 = vld [vmem:[%s5 + $0x60] sm:$0xff]
        %v840 = vld [vmem:[%s5 + $0x68] sm:$0xff]
        %v841 = vld [vmem:[%s5 + $0x70] sm:$0xff]
        %v842 = vld [vmem:[%s5 + $0x78] sm:$0xff]
        %v843 = vld [vmem:[%s6] sm:$0x1]
        %v844 = vld [vmem:[%s6 + $0x1] sm:$0x1]
        %v845 = vld [vmem:[%s6 + $0x2] sm:$0x1]
        %v846 = vld [vmem:[%s6 + $0x3] sm:$0x1]
        %v851 = vlaneseq
        %v852 = vshrl.u32 %v851, 7
        %v853 = vsub.s32 0, %v852
        %v854 = vrot.slane %v843, %v853
        %v855 = vlaneseq
        %v856 = vshrl.u32 %v855, 7
        %v857 = vsub.s32 0, %v856
        %v858 = vrot.slane %v844, %v857
        %v859 = vlaneseq
        %v860 = vshrl.u32 %v859, 7
        %v861 = vsub.s32 0, %v860
        %v862 = vrot.slane %v845, %v861
        %v863 = vlaneseq
        %v864 = vshrl.u32 %v863, 7
        %v865 = vsub.s32 0, %v864
        %v866 = vrot.slane %v846, %v865
        %vm871 = vcmask 261120
        %v873 = vsel %vm871, %v825, 0
        %875 = vmatprep.subr.mxu0 0.0
        %876 = vmatpush1.msra.mxu0 %v827
        %877 = vmatprep.subr.mxu0 0.0
        %878 = vmatpush1.msra.mxu0 %v828
        %879 = vmatprep.subr.mxu0 0.0
        %880 = vmatpush1.msra.mxu0 %v829
        %881 = vmatprep.subr.mxu0 0.0
        %882 = vmatpush1.msra.mxu0 %v830
        %883 = vmatprep.subr.mxu0 0.0
        %884 = vmatpush1.msra.mxu0 0.0
        %885 = vmatprep.subr.mxu0 0.0
        %886 = vmatpush1.msra.mxu0 0.0
        %887 = vmatprep.subr.mxu0 0.0
        %888 = vmatpush1.msra.mxu0 0.0
        %889 = vmatprep.subr.mxu0 0.0
        %890 = vmatpush1.msra.mxu0 0.0
        %891 = vmatprep.subr.mxu0 0.0
        %892 = vmatpush1.msra.mxu0 0.0
        %893 = vmatprep.subr.mxu0 0.0
        %894 = vmatpush1.msra.mxu0 0.0
        %895 = vmatprep.subr.mxu0 0.0
        %896 = vmatpush1.msra.mxu0 0.0
        %897 = vmatprep.subr.mxu0 0.0
        %898 = vmatpush1.msra.mxu0 0.0
        %899 = vmatprep.subr.mxu0 0.0
        %900 = vmatpush1.msra.mxu0 0.0
        %901 = vmatprep.subr.mxu0 0.0
        %902 = vmatpush1.msra.mxu0 0.0
        %903 = vmatprep.subr.mxu0 0.0
        %904 = vmatpush1.msra.mxu0 0.0
        %905 = vmatprep.subr.mxu0 0.0
        %906 = vmatpush1.msra.mxu0 0.0
        %907 = vmatprep.subr.mxu0 0.0
        %908 = vmatpush1.msra.mxu0 0.0
        %909 = vmatprep.subr.mxu0 0.0
        %910 = vmatpush1.msra.mxu0 0.0
        %911 = vmatprep.subr.mxu0 0.0
        %912 = vmatpush1.msra.mxu0 0.0
        %913 = vmatprep.subr.mxu0 0.0
        %914 = vmatpush1.msra.mxu0 0.0
        %915 = vmatprep.subr.mxu0 0.0
        %916 = vmatpush1.msra.mxu0 0.0
        %917 = vmatprep.subr.mxu0 0.0
        %918 = vmatpush1.msra.mxu0 0.0
        %919 = vmatprep.subr.mxu0 0.0
        %920 = vmatpush1.msra.mxu0 0.0
        %921 = vmatprep.subr.mxu0 0.0
        %922 = vmatpush1.msra.mxu0 0.0
        %923 = vmatprep.subr.mxu0 0.0
        %924 = vmatpush1.msra.mxu0 0.0
        %925 = vmatprep.subr.mxu0 0.0
        %926 = vmatpush1.msra.mxu0 0.0
        %927 = vmatprep.subr.mxu0 0.0
        %928 = vmatpush1.msra.mxu0 0.0
        %929 = vmatprep.subr.mxu0 0.0
        %930 = vmatpush1.msra.mxu0 0.0
        %931 = vmatprep.subr.mxu0 0.0
        %932 = vmatpush1.msra.mxu0 0.0
        %933 = vmatprep.subr.mxu0 0.0
        %934 = vmatpush1.msra.mxu0 0.0
        %935 = vmatprep.subr.mxu0 0.0
        %936 = vmatpush1.msra.mxu0 0.0
        %937 = vmatprep.subr.mxu0 0.0
        %938 = vmatpush1.msra.mxu0 0.0
        %939 = vmatprep.mubr.f32.mxu0 0.0
        %940 = vmatmul.mubr.f32.gmra.mrb[0].mxu0 %v873
        %v941 = vpop.f32.mrb[0].mxu0
        %v942 = vadd.f32 %v854, %v941
        %v943 = vpop.f32.mrb[0].mxu0
        %944 = vdwg.mxu0
        %945 = vmatprep.subr.mxu0 0.0
        %946 = vmatpush1.msra.mxu0 %v831
        %947 = vmatprep.subr.mxu0 0.0
        %948 = vmatpush1.msra.mxu0 %v832
        %949 = vmatprep.subr.mxu0 0.0
        %950 = vmatpush1.msra.mxu0 %v833
        %951 = vmatprep.subr.mxu0 0.0
        %952 = vmatpush1.msra.mxu0 %v834
        %953 = vmatprep.subr.mxu0 0.0
        %954 = vmatpush1.msra.mxu0 0.0
        %955 = vmatprep.subr.mxu0 0.0
        %956 = vmatpush1.msra.mxu0 0.0
        %957 = vmatprep.subr.mxu0 0.0
        %958 = vmatpush1.msra.mxu0 0.0
        %959 = vmatprep.subr.mxu0 0.0
        %960 = vmatpush1.msra.mxu0 0.0
        %961 = vmatprep.subr.mxu0 0.0
        %962 = vmatpush1.msra.mxu0 0.0
        %963 = vmatprep.subr.mxu0 0.0
        %964 = vmatpush1.msra.mxu0 0.0
        %965 = vmatprep.subr.mxu0 0.0
        %966 = vmatpush1.msra.mxu0 0.0
        %967 = vmatprep.subr.mxu0 0.0
        %968 = vmatpush1.msra.mxu0 0.0
        %969 = vmatprep.subr.mxu0 0.0
        %970 = vmatpush1.msra.mxu0 0.0
        %971 = vmatprep.subr.mxu0 0.0
        %972 = vmatpush1.msra.mxu0 0.0
        %973 = vmatprep.subr.mxu0 0.0
        %974 = vmatpush1.msra.mxu0 0.0
        %975 = vmatprep.subr.mxu0 0.0
        %976 = vmatpush1.msra.mxu0 0.0
        %977 = vmatprep.subr.mxu0 0.0
        %978 = vmatpush1.msra.mxu0 0.0
        %979 = vmatprep.subr.mxu0 0.0
        %980 = vmatpush1.msra.mxu0 0.0
        %981 = vmatprep.subr.mxu0 0.0
        %982 = vmatpush1.msra.mxu0 0.0
        %983 = vmatprep.subr.mxu0 0.0
        %984 = vmatpush1.msra.mxu0 0.0
        %985 = vmatprep.subr.mxu0 0.0
        %986 = vmatpush1.msra.mxu0 0.0
        %987 = vmatprep.subr.mxu0 0.0
        %988 = vmatpush1.msra.mxu0 0.0
        %989 = vmatprep.subr.mxu0 0.0
        %990 = vmatpush1.msra.mxu0 0.0
        %991 = vmatprep.subr.mxu0 0.0
        %992 = vmatpush1.msra.mxu0 0.0
        %993 = vmatprep.subr.mxu0 0.0
        %994 = vmatpush1.msra.mxu0 0.0
        %995 = vmatprep.subr.mxu0 0.0
        %996 = vmatpush1.msra.mxu0 0.0
        %997 = vmatprep.subr.mxu0 0.0
        %998 = vmatpush1.msra.mxu0 0.0
        %999 = vmatprep.subr.mxu0 0.0
        %1000 = vmatpush1.msra.mxu0 0.0
        %1001 = vmatprep.subr.mxu0 0.0
        %1002 = vmatpush1.msra.mxu0 0.0
        %1003 = vmatprep.subr.mxu0 0.0
        %1004 = vmatpush1.msra.mxu0 0.0
        %1005 = vmatprep.subr.mxu0 0.0
        %1006 = vmatpush1.msra.mxu0 0.0
        %1007 = vmatprep.subr.mxu0 0.0
        %1008 = vmatpush1.msra.mxu0 0.0
        %1009 = vmatprep.mubr.f32.mxu0 0.0
        %1010 = vmatmul.mubr.f32.gmra.mrb[0].mxu0 %v873
        %v1011 = vpop.f32.mrb[0].mxu0
        %v1012 = vadd.f32 %v858, %v1011
        %v1013 = vpop.f32.mrb[0].mxu0
        %1014 = vdwg.mxu0
        %1015 = vmatprep.subr.mxu0 0.0
        %1016 = vmatpush1.msra.mxu0 %v835
        %1017 = vmatprep.subr.mxu0 0.0
        %1018 = vmatpush1.msra.mxu0 %v836
        %1019 = vmatprep.subr.mxu0 0.0
        %1020 = vmatpush1.msra.mxu0 %v837
        %1021 = vmatprep.subr.mxu0 0.0
        %1022 = vmatpush1.msra.mxu0 %v838
        %1023 = vmatprep.subr.mxu0 0.0
        %1024 = vmatpush1.msra.mxu0 0.0
        %1025 = vmatprep.subr.mxu0 0.0
        %1026 = vmatpush1.msra.mxu0 0.0
        %1027 = vmatprep.subr.mxu0 0.0
        %1028 = vmatpush1.msra.mxu0 0.0
        %1029 = vmatprep.subr.mxu0 0.0
        %1030 = vmatpush1.msra.mxu0 0.0
        %1031 = vmatprep.subr.mxu0 0.0
        %1032 = vmatpush1.msra.mxu0 0.0
        %1033 = vmatprep.subr.mxu0 0.0
        %1034 = vmatpush1.msra.mxu0 0.0
        %1035 = vmatprep.subr.mxu0 0.0
        %1036 = vmatpush1.msra.mxu0 0.0
        %1037 = vmatprep.subr.mxu0 0.0
        %1038 = vmatpush1.msra.mxu0 0.0
        %1039 = vmatprep.subr.mxu0 0.0
        %1040 = vmatpush1.msra.mxu0 0.0
        %1041 = vmatprep.subr.mxu0 0.0
        %1042 = vmatpush1.msra.mxu0 0.0
        %1043 = vmatprep.subr.mxu0 0.0
        %1044 = vmatpush1.msra.mxu0 0.0
        %1045 = vmatprep.subr.mxu0 0.0
        %1046 = vmatpush1.msra.mxu0 0.0
        %1047 = vmatprep.subr.mxu0 0.0
        %1048 = vmatpush1.msra.mxu0 0.0
        %1049 = vmatprep.subr.mxu0 0.0
        %1050 = vmatpush1.msra.mxu0 0.0
        %1051 = vmatprep.subr.mxu0 0.0
        %1052 = vmatpush1.msra.mxu0 0.0
        %1053 = vmatprep.subr.mxu0 0.0
        %1054 = vmatpush1.msra.mxu0 0.0
        %1055 = vmatprep.subr.mxu0 0.0
        %1056 = vmatpush1.msra.mxu0 0.0
        %1057 = vmatprep.subr.mxu0 0.0
        %1058 = vmatpush1.msra.mxu0 0.0
        %1059 = vmatprep.subr.mxu0 0.0
        %1060 = vmatpush1.msra.mxu0 0.0
        %1061 = vmatprep.subr.mxu0 0.0
        %1062 = vmatpush1.msra.mxu0 0.0
        %1063 = vmatprep.subr.mxu0 0.0
        %1064 = vmatpush1.msra.mxu0 0.0
        %1065 = vmatprep.subr.mxu0 0.0
        %1066 = vmatpush1.msra.mxu0 0.0
        %1067 = vmatprep.subr.mxu0 0.0
        %1068 = vmatpush1.msra.mxu0 0.0
        %1069 = vmatprep.subr.mxu0 0.0
        %1070 = vmatpush1.msra.mxu0 0.0
        %1071 = vmatprep.subr.mxu0 0.0
        %1072 = vmatpush1.msra.mxu0 0.0
        %1073 = vmatprep.subr.mxu0 0.0
        %1074 = vmatpush1.msra.mxu0 0.0
        %1075 = vmatprep.subr.mxu0 0.0
        %1076 = vmatpush1.msra.mxu0 0.0
        %1077 = vmatprep.subr.mxu0 0.0
        %1078 = vmatpush1.msra.mxu0 0.0
        %1079 = vmatprep.mubr.f32.mxu0 0.0
        %1080 = vmatmul.mubr.f32.gmra.mrb[0].mxu0 %v873
        %v1081 = vpop.f32.mrb[0].mxu0
        %v1082 = vadd.f32 %v862, %v1081
        %v1083 = vpop.f32.mrb[0].mxu0
        %1084 = vdwg.mxu0
        %1085 = vmatprep.subr.mxu0 0.0
        %1086 = vmatpush1.msra.mxu0 %v839
        %1087 = vmatprep.subr.mxu0 0.0
        %1088 = vmatpush1.msra.mxu0 %v840
        %1089 = vmatprep.subr.mxu0 0.0
        %1090 = vmatpush1.msra.mxu0 %v841
        %1091 = vmatprep.subr.mxu0 0.0
        %1092 = vmatpush1.msra.mxu0 %v842
        %1093 = vmatprep.subr.mxu0 0.0
        %1094 = vmatpush1.msra.mxu0 0.0
        %1095 = vmatprep.subr.mxu0 0.0
        %1096 = vmatpush1.msra.mxu0 0.0
        %1097 = vmatprep.subr.mxu0 0.0
        %1098 = vmatpush1.msra.mxu0 0.0
        %1099 = vmatprep.subr.mxu0 0.0
        %1100 = vmatpush1.msra.mxu0 0.0
        %1101 = vmatprep.subr.mxu0 0.0
        %1102 = vmatpush1.msra.mxu0 0.0
        %1103 = vmatprep.subr.mxu0 0.0
        %1104 = vmatpush1.msra.mxu0 0.0
        %1105 = vmatprep.subr.mxu0 0.0
        %1106 = vmatpush1.msra.mxu0 0.0
        %1107 = vmatprep.subr.mxu0 0.0
        %1108 = vmatpush1.msra.mxu0 0.0
        %1109 = vmatprep.subr.mxu0 0.0
        %1110 = vmatpush1.msra.mxu0 0.0
        %1111 = vmatprep.subr.mxu0 0.0
        %1112 = vmatpush1.msra.mxu0 0.0
        %1113 = vmatprep.subr.mxu0 0.0
        %1114 = vmatpush1.msra.mxu0 0.0
        %1115 = vmatprep.subr.mxu0 0.0
        %1116 = vmatpush1.msra.mxu0 0.0
        %1117 = vmatprep.subr.mxu0 0.0
        %1118 = vmatpush1.msra.mxu0 0.0
        %1119 = vmatprep.subr.mxu0 0.0
        %1120 = vmatpush1.msra.mxu0 0.0
        %1121 = vmatprep.subr.mxu0 0.0
        %1122 = vmatpush1.msra.mxu0 0.0
        %1123 = vmatprep.subr.mxu0 0.0
        %1124 = vmatpush1.msra.mxu0 0.0
        %1125 = vmatprep.subr.mxu0 0.0
        %1126 = vmatpush1.msra.mxu0 0.0
        %1127 = vmatprep.subr.mxu0 0.0
        %1128 = vmatpush1.msra.mxu0 0.0
        %1129 = vmatprep.subr.mxu0 0.0
        %1130 = vmatpush1.msra.mxu0 0.0
        %1131 = vmatprep.subr.mxu0 0.0
        %1132 = vmatpush1.msra.mxu0 0.0
        %1133 = vmatprep.subr.mxu0 0.0
        %1134 = vmatpush1.msra.mxu0 0.0
        %1135 = vmatprep.subr.mxu0 0.0
        %1136 = vmatpush1.msra.mxu0 0.0
        %1137 = vmatprep.subr.mxu0 0.0
        %1138 = vmatpush1.msra.mxu0 0.0
        %1139 = vmatprep.subr.mxu0 0.0
        %1140 = vmatpush1.msra.mxu0 0.0
        %1141 = vmatprep.subr.mxu0 0.0
        %1142 = vmatpush1.msra.mxu0 0.0
        %1143 = vmatprep.subr.mxu0 0.0
        %1144 = vmatpush1.msra.mxu0 0.0
        %1145 = vmatprep.subr.mxu0 0.0
        %1146 = vmatpush1.msra.mxu0 0.0
        %1147 = vmatprep.subr.mxu0 0.0
        %1148 = vmatpush1.msra.mxu0 0.0
        %1149 = vmatprep.mubr.f32.mxu0 0.0
        %1150 = vmatmul.mubr.f32.gmra.mrb[0].mxu0 %v873
        %v1151 = vpop.f32.mrb[0].mxu0
        %v1152 = vadd.f32 %v866, %v1151
        %v1153 = vpop.f32.mrb[0].mxu0
        %1154 = vdwg.mxu0
        %v1155 = vld [vmem:[%s7] sm:$0xff]
        %v1156 = vld [vmem:[%s7 + $0x8] sm:$0xff]
        %v1157 = vld [vmem:[%s7 + $0x10] sm:$0xff]
        %v1158 = vld [vmem:[%s7 + $0x18] sm:$0xff]
        %v1159 = vld [vmem:[%s7 + $0x20] sm:$0xff]
        %v1160 = vld [vmem:[%s7 + $0x28] sm:$0xff]
        %v1161 = vld [vmem:[%s7 + $0x30] sm:$0xff]
        %v1162 = vld [vmem:[%s7 + $0x38] sm:$0xff]
        %v1163 = vld [vmem:[%s7 + $0x40] sm:$0xff]
        %v1164 = vld [vmem:[%s7 + $0x48] sm:$0xff]
        %v1165 = vld [vmem:[%s7 + $0x50] sm:$0xff]
        %v1166 = vld [vmem:[%s7 + $0x58] sm:$0xff]
        %v1167 = vld [vmem:[%s7 + $0x60] sm:$0xff]
        %v1168 = vld [vmem:[%s7 + $0x68] sm:$0xff]
        %v1169 = vld [vmem:[%s7 + $0x70] sm:$0xff]
        %v1170 = vld [vmem:[%s7 + $0x78] sm:$0xff]
        %v1171 = vld [vmem:[%s8] sm:$0x1]
        %v1172 = vld [vmem:[%s8 + $0x1] sm:$0x1]
        %v1173 = vld [vmem:[%s8 + $0x2] sm:$0x1]
        %v1174 = vld [vmem:[%s8 + $0x3] sm:$0x1]
        %v1179 = vlaneseq
        %v1180 = vshrl.u32 %v1179, 7
        %v1181 = vsub.s32 0, %v1180
        %v1182 = vrot.slane %v1171, %v1181
        %v1183 = vlaneseq
        %v1184 = vshrl.u32 %v1183, 7
        %v1185 = vsub.s32 0, %v1184
        %v1186 = vrot.slane %v1172, %v1185
        %v1187 = vlaneseq
        %v1188 = vshrl.u32 %v1187, 7
        %v1189 = vsub.s32 0, %v1188
        %v1190 = vrot.slane %v1173, %v1189
        %v1191 = vlaneseq
        %v1192 = vshrl.u32 %v1191, 7
        %v1193 = vsub.s32 0, %v1192
        %v1194 = vrot.slane %v1174, %v1193
        %v1200 = vsel %vm871, %v826, 0
        %1202 = vmatprep.subr.mxu0 0.0
        %1203 = vmatpush1.msra.mxu0 %v1155
        %1204 = vmatprep.subr.mxu0 0.0
        %1205 = vmatpush1.msra.mxu0 %v1156
        %1206 = vmatprep.subr.mxu0 0.0
        %1207 = vmatpush1.msra.mxu0 %v1157
        %1208 = vmatprep.subr.mxu0 0.0
        %1209 = vmatpush1.msra.mxu0 %v1158
        %1210 = vmatprep.subr.mxu0 0.0
        %1211 = vmatpush1.msra.mxu0 0.0
        %1212 = vmatprep.subr.mxu0 0.0
        %1213 = vmatpush1.msra.mxu0 0.0
        %1214 = vmatprep.subr.mxu0 0.0
        %1215 = vmatpush1.msra.mxu0 0.0
        %1216 = vmatprep.subr.mxu0 0.0
        %1217 = vmatpush1.msra.mxu0 0.0
        %1218 = vmatprep.subr.mxu0 0.0
        %1219 = vmatpush1.msra.mxu0 0.0
        %1220 = vmatprep.subr.mxu0 0.0
        %1221 = vmatpush1.msra.mxu0 0.0
        %1222 = vmatprep.subr.mxu0 0.0
        %1223 = vmatpush1.msra.mxu0 0.0
        %1224 = vmatprep.subr.mxu0 0.0
        %1225 = vmatpush1.msra.mxu0 0.0
        %1226 = vmatprep.subr.mxu0 0.0
        %1227 = vmatpush1.msra.mxu0 0.0
        %1228 = vmatprep.subr.mxu0 0.0
        %1229 = vmatpush1.msra.mxu0 0.0
        %1230 = vmatprep.subr.mxu0 0.0
        %1231 = vmatpush1.msra.mxu0 0.0
        %1232 = vmatprep.subr.mxu0 0.0
        %1233 = vmatpush1.msra.mxu0 0.0
        %1234 = vmatprep.subr.mxu0 0.0
        %1235 = vmatpush1.msra.mxu0 0.0
        %1236 = vmatprep.subr.mxu0 0.0
        %1237 = vmatpush1.msra.mxu0 0.0
        %1238 = vmatprep.subr.mxu0 0.0
        %1239 = vmatpush1.msra.mxu0 0.0
        %1240 = vmatprep.subr.mxu0 0.0
        %1241 = vmatpush1.msra.mxu0 0.0
        %1242 = vmatprep.subr.mxu0 0.0
        %1243 = vmatpush1.msra.mxu0 0.0
        %1244 = vmatprep.subr.mxu0 0.0
        %1245 = vmatpush1.msra.mxu0 0.0
        %1246 = vmatprep.subr.mxu0 0.0
        %1247 = vmatpush1.msra.mxu0 0.0
        %1248 = vmatprep.subr.mxu0 0.0
        %1249 = vmatpush1.msra.mxu0 0.0
        %1250 = vmatprep.subr.mxu0 0.0
        %1251 = vmatpush1.msra.mxu0 0.0
        %1252 = vmatprep.subr.mxu0 0.0
        %1253 = vmatpush1.msra.mxu0 0.0
        %1254 = vmatprep.subr.mxu0 0.0
        %1255 = vmatpush1.msra.mxu0 0.0
        %1256 = vmatprep.subr.mxu0 0.0
        %1257 = vmatpush1.msra.mxu0 0.0
        %1258 = vmatprep.subr.mxu0 0.0
        %1259 = vmatpush1.msra.mxu0 0.0
        %1260 = vmatprep.subr.mxu0 0.0
        %1261 = vmatpush1.msra.mxu0 0.0
        %1262 = vmatprep.subr.mxu0 0.0
        %1263 = vmatpush1.msra.mxu0 0.0
        %1264 = vmatprep.subr.mxu0 0.0
        %1265 = vmatpush1.msra.mxu0 0.0
        %1266 = vmatprep.mubr.f32.mxu0 0.0
        %1267 = vmatmul.mubr.f32.gmra.mrb[0].mxu0 %v1200
        %v1268 = vpop.f32.mrb[0].mxu0
        %v1269 = vadd.f32 %v1182, %v1268
        %v1270 = vpop.f32.mrb[0].mxu0
        %1271 = vdwg.mxu0
        %1272 = vmatprep.subr.mxu0 0.0
        %1273 = vmatpush1.msra.mxu0 %v1159
        %1274 = vmatprep.subr.mxu0 0.0
        %1275 = vmatpush1.msra.mxu0 %v1160
        %1276 = vmatprep.subr.mxu0 0.0
        %1277 = vmatpush1.msra.mxu0 %v1161
        %1278 = vmatprep.subr.mxu0 0.0
        %1279 = vmatpush1.msra.mxu0 %v1162
        %1280 = vmatprep.subr.mxu0 0.0
        %1281 = vmatpush1.msra.mxu0 0.0
        %1282 = vmatprep.subr.mxu0 0.0
        %1283 = vmatpush1.msra.mxu0 0.0
        %1284 = vmatprep.subr.mxu0 0.0
        %1285 = vmatpush1.msra.mxu0 0.0
        %1286 = vmatprep.subr.mxu0 0.0
        %1287 = vmatpush1.msra.mxu0 0.0
        %1288 = vmatprep.subr.mxu0 0.0
        %1289 = vmatpush1.msra.mxu0 0.0
        %1290 = vmatprep.subr.mxu0 0.0
        %1291 = vmatpush1.msra.mxu0 0.0
        %1292 = vmatprep.subr.mxu0 0.0
        %1293 = vmatpush1.msra.mxu0 0.0
        %1294 = vmatprep.subr.mxu0 0.0
        %1295 = vmatpush1.msra.mxu0 0.0
        %1296 = vmatprep.subr.mxu0 0.0
        %1297 = vmatpush1.msra.mxu0 0.0
        %1298 = vmatprep.subr.mxu0 0.0
        %1299 = vmatpush1.msra.mxu0 0.0
        %1300 = vmatprep.subr.mxu0 0.0
        %1301 = vmatpush1.msra.mxu0 0.0
        %1302 = vmatprep.subr.mxu0 0.0
        %1303 = vmatpush1.msra.mxu0 0.0
        %1304 = vmatprep.subr.mxu0 0.0
        %1305 = vmatpush1.msra.mxu0 0.0
        %1306 = vmatprep.subr.mxu0 0.0
        %1307 = vmatpush1.msra.mxu0 0.0
        %1308 = vmatprep.subr.mxu0 0.0
        %1309 = vmatpush1.msra.mxu0 0.0
        %1310 = vmatprep.subr.mxu0 0.0
        %1311 = vmatpush1.msra.mxu0 0.0
        %1312 = vmatprep.subr.mxu0 0.0
        %1313 = vmatpush1.msra.mxu0 0.0
        %1314 = vmatprep.subr.mxu0 0.0
        %1315 = vmatpush1.msra.mxu0 0.0
        %1316 = vmatprep.subr.mxu0 0.0
        %1317 = vmatpush1.msra.mxu0 0.0
        %1318 = vmatprep.subr.mxu0 0.0
        %1319 = vmatpush1.msra.mxu0 0.0
        %1320 = vmatprep.subr.mxu0 0.0
        %1321 = vmatpush1.msra.mxu0 0.0
        %1322 = vmatprep.subr.mxu0 0.0
        %1323 = vmatpush1.msra.mxu0 0.0
        %1324 = vmatprep.subr.mxu0 0.0
        %1325 = vmatpush1.msra.mxu0 0.0
        %1326 = vmatprep.subr.mxu0 0.0
        %1327 = vmatpush1.msra.mxu0 0.0
        %1328 = vmatprep.subr.mxu0 0.0
        %1329 = vmatpush1.msra.mxu0 0.0
        %1330 = vmatprep.subr.mxu0 0.0
        %1331 = vmatpush1.msra.mxu0 0.0
        %1332 = vmatprep.subr.mxu0 0.0
        %1333 = vmatpush1.msra.mxu0 0.0
        %1334 = vmatprep.subr.mxu0 0.0
        %1335 = vmatpush1.msra.mxu0 0.0
        %1336 = vmatprep.mubr.f32.mxu0 0.0
        %1337 = vmatmul.mubr.f32.gmra.mrb[0].mxu0 %v1200
        %v1338 = vpop.f32.mrb[0].mxu0
        %v1339 = vadd.f32 %v1186, %v1338
        %v1340 = vpop.f32.mrb[0].mxu0
        %1341 = vdwg.mxu0
        %1342 = vmatprep.subr.mxu0 0.0
        %1343 = vmatpush1.msra.mxu0 %v1163
        %1344 = vmatprep.subr.mxu0 0.0
        %1345 = vmatpush1.msra.mxu0 %v1164
        %1346 = vmatprep.subr.mxu0 0.0
        %1347 = vmatpush1.msra.mxu0 %v1165
        %1348 = vmatprep.subr.mxu0 0.0
        %1349 = vmatpush1.msra.mxu0 %v1166
        %1350 = vmatprep.subr.mxu0 0.0
        %1351 = vmatpush1.msra.mxu0 0.0
        %1352 = vmatprep.subr.mxu0 0.0
        %1353 = vmatpush1.msra.mxu0 0.0
        %1354 = vmatprep.subr.mxu0 0.0
        %1355 = vmatpush1.msra.mxu0 0.0
        %1356 = vmatprep.subr.mxu0 0.0
        %1357 = vmatpush1.msra.mxu0 0.0
        %1358 = vmatprep.subr.mxu0 0.0
        %1359 = vmatpush1.msra.mxu0 0.0
        %1360 = vmatprep.subr.mxu0 0.0
        %1361 = vmatpush1.msra.mxu0 0.0
        %1362 = vmatprep.subr.mxu0 0.0
        %1363 = vmatpush1.msra.mxu0 0.0
        %1364 = vmatprep.subr.mxu0 0.0
        %1365 = vmatpush1.msra.mxu0 0.0
        %1366 = vmatprep.subr.mxu0 0.0
        %1367 = vmatpush1.msra.mxu0 0.0
        %1368 = vmatprep.subr.mxu0 0.0
        %1369 = vmatpush1.msra.mxu0 0.0
        %1370 = vmatprep.subr.mxu0 0.0
        %1371 = vmatpush1.msra.mxu0 0.0
        %1372 = vmatprep.subr.mxu0 0.0
        %1373 = vmatpush1.msra.mxu0 0.0
        %1374 = vmatprep.subr.mxu0 0.0
        %1375 = vmatpush1.msra.mxu0 0.0
        %1376 = vmatprep.subr.mxu0 0.0
        %1377 = vmatpush1.msra.mxu0 0.0
        %1378 = vmatprep.subr.mxu0 0.0
        %1379 = vmatpush1.msra.mxu0 0.0
        %1380 = vmatprep.subr.mxu0 0.0
        %1381 = vmatpush1.msra.mxu0 0.0
        %1382 = vmatprep.subr.mxu0 0.0
        %1383 = vmatpush1.msra.mxu0 0.0
        %1384 = vmatprep.subr.mxu0 0.0
        %1385 = vmatpush1.msra.mxu0 0.0
        %1386 = vmatprep.subr.mxu0 0.0
        %1387 = vmatpush1.msra.mxu0 0.0
        %1388 = vmatprep.subr.mxu0 0.0
        %1389 = vmatpush1.msra.mxu0 0.0
        %1390 = vmatprep.subr.mxu0 0.0
        %1391 = vmatpush1.msra.mxu0 0.0
        %1392 = vmatprep.subr.mxu0 0.0
        %1393 = vmatpush1.msra.mxu0 0.0
        %1394 = vmatprep.subr.mxu0 0.0
        %1395 = vmatpush1.msra.mxu0 0.0
        %1396 = vmatprep.subr.mxu0 0.0
        %1397 = vmatpush1.msra.mxu0 0.0
        %1398 = vmatprep.subr.mxu0 0.0
        %1399 = vmatpush1.msra.mxu0 0.0
        %1400 = vmatprep.subr.mxu0 0.0
        %1401 = vmatpush1.msra.mxu0 0.0
        %1402 = vmatprep.subr.mxu0 0.0
        %1403 = vmatpush1.msra.mxu0 0.0
        %1404 = vmatprep.subr.mxu0 0.0
        %1405 = vmatpush1.msra.mxu0 0.0
        %1406 = vmatprep.mubr.f32.mxu0 0.0
        %1407 = vmatmul.mubr.f32.gmra.mrb[0].mxu0 %v1200
        %v1408 = vpop.f32.mrb[0].mxu0
        %v1409 = vadd.f32 %v1190, %v1408
        %v1410 = vpop.f32.mrb[0].mxu0
        %1411 = vdwg.mxu0
        %1412 = vmatprep.subr.mxu0 0.0
        %1413 = vmatpush1.msra.mxu0 %v1167
        %1414 = vmatprep.subr.mxu0 0.0
        %1415 = vmatpush1.msra.mxu0 %v1168
        %1416 = vmatprep.subr.mxu0 0.0
        %1417 = vmatpush1.msra.mxu0 %v1169
        %1418 = vmatprep.subr.mxu0 0.0
        %1419 = vmatpush1.msra.mxu0 %v1170
        %1420 = vmatprep.subr.mxu0 0.0
        %1421 = vmatpush1.msra.mxu0 0.0
        %1422 = vmatprep.subr.mxu0 0.0
        %1423 = vmatpush1.msra.mxu0 0.0
        %1424 = vmatprep.subr.mxu0 0.0
        %1425 = vmatpush1.msra.mxu0 0.0
        %1426 = vmatprep.subr.mxu0 0.0
        %1427 = vmatpush1.msra.mxu0 0.0
        %1428 = vmatprep.subr.mxu0 0.0
        %1429 = vmatpush1.msra.mxu0 0.0
        %1430 = vmatprep.subr.mxu0 0.0
        %1431 = vmatpush1.msra.mxu0 0.0
        %1432 = vmatprep.subr.mxu0 0.0
        %1433 = vmatpush1.msra.mxu0 0.0
        %1434 = vmatprep.subr.mxu0 0.0
        %1435 = vmatpush1.msra.mxu0 0.0
        %1436 = vmatprep.subr.mxu0 0.0
        %1437 = vmatpush1.msra.mxu0 0.0
        %1438 = vmatprep.subr.mxu0 0.0
        %1439 = vmatpush1.msra.mxu0 0.0
        %1440 = vmatprep.subr.mxu0 0.0
        %1441 = vmatpush1.msra.mxu0 0.0
        %1442 = vmatprep.subr.mxu0 0.0
        %1443 = vmatpush1.msra.mxu0 0.0
        %1444 = vmatprep.subr.mxu0 0.0
        %1445 = vmatpush1.msra.mxu0 0.0
        %1446 = vmatprep.subr.mxu0 0.0
        %1447 = vmatpush1.msra.mxu0 0.0
        %1448 = vmatprep.subr.mxu0 0.0
        %1449 = vmatpush1.msra.mxu0 0.0
        %1450 = vmatprep.subr.mxu0 0.0
        %1451 = vmatpush1.msra.mxu0 0.0
        %1452 = vmatprep.subr.mxu0 0.0
        %1453 = vmatpush1.msra.mxu0 0.0
        %1454 = vmatprep.subr.mxu0 0.0
        %1455 = vmatpush1.msra.mxu0 0.0
        %1456 = vmatprep.subr.mxu0 0.0
        %1457 = vmatpush1.msra.mxu0 0.0
        %1458 = vmatprep.subr.mxu0 0.0
        %1459 = vmatpush1.msra.mxu0 0.0
        %1460 = vmatprep.subr.mxu0 0.0
        %1461 = vmatpush1.msra.mxu0 0.0
        %1462 = vmatprep.subr.mxu0 0.0
        %1463 = vmatpush1.msra.mxu0 0.0
        %1464 = vmatprep.subr.mxu0 0.0
        %1465 = vmatpush1.msra.mxu0 0.0
        %1466 = vmatprep.subr.mxu0 0.0
        %1467 = vmatpush1.msra.mxu0 0.0
        %1468 = vmatprep.subr.mxu0 0.0
        %1469 = vmatpush1.msra.mxu0 0.0
        %1470 = vmatprep.subr.mxu0 0.0
        %1471 = vmatpush1.msra.mxu0 0.0
        %1472 = vmatprep.subr.mxu0 0.0
        %1473 = vmatpush1.msra.mxu0 0.0
        %1474 = vmatprep.subr.mxu0 0.0
        %1475 = vmatpush1.msra.mxu0 0.0
        %1476 = vmatprep.mubr.f32.mxu0 0.0
        %1477 = vmatmul.mubr.f32.gmra.mrb[0].mxu0 %v1200
        %v1478 = vpop.f32.mrb[0].mxu0
        %v1479 = vadd.f32 %v1194, %v1478
        %v1480 = vpop.f32.mrb[0].mxu0
        %1481 = vdwg.mxu0
        %v1482 = vld [vmem:[#allocation2] sm:$0xff]
        %v1483 = vld [vmem:[#allocation2 + $0x8] sm:$0xff]
        %v1484 = vld [vmem:[#allocation2 + $0x10] sm:$0xff]
        %v1485 = vld [vmem:[#allocation2 + $0x18] sm:$0xff]
        %vm1486 = vcmask 130048
        %v1488 = vsel %vm1486, %v1482, 0
        %v1491 = vsel %vm1486, %v942, 0
        %1493 = vmatprep.subr.mxu0 0.0
        %1494 = vmatpush1.xpose.msra.mxu0 %v1491
        %1495 = vmatprep.subr.mxu0 0.0
        %1496 = vmatpush1.xpose.msra.mxu0 0.0
        %1497 = vmatprep.subr.mxu0 0.0
        %1498 = vmatpush1.xpose.msra.mxu0 0.0
        %1499 = vmatprep.subr.mxu0 0.0
        %1500 = vmatpush1.xpose.msra.mxu0 0.0
        %1501 = vmatprep.subr.mxu0 0.0
        %1502 = vmatpush1.xpose.msra.mxu0 0.0
        %1503 = vmatprep.subr.mxu0 0.0
        %1504 = vmatpush1.xpose.msra.mxu0 0.0
        %1505 = vmatprep.subr.mxu0 0.0
        %1506 = vmatpush1.xpose.msra.mxu0 0.0
        %1507 = vmatprep.subr.mxu0 0.0
        %1508 = vmatpush1.xpose.msra.mxu0 0.0
        %1509 = vmatprep.subr.mxu0 0.0
        %1510 = vmatpush1.xpose.msra.mxu0 0.0
        %1511 = vmatprep.subr.mxu0 0.0
        %1512 = vmatpush1.xpose.msra.mxu0 0.0
        %1513 = vmatprep.subr.mxu0 0.0
        %1514 = vmatpush1.xpose.msra.mxu0 0.0
        %1515 = vmatprep.subr.mxu0 0.0
        %1516 = vmatpush1.xpose.msra.mxu0 0.0
        %1517 = vmatprep.subr.mxu0 0.0
        %1518 = vmatpush1.xpose.msra.mxu0 0.0
        %1519 = vmatprep.subr.mxu0 0.0
        %1520 = vmatpush1.xpose.msra.mxu0 0.0
        %1521 = vmatprep.subr.mxu0 0.0
        %1522 = vmatpush1.xpose.msra.mxu0 0.0
        %1523 = vmatprep.subr.mxu0 0.0
        %1524 = vmatpush1.xpose.msra.mxu0 0.0
        %1525 = vmatprep.subr.mxu0 0.0
        %1526 = vmatpush1.xpose.msra.mxu0 0.0
        %1527 = vmatprep.subr.mxu0 0.0
        %1528 = vmatpush1.xpose.msra.mxu0 0.0
        %1529 = vmatprep.subr.mxu0 0.0
        %1530 = vmatpush1.xpose.msra.mxu0 0.0
        %1531 = vmatprep.subr.mxu0 0.0
        %1532 = vmatpush1.xpose.msra.mxu0 0.0
        %1533 = vmatprep.subr.mxu0 0.0
        %1534 = vmatpush1.xpose.msra.mxu0 0.0
        %1535 = vmatprep.subr.mxu0 0.0
        %1536 = vmatpush1.xpose.msra.mxu0 0.0
        %1537 = vmatprep.subr.mxu0 0.0
        %1538 = vmatpush1.xpose.msra.mxu0 0.0
        %1539 = vmatprep.subr.mxu0 0.0
        %1540 = vmatpush1.xpose.msra.mxu0 0.0
        %1541 = vmatprep.subr.mxu0 0.0
        %1542 = vmatpush1.xpose.msra.mxu0 0.0
        %1543 = vmatprep.subr.mxu0 0.0
        %1544 = vmatpush1.xpose.msra.mxu0 0.0
        %1545 = vmatprep.subr.mxu0 0.0
        %1546 = vmatpush1.xpose.msra.mxu0 0.0
        %1547 = vmatprep.subr.mxu0 0.0
        %1548 = vmatpush1.xpose.msra.mxu0 0.0
        %1549 = vmatprep.subr.mxu0 0.0
        %1550 = vmatpush1.xpose.msra.mxu0 0.0
        %1551 = vmatprep.subr.mxu0 0.0
        %1552 = vmatpush1.xpose.msra.mxu0 0.0
        %1553 = vmatprep.subr.mxu0 0.0
        %1554 = vmatpush1.xpose.msra.mxu0 0.0
        %1555 = vmatprep.subr.mxu0 0.0
        %1556 = vmatpush1.xpose.msra.mxu0 0.0
        %1557 = vmatprep.mubr.f32.mxu0 0.0
        %1558 = vmatmul.mubr.f32.gmra.mrb[0].mxu0 %v1488
        %v1559 = vpop.f32.mrb[0].mxu0
        %v1560 = vadd.f32 0.0, %v1559
        %v1561 = vpop.f32.mrb[0].mxu0
        %1562 = vdwg.mxu0
        %v1564 = vsel %vm1486, %v1483, 0
        %v1567 = vsel %vm1486, %v1012, 0
        %1569 = vmatprep.subr.mxu0 0.0
        %1570 = vmatpush1.xpose.msra.mxu0 %v1567
        %1571 = vmatprep.subr.mxu0 0.0
        %1572 = vmatpush1.xpose.msra.mxu0 0.0
        %1573 = vmatprep.subr.mxu0 0.0
        %1574 = vmatpush1.xpose.msra.mxu0 0.0
        %1575 = vmatprep.subr.mxu0 0.0
        %1576 = vmatpush1.xpose.msra.mxu0 0.0
        %1577 = vmatprep.subr.mxu0 0.0
        %1578 = vmatpush1.xpose.msra.mxu0 0.0
        %1579 = vmatprep.subr.mxu0 0.0
        %1580 = vmatpush1.xpose.msra.mxu0 0.0
        %1581 = vmatprep.subr.mxu0 0.0
        %1582 = vmatpush1.xpose.msra.mxu0 0.0
        %1583 = vmatprep.subr.mxu0 0.0
        %1584 = vmatpush1.xpose.msra.mxu0 0.0
        %1585 = vmatprep.subr.mxu0 0.0
        %1586 = vmatpush1.xpose.msra.mxu0 0.0
        %1587 = vmatprep.subr.mxu0 0.0
        %1588 = vmatpush1.xpose.msra.mxu0 0.0
        %1589 = vmatprep.subr.mxu0 0.0
        %1590 = vmatpush1.xpose.msra.mxu0 0.0
        %1591 = vmatprep.subr.mxu0 0.0
        %1592 = vmatpush1.xpose.msra.mxu0 0.0
        %1593 = vmatprep.subr.mxu0 0.0
        %1594 = vmatpush1.xpose.msra.mxu0 0.0
        %1595 = vmatprep.subr.mxu0 0.0
        %1596 = vmatpush1.xpose.msra.mxu0 0.0
        %1597 = vmatprep.subr.mxu0 0.0
        %1598 = vmatpush1.xpose.msra.mxu0 0.0
        %1599 = vmatprep.subr.mxu0 0.0
        %1600 = vmatpush1.xpose.msra.mxu0 0.0
        %1601 = vmatprep.subr.mxu0 0.0
        %1602 = vmatpush1.xpose.msra.mxu0 0.0
        %1603 = vmatprep.subr.mxu0 0.0
        %1604 = vmatpush1.xpose.msra.mxu0 0.0
        %1605 = vmatprep.subr.mxu0 0.0
        %1606 = vmatpush1.xpose.msra.mxu0 0.0
        %1607 = vmatprep.subr.mxu0 0.0
        %1608 = vmatpush1.xpose.msra.mxu0 0.0
        %1609 = vmatprep.subr.mxu0 0.0
        %1610 = vmatpush1.xpose.msra.mxu0 0.0
        %1611 = vmatprep.subr.mxu0 0.0
        %1612 = vmatpush1.xpose.msra.mxu0 0.0
        %1613 = vmatprep.subr.mxu0 0.0
        %1614 = vmatpush1.xpose.msra.mxu0 0.0
        %1615 = vmatprep.subr.mxu0 0.0
        %1616 = vmatpush1.xpose.msra.mxu0 0.0
        %1617 = vmatprep.subr.mxu0 0.0
        %1618 = vmatpush1.xpose.msra.mxu0 0.0
        %1619 = vmatprep.subr.mxu0 0.0
        %1620 = vmatpush1.xpose.msra.mxu0 0.0
        %1621 = vmatprep.subr.mxu0 0.0
        %1622 = vmatpush1.xpose.msra.mxu0 0.0
        %1623 = vmatprep.subr.mxu0 0.0
        %1624 = vmatpush1.xpose.msra.mxu0 0.0
        %1625 = vmatprep.subr.mxu0 0.0
        %1626 = vmatpush1.xpose.msra.mxu0 0.0
        %1627 = vmatprep.subr.mxu0 0.0
        %1628 = vmatpush1.xpose.msra.mxu0 0.0
        %1629 = vmatprep.subr.mxu0 0.0
        %1630 = vmatpush1.xpose.msra.mxu0 0.0
        %1631 = vmatprep.subr.mxu0 0.0
        %1632 = vmatpush1.xpose.msra.mxu0 0.0
        %1633 = vmatprep.mubr.f32.mxu0 0.0
        %1634 = vmatmul.mubr.f32.gmra.mrb[0].mxu0 %v1564
        %v1635 = vpop.f32.mrb[0].mxu0
        %v1636 = vadd.f32 0.0, %v1635
        %v1637 = vpop.f32.mrb[0].mxu0
        %1638 = vdwg.mxu0
        %v1640 = vsel %vm1486, %v1484, 0
        %v1643 = vsel %vm1486, %v1082, 0
        %1645 = vmatprep.subr.mxu0 0.0
        %1646 = vmatpush1.xpose.msra.mxu0 %v1643
        %1647 = vmatprep.subr.mxu0 0.0
        %1648 = vmatpush1.xpose.msra.mxu0 0.0
        %1649 = vmatprep.subr.mxu0 0.0
        %1650 = vmatpush1.xpose.msra.mxu0 0.0
        %1651 = vmatprep.subr.mxu0 0.0
        %1652 = vmatpush1.xpose.msra.mxu0 0.0
        %1653 = vmatprep.subr.mxu0 0.0
        %1654 = vmatpush1.xpose.msra.mxu0 0.0
        %1655 = vmatprep.subr.mxu0 0.0
        %1656 = vmatpush1.xpose.msra.mxu0 0.0
        %1657 = vmatprep.subr.mxu0 0.0
        %1658 = vmatpush1.xpose.msra.mxu0 0.0
        %1659 = vmatprep.subr.mxu0 0.0
        %1660 = vmatpush1.xpose.msra.mxu0 0.0
        %1661 = vmatprep.subr.mxu0 0.0
        %1662 = vmatpush1.xpose.msra.mxu0 0.0
        %1663 = vmatprep.subr.mxu0 0.0
        %1664 = vmatpush1.xpose.msra.mxu0 0.0
        %1665 = vmatprep.subr.mxu0 0.0
        %1666 = vmatpush1.xpose.msra.mxu0 0.0
        %1667 = vmatprep.subr.mxu0 0.0
        %1668 = vmatpush1.xpose.msra.mxu0 0.0
        %1669 = vmatprep.subr.mxu0 0.0
        %1670 = vmatpush1.xpose.msra.mxu0 0.0
        %1671 = vmatprep.subr.mxu0 0.0
        %1672 = vmatpush1.xpose.msra.mxu0 0.0
        %1673 = vmatprep.subr.mxu0 0.0
        %1674 = vmatpush1.xpose.msra.mxu0 0.0
        %1675 = vmatprep.subr.mxu0 0.0
        %1676 = vmatpush1.xpose.msra.mxu0 0.0
        %1677 = vmatprep.subr.mxu0 0.0
        %1678 = vmatpush1.xpose.msra.mxu0 0.0
        %1679 = vmatprep.subr.mxu0 0.0
        %1680 = vmatpush1.xpose.msra.mxu0 0.0
        %1681 = vmatprep.subr.mxu0 0.0
        %1682 = vmatpush1.xpose.msra.mxu0 0.0
        %1683 = vmatprep.subr.mxu0 0.0
        %1684 = vmatpush1.xpose.msra.mxu0 0.0
        %1685 = vmatprep.subr.mxu0 0.0
        %1686 = vmatpush1.xpose.msra.mxu0 0.0
        %1687 = vmatprep.subr.mxu0 0.0
        %1688 = vmatpush1.xpose.msra.mxu0 0.0
        %1689 = vmatprep.subr.mxu0 0.0
        %1690 = vmatpush1.xpose.msra.mxu0 0.0
        %1691 = vmatprep.subr.mxu0 0.0
        %1692 = vmatpush1.xpose.msra.mxu0 0.0
        %1693 = vmatprep.subr.mxu0 0.0
        %1694 = vmatpush1.xpose.msra.mxu0 0.0
        %1695 = vmatprep.subr.mxu0 0.0
        %1696 = vmatpush1.xpose.msra.mxu0 0.0
        %1697 = vmatprep.subr.mxu0 0.0
        %1698 = vmatpush1.xpose.msra.mxu0 0.0
        %1699 = vmatprep.subr.mxu0 0.0
        %1700 = vmatpush1.xpose.msra.mxu0 0.0
        %1701 = vmatprep.subr.mxu0 0.0
        %1702 = vmatpush1.xpose.msra.mxu0 0.0
        %1703 = vmatprep.subr.mxu0 0.0
        %1704 = vmatpush1.xpose.msra.mxu0 0.0
        %1705 = vmatprep.subr.mxu0 0.0
        %1706 = vmatpush1.xpose.msra.mxu0 0.0
        %1707 = vmatprep.subr.mxu0 0.0
        %1708 = vmatpush1.xpose.msra.mxu0 0.0
        %1709 = vmatprep.mubr.f32.mxu0 0.0
        %1710 = vmatmul.mubr.f32.gmra.mrb[0].mxu0 %v1640
        %v1711 = vpop.f32.mrb[0].mxu0
        %v1712 = vadd.f32 0.0, %v1711
        %v1713 = vpop.f32.mrb[0].mxu0
        %1714 = vdwg.mxu0
        %v1716 = vsel %vm1486, %v1485, 0
        %v1719 = vsel %vm1486, %v1152, 0
        %1721 = vmatprep.subr.mxu0 0.0
        %1722 = vmatpush1.xpose.msra.mxu0 %v1719
        %1723 = vmatprep.subr.mxu0 0.0
        %1724 = vmatpush1.xpose.msra.mxu0 0.0
        %1725 = vmatprep.subr.mxu0 0.0
        %1726 = vmatpush1.xpose.msra.mxu0 0.0
        %1727 = vmatprep.subr.mxu0 0.0
        %1728 = vmatpush1.xpose.msra.mxu0 0.0
        %1729 = vmatprep.subr.mxu0 0.0
        %1730 = vmatpush1.xpose.msra.mxu0 0.0
        %1731 = vmatprep.subr.mxu0 0.0
        %1732 = vmatpush1.xpose.msra.mxu0 0.0
        %1733 = vmatprep.subr.mxu0 0.0
        %1734 = vmatpush1.xpose.msra.mxu0 0.0
        %1735 = vmatprep.subr.mxu0 0.0
        %1736 = vmatpush1.xpose.msra.mxu0 0.0
        %1737 = vmatprep.subr.mxu0 0.0
        %1738 = vmatpush1.xpose.msra.mxu0 0.0
        %1739 = vmatprep.subr.mxu0 0.0
        %1740 = vmatpush1.xpose.msra.mxu0 0.0
        %1741 = vmatprep.subr.mxu0 0.0
        %1742 = vmatpush1.xpose.msra.mxu0 0.0
        %1743 = vmatprep.subr.mxu0 0.0
        %1744 = vmatpush1.xpose.msra.mxu0 0.0
        %1745 = vmatprep.subr.mxu0 0.0
        %1746 = vmatpush1.xpose.msra.mxu0 0.0
        %1747 = vmatprep.subr.mxu0 0.0
        %1748 = vmatpush1.xpose.msra.mxu0 0.0
        %1749 = vmatprep.subr.mxu0 0.0
        %1750 = vmatpush1.xpose.msra.mxu0 0.0
        %1751 = vmatprep.subr.mxu0 0.0
        %1752 = vmatpush1.xpose.msra.mxu0 0.0
        %1753 = vmatprep.subr.mxu0 0.0
        %1754 = vmatpush1.xpose.msra.mxu0 0.0
        %1755 = vmatprep.subr.mxu0 0.0
        %1756 = vmatpush1.xpose.msra.mxu0 0.0
        %1757 = vmatprep.subr.mxu0 0.0
        %1758 = vmatpush1.xpose.msra.mxu0 0.0
        %1759 = vmatprep.subr.mxu0 0.0
        %1760 = vmatpush1.xpose.msra.mxu0 0.0
        %1761 = vmatprep.subr.mxu0 0.0
        %1762 = vmatpush1.xpose.msra.mxu0 0.0
        %1763 = vmatprep.subr.mxu0 0.0
        %1764 = vmatpush1.xpose.msra.mxu0 0.0
        %1765 = vmatprep.subr.mxu0 0.0
        %1766 = vmatpush1.xpose.msra.mxu0 0.0
        %1767 = vmatprep.subr.mxu0 0.0
        %1768 = vmatpush1.xpose.msra.mxu0 0.0
        %1769 = vmatprep.subr.mxu0 0.0
        %1770 = vmatpush1.xpose.msra.mxu0 0.0
        %1771 = vmatprep.subr.mxu0 0.0
        %1772 = vmatpush1.xpose.msra.mxu0 0.0
        %1773 = vmatprep.subr.mxu0 0.0
        %1774 = vmatpush1.xpose.msra.mxu0 0.0
        %1775 = vmatprep.subr.mxu0 0.0
        %1776 = vmatpush1.xpose.msra.mxu0 0.0
        %1777 = vmatprep.subr.mxu0 0.0
        %1778 = vmatpush1.xpose.msra.mxu0 0.0
        %1779 = vmatprep.subr.mxu0 0.0
        %1780 = vmatpush1.xpose.msra.mxu0 0.0
        %1781 = vmatprep.subr.mxu0 0.0
        %1782 = vmatpush1.xpose.msra.mxu0 0.0
        %1783 = vmatprep.subr.mxu0 0.0
        %1784 = vmatpush1.xpose.msra.mxu0 0.0
        %1785 = vmatprep.mubr.f32.mxu0 0.0
        %1786 = vmatmul.mubr.f32.gmra.mrb[0].mxu0 %v1716
        %v1787 = vpop.f32.mrb[0].mxu0
        %v1788 = vadd.f32 0.0, %v1787
        %v1789 = vpop.f32.mrb[0].mxu0
        %1790 = vdwg.mxu0
        %v1791 = vld [vmem:[#allocation3] sm:$0xff]
        %v1792 = vld [vmem:[#allocation3 + $0x8] sm:$0xff]
        %v1793 = vld [vmem:[#allocation3 + $0x10] sm:$0xff]
        %v1794 = vld [vmem:[#allocation3 + $0x18] sm:$0xff]
        %vm1795 = vcmask 64512
        %v1796 = vsel %vm1795, %v1560, -inf
        %1797 = vmax.xlane.f32.xlu0 %v1796
        %v1798 = vpop.xlane.xlu0 %1797
        %v1799 = vsel %vm1795, %v1636, -inf
        %1800 = vmax.xlane.f32.xlu0 %v1799
        %v1801 = vpop.xlane.xlu0 %1800
        %v1802 = vsel %vm1795, %v1712, -inf
        %1803 = vmax.xlane.f32.xlu0 %v1802
        %v1804 = vpop.xlane.xlu0 %1803
        %v1805 = vsel %vm1795, %v1788, -inf
        %1806 = vmax.xlane.f32.xlu0 %v1805
        %v1807 = vpop.xlane.xlu0 %1806
        %v1808 = vmax.f32 %v1791, %v1798
        %v1809 = vmax.f32 %v1792, %v1801
        %v1810 = vmax.f32 %v1793, %v1804
        %v1811 = vmax.f32 %v1794, %v1807
        %v1812 = vsub.f32 %v1791, %v1808
        %v1813 = vsub.f32 %v1792, %v1809
        %v1814 = vsub.f32 %v1793, %v1810
        %v1815 = vsub.f32 %v1794, %v1811
        %v1816 = vmul.f32 %v1812, 1.442695
        %v1817 = vpow.pop %v1816
        %v1818 = vmul.f32 %v1813, 1.442695
        %v1819 = vpow.pop %v1818
        %v1820 = vmul.f32 %v1814, 1.442695
        %v1821 = vpow.pop %v1820
        %v1822 = vmul.f32 %v1815, 1.442695
        %v1823 = vpow.pop %v1822
        %1825 = vset.pattern.permute.xlu0 0
        %1826 = vperm.xlu0 %1825, %v1808
        %v1827 = vpop.permute.xlu0 %1826
        %1830 = vset.pattern.permute.xlu0 0
        %1831 = vperm.xlu0 %1830, %v1809
        %v1832 = vpop.permute.xlu0 %1831
        %1835 = vset.pattern.permute.xlu0 0
        %1836 = vperm.xlu0 %1835, %v1810
        %v1837 = vpop.permute.xlu0 %1836
        %1840 = vset.pattern.permute.xlu0 0
        %1841 = vperm.xlu0 %1840, %v1811
        %v1842 = vpop.permute.xlu0 %1841
        %v1844 = vsub.f32 %v1560, %v1827
        %v1845 = vsub.f32 %v1636, %v1832
        %v1846 = vsub.f32 %v1712, %v1837
        %v1847 = vsub.f32 %v1788, %v1842
        %v1848 = vmul.f32 %v1844, 1.442695
        %v1849 = vpow.pop %v1848
        %v1850 = vmul.f32 %v1845, 1.442695
        %v1851 = vpow.pop %v1850
        %v1852 = vmul.f32 %v1846, 1.442695
        %v1853 = vpow.pop %v1852
        %v1854 = vmul.f32 %v1847, 1.442695
        %v1855 = vpow.pop %v1854
        %v1856 = vld [vmem:[#allocation4] sm:$0xff]
        %v1857 = vld [vmem:[#allocation4 + $0x8] sm:$0xff]
        %v1858 = vld [vmem:[#allocation4 + $0x10] sm:$0xff]
        %v1859 = vld [vmem:[#allocation4 + $0x18] sm:$0xff]
        %v1860 = vmul.f32 %v1817, %v1856
        %v1861 = vmul.f32 %v1819, %v1857
        %v1862 = vmul.f32 %v1821, %v1858
        %v1863 = vmul.f32 %v1823, %v1859
        %v1864 = vsel %vm1795, %v1849, 0.0
        %1865 = vadd.xlane.f32.xlu0 %v1864
        %v1866 = vpop.xlane.xlu0 %1865
        %v1867 = vsel %vm1795, %v1851, 0.0
        %1868 = vadd.xlane.f32.xlu0 %v1867
        %v1869 = vpop.xlane.xlu0 %1868
        %v1870 = vsel %vm1795, %v1853, 0.0
        %1871 = vadd.xlane.f32.xlu0 %v1870
        %v1872 = vpop.xlane.xlu0 %1871
        %v1873 = vsel %vm1795, %v1855, 0.0
        %1874 = vadd.xlane.f32.xlu0 %v1873
        %v1875 = vpop.xlane.xlu0 %1874
        %v1876 = vadd.f32 %v1860, %v1866
        %v1877 = vadd.f32 %v1861, %v1869
        %v1878 = vadd.f32 %v1862, %v1872
        %v1879 = vadd.f32 %v1863, %v1875
        %vm1880 = vcmask 7168
        %1881 = vst.msk [vmem:[#allocation4] sm:$0xff] %vm1880, %v1876
        %1882 = vst.msk [vmem:[#allocation4 + $0x8] sm:$0xff] %vm1880, %v1877
        %1883 = vst.msk [vmem:[#allocation4 + $0x10] sm:$0xff] %vm1880, %v1878
        %1884 = vst.msk [vmem:[#allocation4 + $0x18] sm:$0xff] %vm1880, %v1879
        %v1885 = vld [vmem:[#allocation5] sm:$0xff]
        %v1886 = vld [vmem:[#allocation5 + $0x8] sm:$0xff]
        %v1887 = vld [vmem:[#allocation5 + $0x10] sm:$0xff]
        %v1888 = vld [vmem:[#allocation5 + $0x18] sm:$0xff]
        %1890 = vset.pattern.permute.xlu0 0
        %1891 = vperm.xlu0 %1890, %v1817
        %v1892 = vpop.permute.xlu0 %1891
        %1895 = vset.pattern.permute.xlu0 0
        %1896 = vperm.xlu0 %1895, %v1819
        %v1897 = vpop.permute.xlu0 %1896
        %1900 = vset.pattern.permute.xlu0 0
        %1901 = vperm.xlu0 %1900, %v1821
        %v1902 = vpop.permute.xlu0 %1901
        %1905 = vset.pattern.permute.xlu0 0
        %1906 = vperm.xlu0 %1905, %v1823
        %v1907 = vpop.permute.xlu0 %1906
        %v1909 = vmul.f32 %v1892, %v1885
        %v1910 = vmul.f32 %v1897, %v1886
        %v1911 = vmul.f32 %v1902, %v1887
        %v1912 = vmul.f32 %v1907, %v1888
        %v1914 = vsel %vm1795, %v1849, 0
        %1916 = vmatprep.subr.mxu0 0.0
        %1917 = vmatpush1.msra.mxu0 %v1269
        %1918 = vmatprep.subr.mxu0 0.0
        %1919 = vmatpush1.msra.mxu0 0.0
        %1920 = vmatprep.subr.mxu0 0.0
        %1921 = vmatpush1.msra.mxu0 0.0
        %1922 = vmatprep.subr.mxu0 0.0
        %1923 = vmatpush1.msra.mxu0 0.0
        %1924 = vmatprep.subr.mxu0 0.0
        %1925 = vmatpush1.msra.mxu0 0.0
        %1926 = vmatprep.subr.mxu0 0.0
        %1927 = vmatpush1.msra.mxu0 0.0
        %1928 = vmatprep.subr.mxu0 0.0
        %1929 = vmatpush1.msra.mxu0 0.0
        %1930 = vmatprep.subr.mxu0 0.0
        %1931 = vmatpush1.msra.mxu0 0.0
        %1932 = vmatprep.subr.mxu0 0.0
        %1933 = vmatpush1.msra.mxu0 0.0
        %1934 = vmatprep.subr.mxu0 0.0
        %1935 = vmatpush1.msra.mxu0 0.0
        %1936 = vmatprep.subr.mxu0 0.0
        %1937 = vmatpush1.msra.mxu0 0.0
        %1938 = vmatprep.subr.mxu0 0.0
        %1939 = vmatpush1.msra.mxu0 0.0
        %1940 = vmatprep.subr.mxu0 0.0
        %1941 = vmatpush1.msra.mxu0 0.0
        %1942 = vmatprep.subr.mxu0 0.0
        %1943 = vmatpush1.msra.mxu0 0.0
        %1944 = vmatprep.subr.mxu0 0.0
        %1945 = vmatpush1.msra.mxu0 0.0
        %1946 = vmatprep.subr.mxu0 0.0
        %1947 = vmatpush1.msra.mxu0 0.0
        %1948 = vmatprep.subr.mxu0 0.0
        %1949 = vmatpush1.msra.mxu0 0.0
        %1950 = vmatprep.subr.mxu0 0.0
        %1951 = vmatpush1.msra.mxu0 0.0
        %1952 = vmatprep.subr.mxu0 0.0
        %1953 = vmatpush1.msra.mxu0 0.0
        %1954 = vmatprep.subr.mxu0 0.0
        %1955 = vmatpush1.msra.mxu0 0.0
        %1956 = vmatprep.subr.mxu0 0.0
        %1957 = vmatpush1.msra.mxu0 0.0
        %1958 = vmatprep.subr.mxu0 0.0
        %1959 = vmatpush1.msra.mxu0 0.0
        %1960 = vmatprep.subr.mxu0 0.0
        %1961 = vmatpush1.msra.mxu0 0.0
        %1962 = vmatprep.subr.mxu0 0.0
        %1963 = vmatpush1.msra.mxu0 0.0
        %1964 = vmatprep.subr.mxu0 0.0
        %1965 = vmatpush1.msra.mxu0 0.0
        %1966 = vmatprep.subr.mxu0 0.0
        %1967 = vmatpush1.msra.mxu0 0.0
        %1968 = vmatprep.subr.mxu0 0.0
        %1969 = vmatpush1.msra.mxu0 0.0
        %1970 = vmatprep.subr.mxu0 0.0
        %1971 = vmatpush1.msra.mxu0 0.0
        %1972 = vmatprep.subr.mxu0 0.0
        %1973 = vmatpush1.msra.mxu0 0.0
        %1974 = vmatprep.subr.mxu0 0.0
        %1975 = vmatpush1.msra.mxu0 0.0
        %1976 = vmatprep.subr.mxu0 0.0
        %1977 = vmatpush1.msra.mxu0 0.0
        %1978 = vmatprep.subr.mxu0 0.0
        %1979 = vmatpush1.msra.mxu0 0.0
        %1980 = vmatprep.mubr.f32.mxu0 0.0
        %1981 = vmatmul.mubr.f32.gmra.mrb[0].mxu0 %v1914
        %v1982 = vpop.f32.mrb[0].mxu0
        %v1983 = vadd.f32 0.0, %v1982
        %v1984 = vpop.f32.mrb[0].mxu0
        %1985 = vdwg.mxu0
        %v1987 = vsel %vm1795, %v1851, 0
        %1989 = vmatprep.subr.mxu0 0.0
        %1990 = vmatpush1.msra.mxu0 %v1339
        %1991 = vmatprep.subr.mxu0 0.0
        %1992 = vmatpush1.msra.mxu0 0.0
        %1993 = vmatprep.subr.mxu0 0.0
        %1994 = vmatpush1.msra.mxu0 0.0
        %1995 = vmatprep.subr.mxu0 0.0
        %1996 = vmatpush1.msra.mxu0 0.0
        %1997 = vmatprep.subr.mxu0 0.0
        %1998 = vmatpush1.msra.mxu0 0.0
        %1999 = vmatprep.subr.mxu0 0.0
        %2000 = vmatpush1.msra.mxu0 0.0
        %2001 = vmatprep.subr.mxu0 0.0
        %2002 = vmatpush1.msra.mxu0 0.0
        %2003 = vmatprep.subr.mxu0 0.0
        %2004 = vmatpush1.msra.mxu0 0.0
        %2005 = vmatprep.subr.mxu0 0.0
        %2006 = vmatpush1.msra.mxu0 0.0
        %2007 = vmatprep.subr.mxu0 0.0
        %2008 = vmatpush1.msra.mxu0 0.0
        %2009 = vmatprep.subr.mxu0 0.0
        %2010 = vmatpush1.msra.mxu0 0.0
        %2011 = vmatprep.subr.mxu0 0.0
        %2012 = vmatpush1.msra.mxu0 0.0
        %2013 = vmatprep.subr.mxu0 0.0
        %2014 = vmatpush1.msra.mxu0 0.0
        %2015 = vmatprep.subr.mxu0 0.0
        %2016 = vmatpush1.msra.mxu0 0.0
        %2017 = vmatprep.subr.mxu0 0.0
        %2018 = vmatpush1.msra.mxu0 0.0
        %2019 = vmatprep.subr.mxu0 0.0
        %2020 = vmatpush1.msra.mxu0 0.0
        %2021 = vmatprep.subr.mxu0 0.0
        %2022 = vmatpush1.msra.mxu0 0.0
        %2023 = vmatprep.subr.mxu0 0.0
        %2024 = vmatpush1.msra.mxu0 0.0
        %2025 = vmatprep.subr.mxu0 0.0
        %2026 = vmatpush1.msra.mxu0 0.0
        %2027 = vmatprep.subr.mxu0 0.0
        %2028 = vmatpush1.msra.mxu0 0.0
        %2029 = vmatprep.subr.mxu0 0.0
        %2030 = vmatpush1.msra.mxu0 0.0
        %2031 = vmatprep.subr.mxu0 0.0
        %2032 = vmatpush1.msra.mxu0 0.0
        %2033 = vmatprep.subr.mxu0 0.0
        %2034 = vmatpush1.msra.mxu0 0.0
        %2035 = vmatprep.subr.mxu0 0.0
        %2036 = vmatpush1.msra.mxu0 0.0
        %2037 = vmatprep.subr.mxu0 0.0
        %2038 = vmatpush1.msra.mxu0 0.0
        %2039 = vmatprep.subr.mxu0 0.0
        %2040 = vmatpush1.msra.mxu0 0.0
        %2041 = vmatprep.subr.mxu0 0.0
        %2042 = vmatpush1.msra.mxu0 0.0
        %2043 = vmatprep.subr.mxu0 0.0
        %2044 = vmatpush1.msra.mxu0 0.0
        %2045 = vmatprep.subr.mxu0 0.0
        %2046 = vmatpush1.msra.mxu0 0.0
        %2047 = vmatprep.subr.mxu0 0.0
        %2048 = vmatpush1.msra.mxu0 0.0
        %2049 = vmatprep.subr.mxu0 0.0
        %2050 = vmatpush1.msra.mxu0 0.0
        %2051 = vmatprep.subr.mxu0 0.0
        %2052 = vmatpush1.msra.mxu0 0.0
        %2053 = vmatprep.mubr.f32.mxu0 0.0
        %2054 = vmatmul.mubr.f32.gmra.mrb[0].mxu0 %v1987
        %v2055 = vpop.f32.mrb[0].mxu0
        %v2056 = vadd.f32 0.0, %v2055
        %v2057 = vpop.f32.mrb[0].mxu0
        %2058 = vdwg.mxu0
        %v2060 = vsel %vm1795, %v1853, 0
        %2062 = vmatprep.subr.mxu0 0.0
        %2063 = vmatpush1.msra.mxu0 %v1409
        %2064 = vmatprep.subr.mxu0 0.0
        %2065 = vmatpush1.msra.mxu0 0.0
        %2066 = vmatprep.subr.mxu0 0.0
        %2067 = vmatpush1.msra.mxu0 0.0
        %2068 = vmatprep.subr.mxu0 0.0
        %2069 = vmatpush1.msra.mxu0 0.0
        %2070 = vmatprep.subr.mxu0 0.0
        %2071 = vmatpush1.msra.mxu0 0.0
        %2072 = vmatprep.subr.mxu0 0.0
        %2073 = vmatpush1.msra.mxu0 0.0
        %2074 = vmatprep.subr.mxu0 0.0
        %2075 = vmatpush1.msra.mxu0 0.0
        %2076 = vmatprep.subr.mxu0 0.0
        %2077 = vmatpush1.msra.mxu0 0.0
        %2078 = vmatprep.subr.mxu0 0.0
        %2079 = vmatpush1.msra.mxu0 0.0
        %2080 = vmatprep.subr.mxu0 0.0
        %2081 = vmatpush1.msra.mxu0 0.0
        %2082 = vmatprep.subr.mxu0 0.0
        %2083 = vmatpush1.msra.mxu0 0.0
        %2084 = vmatprep.subr.mxu0 0.0
        %2085 = vmatpush1.msra.mxu0 0.0
        %2086 = vmatprep.subr.mxu0 0.0
        %2087 = vmatpush1.msra.mxu0 0.0
        %2088 = vmatprep.subr.mxu0 0.0
        %2089 = vmatpush1.msra.mxu0 0.0
        %2090 = vmatprep.subr.mxu0 0.0
        %2091 = vmatpush1.msra.mxu0 0.0
        %2092 = vmatprep.subr.mxu0 0.0
        %2093 = vmatpush1.msra.mxu0 0.0
        %2094 = vmatprep.subr.mxu0 0.0
        %2095 = vmatpush1.msra.mxu0 0.0
        %2096 = vmatprep.subr.mxu0 0.0
        %2097 = vmatpush1.msra.mxu0 0.0
        %2098 = vmatprep.subr.mxu0 0.0
        %2099 = vmatpush1.msra.mxu0 0.0
        %2100 = vmatprep.subr.mxu0 0.0
        %2101 = vmatpush1.msra.mxu0 0.0
        %2102 = vmatprep.subr.mxu0 0.0
        %2103 = vmatpush1.msra.mxu0 0.0
        %2104 = vmatprep.subr.mxu0 0.0
        %2105 = vmatpush1.msra.mxu0 0.0
        %2106 = vmatprep.subr.mxu0 0.0
        %2107 = vmatpush1.msra.mxu0 0.0
        %2108 = vmatprep.subr.mxu0 0.0
        %2109 = vmatpush1.msra.mxu0 0.0
        %2110 = vmatprep.subr.mxu0 0.0
        %2111 = vmatpush1.msra.mxu0 0.0
        %2112 = vmatprep.subr.mxu0 0.0
        %2113 = vmatpush1.msra.mxu0 0.0
        %2114 = vmatprep.subr.mxu0 0.0
        %2115 = vmatpush1.msra.mxu0 0.0
        %2116 = vmatprep.subr.mxu0 0.0
        %2117 = vmatpush1.msra.mxu0 0.0
        %2118 = vmatprep.subr.mxu0 0.0
        %2119 = vmatpush1.msra.mxu0 0.0
        %2120 = vmatprep.subr.mxu0 0.0
        %2121 = vmatpush1.msra.mxu0 0.0
        %2122 = vmatprep.subr.mxu0 0.0
        %2123 = vmatpush1.msra.mxu0 0.0
        %2124 = vmatprep.subr.mxu0 0.0
        %2125 = vmatpush1.msra.mxu0 0.0
        %2126 = vmatprep.mubr.f32.mxu0 0.0
        %2127 = vmatmul.mubr.f32.gmra.mrb[0].mxu0 %v2060
        %v2128 = vpop.f32.mrb[0].mxu0
        %v2129 = vadd.f32 0.0, %v2128
        %v2130 = vpop.f32.mrb[0].mxu0
        %2131 = vdwg.mxu0
        %v2133 = vsel %vm1795, %v1855, 0
        %2135 = vmatprep.subr.mxu0 0.0
        %2136 = vmatpush1.msra.mxu0 %v1479
        %2137 = vmatprep.subr.mxu0 0.0
        %2138 = vmatpush1.msra.mxu0 0.0
        %2139 = vmatprep.subr.mxu0 0.0
        %2140 = vmatpush1.msra.mxu0 0.0
        %2141 = vmatprep.subr.mxu0 0.0
        %2142 = vmatpush1.msra.mxu0 0.0
        %2143 = vmatprep.subr.mxu0 0.0
        %2144 = vmatpush1.msra.mxu0 0.0
        %2145 = vmatprep.subr.mxu0 0.0
        %2146 = vmatpush1.msra.mxu0 0.0
        %2147 = vmatprep.subr.mxu0 0.0
        %2148 = vmatpush1.msra.mxu0 0.0
        %2149 = vmatprep.subr.mxu0 0.0
        %2150 = vmatpush1.msra.mxu0 0.0
        %2151 = vmatprep.subr.mxu0 0.0
        %2152 = vmatpush1.msra.mxu0 0.0
        %2153 = vmatprep.subr.mxu0 0.0
        %2154 = vmatpush1.msra.mxu0 0.0
        %2155 = vmatprep.subr.mxu0 0.0
        %2156 = vmatpush1.msra.mxu0 0.0
        %2157 = vmatprep.subr.mxu0 0.0
        %2158 = vmatpush1.msra.mxu0 0.0
        %2159 = vmatprep.subr.mxu0 0.0
        %2160 = vmatpush1.msra.mxu0 0.0
        %2161 = vmatprep.subr.mxu0 0.0
        %2162 = vmatpush1.msra.mxu0 0.0
        %2163 = vmatprep.subr.mxu0 0.0
        %2164 = vmatpush1.msra.mxu0 0.0
        %2165 = vmatprep.subr.mxu0 0.0
        %2166 = vmatpush1.msra.mxu0 0.0
        %2167 = vmatprep.subr.mxu0 0.0
        %2168 = vmatpush1.msra.mxu0 0.0
        %2169 = vmatprep.subr.mxu0 0.0
        %2170 = vmatpush1.msra.mxu0 0.0
        %2171 = vmatprep.subr.mxu0 0.0
        %2172 = vmatpush1.msra.mxu0 0.0
        %2173 = vmatprep.subr.mxu0 0.0
        %2174 = vmatpush1.msra.mxu0 0.0
        %2175 = vmatprep.subr.mxu0 0.0
        %2176 = vmatpush1.msra.mxu0 0.0
        %2177 = vmatprep.subr.mxu0 0.0
        %2178 = vmatpush1.msra.mxu0 0.0
        %2179 = vmatprep.subr.mxu0 0.0
        %2180 = vmatpush1.msra.mxu0 0.0
        %2181 = vmatprep.subr.mxu0 0.0
        %2182 = vmatpush1.msra.mxu0 0.0
        %2183 = vmatprep.subr.mxu0 0.0
        %2184 = vmatpush1.msra.mxu0 0.0
        %2185 = vmatprep.subr.mxu0 0.0
        %2186 = vmatpush1.msra.mxu0 0.0
        %2187 = vmatprep.subr.mxu0 0.0
        %2188 = vmatpush1.msra.mxu0 0.0
        %2189 = vmatprep.subr.mxu0 0.0
        %2190 = vmatpush1.msra.mxu0 0.0
        %2191 = vmatprep.subr.mxu0 0.0
        %2192 = vmatpush1.msra.mxu0 0.0
        %2193 = vmatprep.subr.mxu0 0.0
        %2194 = vmatpush1.msra.mxu0 0.0
        %2195 = vmatprep.subr.mxu0 0.0
        %2196 = vmatpush1.msra.mxu0 0.0
        %2197 = vmatprep.subr.mxu0 0.0
        %2198 = vmatpush1.msra.mxu0 0.0
        %2199 = vmatprep.mubr.f32.mxu0 0.0
        %2200 = vmatmul.mubr.f32.gmra.mrb[0].mxu0 %v2133
        %v2201 = vpop.f32.mrb[0].mxu0
        %v2202 = vadd.f32 0.0, %v2201
        %v2203 = vpop.f32.mrb[0].mxu0
        %2204 = vdwg.mxu0
        %v2205 = vadd.f32 %v1909, %v1983
        %v2206 = vadd.f32 %v1910, %v2056
        %v2207 = vadd.f32 %v1911, %v2129
        %v2208 = vadd.f32 %v1912, %v2202
        %2209 = vst.msk [vmem:[#allocation5] sm:$0xff] %vm1486, %v2205
        %2210 = vst.msk [vmem:[#allocation5 + $0x8] sm:$0xff] %vm1486, %v2206
        %2211 = vst.msk [vmem:[#allocation5 + $0x10] sm:$0xff] %vm1486, %v2207
        %2212 = vst.msk [vmem:[#allocation5 + $0x18] sm:$0xff] %vm1486, %v2208
        %2213 = vst.msk [vmem:[#allocation3] sm:$0xff] %vm1880, %v1808
        %2214 = vst.msk [vmem:[#allocation3 + $0x8] sm:$0xff] %vm1880, %v1809
        %2215 = vst.msk [vmem:[#allocation3 + $0x10] sm:$0xff] %vm1880, %v1810
        %2216 = vst.msk [vmem:[#allocation3 + $0x18] sm:$0xff] %vm1880, %v1811
        // Predicated region
        $region69: #{tpu_custom_call.1} parent=63 // pred_check
          %p2217 = pneg %p470
        $region70: #{tpu_custom_call.1} parent=63 // pred_check_branch
          %2219 = sbr.rel (%p2217) target = $region72
        $region71: #{tpu_custom_call.1} parent=63 // pred_region
          %v2220 = vld [vmem:[#allocation5] sm:$0xff]
          %v2221 = vld [vmem:[#allocation5 + $0x8] sm:$0xff]
          %v2222 = vld [vmem:[#allocation5 + $0x10] sm:$0xff]
          %v2223 = vld [vmem:[#allocation5 + $0x18] sm:$0xff]
          %v2224 = vld [vmem:[#allocation4] sm:$0xff]
          %v2225 = vld [vmem:[#allocation4 + $0x8] sm:$0xff]
          %v2226 = vld [vmem:[#allocation4 + $0x10] sm:$0xff]
          %v2227 = vld [vmem:[#allocation4 + $0x18] sm:$0xff]
          %v2228 = vrcp.pop %v2224
          %v2229 = vrcp.pop %v2225
          %v2230 = vrcp.pop %v2226
          %v2231 = vrcp.pop %v2227
          %2233 = vset.pattern.permute.xlu0 0
          %2234 = vperm.xlu0 %2233, %v2228
          %v2235 = vpop.permute.xlu0 %2234
          %2238 = vset.pattern.permute.xlu0 0
          %2239 = vperm.xlu0 %2238, %v2229
          %v2240 = vpop.permute.xlu0 %2239
          %2243 = vset.pattern.permute.xlu0 0
          %2244 = vperm.xlu0 %2243, %v2230
          %v2245 = vpop.permute.xlu0 %2244
          %2248 = vset.pattern.permute.xlu0 0
          %2249 = vperm.xlu0 %2248, %v2231
          %v2250 = vpop.permute.xlu0 %2249
          %v2252 = vmul.f32 %v2220, %v2235
          %v2253 = vmul.f32 %v2221, %v2240
          %v2254 = vmul.f32 %v2222, %v2245
          %v2255 = vmul.f32 %v2223, %v2250
          %v2256 = vld [vmem:[%s9] sm:$0xff]
          %v2257 = vld [vmem:[%s9 + $0x8] sm:$0xff]
          %v2258 = vld [vmem:[%s9 + $0x10] sm:$0xff]
          %v2259 = vld [vmem:[%s9 + $0x18] sm:$0xff]
          %v2260 = vld [vmem:[%s9 + $0x20] sm:$0xff]
          %v2261 = vld [vmem:[%s9 + $0x28] sm:$0xff]
          %v2262 = vld [vmem:[%s9 + $0x30] sm:$0xff]
          %v2263 = vld [vmem:[%s9 + $0x38] sm:$0xff]
          %v2265 = vsel %vm1486, %v2252, 0
          %2267 = vmatprep.subr.mxu0 0.0
          %2268 = vmatpush1.msra.mxu0 %v2256
          %2269 = vmatprep.subr.mxu0 0.0
          %2270 = vmatpush1.msra.mxu0 %v2257
          %2271 = vmatprep.subr.mxu0 0.0
          %2272 = vmatpush1.msra.mxu0 0.0
          %2273 = vmatprep.subr.mxu0 0.0
          %2274 = vmatpush1.msra.mxu0 0.0
          %2275 = vmatprep.subr.mxu0 0.0
          %2276 = vmatpush1.msra.mxu0 0.0
          %2277 = vmatprep.subr.mxu0 0.0
          %2278 = vmatpush1.msra.mxu0 0.0
          %2279 = vmatprep.subr.mxu0 0.0
          %2280 = vmatpush1.msra.mxu0 0.0
          %2281 = vmatprep.subr.mxu0 0.0
          %2282 = vmatpush1.msra.mxu0 0.0
          %2283 = vmatprep.subr.mxu0 0.0
          %2284 = vmatpush1.msra.mxu0 0.0
          %2285 = vmatprep.subr.mxu0 0.0
          %2286 = vmatpush1.msra.mxu0 0.0
          %2287 = vmatprep.subr.mxu0 0.0
          %2288 = vmatpush1.msra.mxu0 0.0
          %2289 = vmatprep.subr.mxu0 0.0
          %2290 = vmatpush1.msra.mxu0 0.0
          %2291 = vmatprep.subr.mxu0 0.0
          %2292 = vmatpush1.msra.mxu0 0.0
          %2293 = vmatprep.subr.mxu0 0.0
          %2294 = vmatpush1.msra.mxu0 0.0
          %2295 = vmatprep.subr.mxu0 0.0
          %2296 = vmatpush1.msra.mxu0 0.0
          %2297 = vmatprep.subr.mxu0 0.0
          %2298 = vmatpush1.msra.mxu0 0.0
          %2299 = vmatprep.subr.mxu0 0.0
          %2300 = vmatpush1.msra.mxu0 0.0
          %2301 = vmatprep.subr.mxu0 0.0
          %2302 = vmatpush1.msra.mxu0 0.0
          %2303 = vmatprep.subr.mxu0 0.0
          %2304 = vmatpush1.msra.mxu0 0.0
          %2305 = vmatprep.subr.mxu0 0.0
          %2306 = vmatpush1.msra.mxu0 0.0
          %2307 = vmatprep.subr.mxu0 0.0
          %2308 = vmatpush1.msra.mxu0 0.0
          %2309 = vmatprep.subr.mxu0 0.0
          %2310 = vmatpush1.msra.mxu0 0.0
          %2311 = vmatprep.subr.mxu0 0.0
          %2312 = vmatpush1.msra.mxu0 0.0
          %2313 = vmatprep.subr.mxu0 0.0
          %2314 = vmatpush1.msra.mxu0 0.0
          %2315 = vmatprep.subr.mxu0 0.0
          %2316 = vmatpush1.msra.mxu0 0.0
          %2317 = vmatprep.subr.mxu0 0.0
          %2318 = vmatpush1.msra.mxu0 0.0
          %2319 = vmatprep.subr.mxu0 0.0
          %2320 = vmatpush1.msra.mxu0 0.0
          %2321 = vmatprep.subr.mxu0 0.0
          %2322 = vmatpush1.msra.mxu0 0.0
          %2323 = vmatprep.subr.mxu0 0.0
          %2324 = vmatpush1.msra.mxu0 0.0
          %2325 = vmatprep.subr.mxu0 0.0
          %2326 = vmatpush1.msra.mxu0 0.0
          %2327 = vmatprep.subr.mxu0 0.0
          %2328 = vmatpush1.msra.mxu0 0.0
          %2329 = vmatprep.subr.mxu0 0.0
          %2330 = vmatpush1.msra.mxu0 0.0
          %2331 = vmatprep.mubr.f32.mxu0 0.0
          %2332 = vmatmul.mubr.f32.gmra.mrb[0].mxu0 %v2265
          %v2333 = vpop.f32.mrb[0].mxu0
          %v2334 = vadd.f32 0.0, %v2333
          %v2335 = vpop.f32.mrb[0].mxu0
          %2336 = vdwg.mxu0
          %v2338 = vsel %vm1486, %v2253, 0
          %2340 = vmatprep.subr.mxu0 0.0
          %2341 = vmatpush1.msra.mxu0 %v2258
          %2342 = vmatprep.subr.mxu0 0.0
          %2343 = vmatpush1.msra.mxu0 %v2259
          %2344 = vmatprep.subr.mxu0 0.0
          %2345 = vmatpush1.msra.mxu0 0.0
          %2346 = vmatprep.subr.mxu0 0.0
          %2347 = vmatpush1.msra.mxu0 0.0
          %2348 = vmatprep.subr.mxu0 0.0
          %2349 = vmatpush1.msra.mxu0 0.0
          %2350 = vmatprep.subr.mxu0 0.0
          %2351 = vmatpush1.msra.mxu0 0.0
          %2352 = vmatprep.subr.mxu0 0.0
          %2353 = vmatpush1.msra.mxu0 0.0
          %2354 = vmatprep.subr.mxu0 0.0
          %2355 = vmatpush1.msra.mxu0 0.0
          %2356 = vmatprep.subr.mxu0 0.0
          %2357 = vmatpush1.msra.mxu0 0.0
          %2358 = vmatprep.subr.mxu0 0.0
          %2359 = vmatpush1.msra.mxu0 0.0
          %2360 = vmatprep.subr.mxu0 0.0
          %2361 = vmatpush1.msra.mxu0 0.0
          %2362 = vmatprep.subr.mxu0 0.0
          %2363 = vmatpush1.msra.mxu0 0.0
          %2364 = vmatprep.subr.mxu0 0.0
          %2365 = vmatpush1.msra.mxu0 0.0
          %2366 = vmatprep.subr.mxu0 0.0
          %2367 = vmatpush1.msra.mxu0 0.0
          %2368 = vmatprep.subr.mxu0 0.0
          %2369 = vmatpush1.msra.mxu0 0.0
          %2370 = vmatprep.subr.mxu0 0.0
          %2371 = vmatpush1.msra.mxu0 0.0
          %2372 = vmatprep.subr.mxu0 0.0
          %2373 = vmatpush1.msra.mxu0 0.0
          %2374 = vmatprep.subr.mxu0 0.0
          %2375 = vmatpush1.msra.mxu0 0.0
          %2376 = vmatprep.subr.mxu0 0.0
          %2377 = vmatpush1.msra.mxu0 0.0
          %2378 = vmatprep.subr.mxu0 0.0
          %2379 = vmatpush1.msra.mxu0 0.0
          %2380 = vmatprep.subr.mxu0 0.0
          %2381 = vmatpush1.msra.mxu0 0.0
          %2382 = vmatprep.subr.mxu0 0.0
          %2383 = vmatpush1.msra.mxu0 0.0
          %2384 = vmatprep.subr.mxu0 0.0
          %2385 = vmatpush1.msra.mxu0 0.0
          %2386 = vmatprep.subr.mxu0 0.0
          %2387 = vmatpush1.msra.mxu0 0.0
          %2388 = vmatprep.subr.mxu0 0.0
          %2389 = vmatpush1.msra.mxu0 0.0
          %2390 = vmatprep.subr.mxu0 0.0
          %2391 = vmatpush1.msra.mxu0 0.0
          %2392 = vmatprep.subr.mxu0 0.0
          %2393 = vmatpush1.msra.mxu0 0.0
          %2394 = vmatprep.subr.mxu0 0.0
          %2395 = vmatpush1.msra.mxu0 0.0
          %2396 = vmatprep.subr.mxu0 0.0
          %2397 = vmatpush1.msra.mxu0 0.0
          %2398 = vmatprep.subr.mxu0 0.0
          %2399 = vmatpush1.msra.mxu0 0.0
          %2400 = vmatprep.subr.mxu0 0.0
          %2401 = vmatpush1.msra.mxu0 0.0
          %2402 = vmatprep.subr.mxu0 0.0
          %2403 = vmatpush1.msra.mxu0 0.0
          %2404 = vmatprep.mubr.f32.mxu0 0.0
          %2405 = vmatmul.mubr.f32.gmra.mrb[0].mxu0 %v2338
          %v2406 = vpop.f32.mrb[0].mxu0
          %v2407 = vadd.f32 0.0, %v2406
          %v2408 = vpop.f32.mrb[0].mxu0
          %2409 = vdwg.mxu0
          %v2411 = vsel %vm1486, %v2254, 0
          %2413 = vmatprep.subr.mxu0 0.0
          %2414 = vmatpush1.msra.mxu0 %v2260
          %2415 = vmatprep.subr.mxu0 0.0
          %2416 = vmatpush1.msra.mxu0 %v2261
          %2417 = vmatprep.subr.mxu0 0.0
          %2418 = vmatpush1.msra.mxu0 0.0
          %2419 = vmatprep.subr.mxu0 0.0
          %2420 = vmatpush1.msra.mxu0 0.0
          %2421 = vmatprep.subr.mxu0 0.0
          %2422 = vmatpush1.msra.mxu0 0.0
          %2423 = vmatprep.subr.mxu0 0.0
          %2424 = vmatpush1.msra.mxu0 0.0
          %2425 = vmatprep.subr.mxu0 0.0
          %2426 = vmatpush1.msra.mxu0 0.0
          %2427 = vmatprep.subr.mxu0 0.0
          %2428 = vmatpush1.msra.mxu0 0.0
          %2429 = vmatprep.subr.mxu0 0.0
          %2430 = vmatpush1.msra.mxu0 0.0
          %2431 = vmatprep.subr.mxu0 0.0
          %2432 = vmatpush1.msra.mxu0 0.0
          %2433 = vmatprep.subr.mxu0 0.0
          %2434 = vmatpush1.msra.mxu0 0.0
          %2435 = vmatprep.subr.mxu0 0.0
          %2436 = vmatpush1.msra.mxu0 0.0
          %2437 = vmatprep.subr.mxu0 0.0
          %2438 = vmatpush1.msra.mxu0 0.0
          %2439 = vmatprep.subr.mxu0 0.0
          %2440 = vmatpush1.msra.mxu0 0.0
          %2441 = vmatprep.subr.mxu0 0.0
          %2442 = vmatpush1.msra.mxu0 0.0
          %2443 = vmatprep.subr.mxu0 0.0
          %2444 = vmatpush1.msra.mxu0 0.0
          %2445 = vmatprep.subr.mxu0 0.0
          %2446 = vmatpush1.msra.mxu0 0.0
          %2447 = vmatprep.subr.mxu0 0.0
          %2448 = vmatpush1.msra.mxu0 0.0
          %2449 = vmatprep.subr.mxu0 0.0
          %2450 = vmatpush1.msra.mxu0 0.0
          %2451 = vmatprep.subr.mxu0 0.0
          %2452 = vmatpush1.msra.mxu0 0.0
          %2453 = vmatprep.subr.mxu0 0.0
          %2454 = vmatpush1.msra.mxu0 0.0
          %2455 = vmatprep.subr.mxu0 0.0
          %2456 = vmatpush1.msra.mxu0 0.0
          %2457 = vmatprep.subr.mxu0 0.0
          %2458 = vmatpush1.msra.mxu0 0.0
          %2459 = vmatprep.subr.mxu0 0.0
          %2460 = vmatpush1.msra.mxu0 0.0
          %2461 = vmatprep.subr.mxu0 0.0
          %2462 = vmatpush1.msra.mxu0 0.0
          %2463 = vmatprep.subr.mxu0 0.0
          %2464 = vmatpush1.msra.mxu0 0.0
          %2465 = vmatprep.subr.mxu0 0.0
          %2466 = vmatpush1.msra.mxu0 0.0
          %2467 = vmatprep.subr.mxu0 0.0
          %2468 = vmatpush1.msra.mxu0 0.0
          %2469 = vmatprep.subr.mxu0 0.0
          %2470 = vmatpush1.msra.mxu0 0.0
          %2471 = vmatprep.subr.mxu0 0.0
          %2472 = vmatpush1.msra.mxu0 0.0
          %2473 = vmatprep.subr.mxu0 0.0
          %2474 = vmatpush1.msra.mxu0 0.0
          %2475 = vmatprep.subr.mxu0 0.0
          %2476 = vmatpush1.msra.mxu0 0.0
          %2477 = vmatprep.mubr.f32.mxu0 0.0
          %2478 = vmatmul.mubr.f32.gmra.mrb[0].mxu0 %v2411
          %v2479 = vpop.f32.mrb[0].mxu0
          %v2480 = vadd.f32 0.0, %v2479
          %v2481 = vpop.f32.mrb[0].mxu0
          %2482 = vdwg.mxu0
          %v2484 = vsel %vm1486, %v2255, 0
          %2486 = vmatprep.subr.mxu0 0.0
          %2487 = vmatpush1.msra.mxu0 %v2262
          %2488 = vmatprep.subr.mxu0 0.0
          %2489 = vmatpush1.msra.mxu0 %v2263
          %2490 = vmatprep.subr.mxu0 0.0
          %2491 = vmatpush1.msra.mxu0 0.0
          %2492 = vmatprep.subr.mxu0 0.0
          %2493 = vmatpush1.msra.mxu0 0.0
          %2494 = vmatprep.subr.mxu0 0.0
          %2495 = vmatpush1.msra.mxu0 0.0
          %2496 = vmatprep.subr.mxu0 0.0
          %2497 = vmatpush1.msra.mxu0 0.0
          %2498 = vmatprep.subr.mxu0 0.0
          %2499 = vmatpush1.msra.mxu0 0.0
          %2500 = vmatprep.subr.mxu0 0.0
          %2501 = vmatpush1.msra.mxu0 0.0
          %2502 = vmatprep.subr.mxu0 0.0
          %2503 = vmatpush1.msra.mxu0 0.0
          %2504 = vmatprep.subr.mxu0 0.0
          %2505 = vmatpush1.msra.mxu0 0.0
          %2506 = vmatprep.subr.mxu0 0.0
          %2507 = vmatpush1.msra.mxu0 0.0
          %2508 = vmatprep.subr.mxu0 0.0
          %2509 = vmatpush1.msra.mxu0 0.0
          %2510 = vmatprep.subr.mxu0 0.0
          %2511 = vmatpush1.msra.mxu0 0.0
          %2512 = vmatprep.subr.mxu0 0.0
          %2513 = vmatpush1.msra.mxu0 0.0
          %2514 = vmatprep.subr.mxu0 0.0
          %2515 = vmatpush1.msra.mxu0 0.0
          %2516 = vmatprep.subr.mxu0 0.0
          %2517 = vmatpush1.msra.mxu0 0.0
          %2518 = vmatprep.subr.mxu0 0.0
          %2519 = vmatpush1.msra.mxu0 0.0
          %2520 = vmatprep.subr.mxu0 0.0
          %2521 = vmatpush1.msra.mxu0 0.0
          %2522 = vmatprep.subr.mxu0 0.0
          %2523 = vmatpush1.msra.mxu0 0.0
          %2524 = vmatprep.subr.mxu0 0.0
          %2525 = vmatpush1.msra.mxu0 0.0
          %2526 = vmatprep.subr.mxu0 0.0
          %2527 = vmatpush1.msra.mxu0 0.0
          %2528 = vmatprep.subr.mxu0 0.0
          %2529 = vmatpush1.msra.mxu0 0.0
          %2530 = vmatprep.subr.mxu0 0.0
          %2531 = vmatpush1.msra.mxu0 0.0
          %2532 = vmatprep.subr.mxu0 0.0
          %2533 = vmatpush1.msra.mxu0 0.0
          %2534 = vmatprep.subr.mxu0 0.0
          %2535 = vmatpush1.msra.mxu0 0.0
          %2536 = vmatprep.subr.mxu0 0.0
          %2537 = vmatpush1.msra.mxu0 0.0
          %2538 = vmatprep.subr.mxu0 0.0
          %2539 = vmatpush1.msra.mxu0 0.0
          %2540 = vmatprep.subr.mxu0 0.0
          %2541 = vmatpush1.msra.mxu0 0.0
          %2542 = vmatprep.subr.mxu0 0.0
          %2543 = vmatpush1.msra.mxu0 0.0
          %2544 = vmatprep.subr.mxu0 0.0
          %2545 = vmatpush1.msra.mxu0 0.0
          %2546 = vmatprep.subr.mxu0 0.0
          %2547 = vmatpush1.msra.mxu0 0.0
          %2548 = vmatprep.subr.mxu0 0.0
          %2549 = vmatpush1.msra.mxu0 0.0
          %2550 = vmatprep.mubr.f32.mxu0 0.0
          %2551 = vmatmul.mubr.f32.gmra.mrb[0].mxu0 %v2484
          %v2552 = vpop.f32.mrb[0].mxu0
          %v2553 = vadd.f32 0.0, %v2552
          %v2554 = vpop.f32.mrb[0].mxu0
          %2555 = vdwg.mxu0
          %v2556 = vsel %vm871, %v2334, 0.0
          %v2557 = vsel %vm871, %v2407, 0.0
          %v2558 = vadd.f32 %v2556, %v2557
          %v2559 = vsel %vm871, %v2480, 0.0
          %v2560 = vadd.f32 %v2558, %v2559
          %v2561 = vsel %vm871, %v2553, 0.0
          %v2562 = vadd.f32 %v2560, %v2561
          %v2563 = vld [vmem:[%s10] sm:$0x1]
          %v2565 = vlaneseq
          %v2566 = vshrl.u32 %v2565, 7
          %v2567 = vsub.s32 0, %v2566
          %v2568 = vrot.slane %v2563, %v2567
          %v2570 = vadd.f32 %v2562, %v2568
          %2571 = vst.msk [vmem:[%s448] sm:$0xff] %vm871, %v2570
        $region72: #{tpu_custom_call.1} parent=63 // pred_fallthru
          _
        %s2572 = sand.u32 %s306, 1
        %s2573 = scalar_lea.sflag [#allocation7], %s2572
        %s2574 = sand.u32 %s306, 1
        %s2575 = smul.addr %s2574, 8
        %s2576 = scalar_lea.vmem [#allocation6], %s2575
        // Predicated region
        $region73: #{tpu_custom_call.1} parent=63 // pred_check
          %p2577 = pneg %p316
        $region74: #{tpu_custom_call.1} parent=63 // pred_check_branch
          %2579 = sbr.rel (%p2577) target = $region76
        $region75: #{tpu_custom_call.1} parent=63 // pred_region
          %s2581 = ssub.s32 128, 128
          %2582 = vsyncadd %s2573, %s2581
          %s2583 = sadd.s32 %s31, %s30
          %s2584 = smul.addr %s2583, 128
          %s2585 = scalar_lea.hbm %s11, %s2584
          %s2587 = sshll.u32 %s2576, 4
          %s2588 = int_to_ptr.vmem [resolvable:$true] %s2587
          %2590 = dma.vmem_to_hbm [thread:$0]  %s2588, 128, %s2585, %s2573
        $region76: #{tpu_custom_call.1} parent=63 // pred_fallthru
          _
      $region64: #{tpu_custom_call.1} parent=5 // pred_fallthru
        _
      %p2591 = scmp.le.s32.totalorder 2, %s20
      // Predicated region
      $region77: #{tpu_custom_call.1} parent=5 // pred_check
        %p2592 = pneg %p2591
      $region78: #{tpu_custom_call.1} parent=5 // pred_check_branch
        %2594 = sbr.rel (%p2592) target = $region80
      $region79: #{tpu_custom_call.1} parent=5 // pred_region
        %s2595 = ssub.s32 %s20, 2
        // Predicated region
        $region81: #{tpu_custom_call.1} parent=79 // pred_check
          %p2596 = pneg %p322
        $region82: #{tpu_custom_call.1} parent=79 // pred_check_branch
          %2598 = sbr.rel (%p2596) target = $region84
        $region83: #{tpu_custom_call.1} parent=79 // pred_region
          %s2599 = sand.u32 %s307, 1
          %s2600 = scalar_lea.sflag [#allocation7], %s2599
          %s2601 = sand.u32 %s307, 1
          %s2602 = smul.addr %s2601, 8
          %s2603 = scalar_lea.vmem [#allocation6], %s2602
          %2604 = dma.done %s2600, 128
        $region84: #{tpu_custom_call.1} parent=79 // pred_fallthru
          _
      $region80: #{tpu_custom_call.1} parent=5 // pred_fallthru
        _
    $region6: #{tpu_custom_call.1} parent=1 // loop_footer
      %s24 = sadd.s32 1, %s20
    $region7: #{tpu_custom_call.1} parent=1 // loop_footer_branch
      %19 = sbr.rel target = $region3
    $region8: #{tpu_custom_call.1} parent=1 // loop_exit
      _
    %2605 = vsyncpa [#allocation7], 1
    %s2606 = scalar_lea.sflag [#allocation7], 1
    %2607 = vsyncpa %s2606, 1

// kernel: tpu_custom_call.1
$region0: #{tpu_custom_call.1}
  #allocation0 [shape = 'u32[]', space=smem, size = 0x4, offset = 0x4, fixed_abs, tag = 'smem constant byte address 0x4 - core index']
  #allocation1 [shape = 'u32[144,128]{1,0:T(1,128)}', space=vmem, size = 0x12000, scoped, tag = 'internal scratch']
  #allocation2 [shape = 'f32[4,8,16]{2,1,0:T(8,128)}', space=vmem, size = 0x4000, scoped, tag = 'scratch operand']
  #allocation3 [shape = 'f32[4,8,1]{2,1,0:T(8,128)}', space=vmem, size = 0x4000, scoped, tag = 'scratch operand']
  #allocation4 [shape = 'f32[4,8,1]{2,1,0:T(8,128)}', space=vmem, size = 0x4000, scoped, tag = 'scratch operand']
  #allocation5 [shape = 'f32[4,8,16]{2,1,0:T(8,128)}', space=vmem, size = 0x4000, scoped, tag = 'scratch operand']
  %s0 = inlined_call_operand.vmem [shape: f32[2,8,32], index: 0, kind: input, shape index: {}]
  %s1 = inlined_call_operand.vmem [shape: f32[2,8,32], index: 1, kind: input, shape index: {}]
  %s2 = inlined_call_operand.vmem [shape: f32[2,8,32], index: 2, kind: input, shape index: {}]
  %s3 = inlined_call_operand.vmem [shape: f32[4,32,16], index: 3, kind: input, shape index: {}]
  %s4 = inlined_call_operand.vmem [shape: f32[4,1,16], index: 4, kind: input, shape index: {}]
  %s5 = inlined_call_operand.vmem [shape: f32[4,32,16], index: 5, kind: input, shape index: {}]
  %s6 = inlined_call_operand.vmem [shape: f32[4,1,16], index: 6, kind: input, shape index: {}]
  %s7 = inlined_call_operand.vmem [shape: f32[4,32,16], index: 7, kind: input, shape index: {}]
  %s8 = inlined_call_operand.vmem [shape: f32[4,1,16], index: 8, kind: input, shape index: {}]
  %s9 = inlined_call_operand.vmem [shape: f32[4,16,32], index: 9, kind: input, shape index: {}]
  %s10 = inlined_call_operand.vmem [shape: f32[1,32], index: 10, kind: input, shape index: {}]
  %s11 = inlined_call_operand.hbm [shape: f32[2,8,32], index: 11, kind: output, shape index: {}]
  %s12 = sld [smem:[#allocation0]]
  $region85: #{tpu_custom_call.1} parent=0
    _
  %s14 = ssub.s32 1, %s12
  %s15 = scalar_select 0, %s14, %s12
  $region1: #{tpu_custom_call.1} parent=0
    #allocation6 [shape = 'u8[8192]{0}', space=vmem, size = 0x2000, scoped, tag = 'output window, operand 0']
    #allocation7 [shape = 's32[2]{0}', space=sflag, size = 0x8, scoped, tag = 'scoped memory for tpu_custom_call.1']
    %16 = vsyncpa [#allocation7], 0
    %s17 = scalar_lea.sflag [#allocation7], 1
    %18 = vsyncpa %s17, 0
    loop: start=0, step=1, limit=4
    $region2: #{tpu_custom_call.1} parent=1 // loop_pre_header
      _
    $region3: #{tpu_custom_call.1} parent=1 // loop_header
      %s20 = sphi 0, %s24
      %p21 = scmp.ge.s32.totalorder %s20, 4
      %s27 = sphi 0, %s46
      %s28 = sphi 0, %s42
      %s29 = sphi 0, %s38
      %s30 = sphi 0, %s27
      %s31 = sphi 0, %s28
      %s32 = sphi 0, %s29
      %s33 = sphi 0, %s30
      %s34 = sphi 0, %s31
      %s35 = sphi 0, %s32
      %s51 = sphi 0, %s53
      %s54 = sphi 0, %s51
      %s55 = sphi 0, %s54
      %s71 = sphi 0, %s55
      %s79 = sphi 0, %s81
      %s82 = sphi 0, %s79
      %s83 = sphi 0, %s82
      %s99 = sphi 0, %s83
      %s107 = sphi 0, %s109
      %s110 = sphi 0, %s107
      %s111 = sphi 0, %s110
      %s127 = sphi 0, %s111
      %s131 = sphi 0, %s131
      %s133 = sphi 0, %s131
      %s134 = sphi 0, %s133
      %s148 = sphi 0, %s134
      %s152 = sphi 0, %s152
      %s154 = sphi 0, %s152
      %s155 = sphi 0, %s154
      %s169 = sphi 0, %s155
      %s173 = sphi 0, %s173
      %s175 = sphi 0, %s173
      %s176 = sphi 0, %s175
      %s190 = sphi 0, %s176
      %s194 = sphi 0, %s194
      %s196 = sphi 0, %s194
      %s197 = sphi 0, %s196
      %s211 = sphi 0, %s197
      %s215 = sphi 0, %s215
      %s217 = sphi 0, %s215
      %s218 = sphi 0, %s217
      %s232 = sphi 0, %s218
      %s236 = sphi 0, %s236
      %s238 = sphi 0, %s236
      %s239 = sphi 0, %s238
      %s253 = sphi 0, %s239
      %s257 = sphi 0, %s257
      %s259 = sphi 0, %s257
      %s260 = sphi 0, %s259
      %s274 = sphi 0, %s260
      %s278 = sphi 0, %s278
      %s280 = sphi 0, %s278
      %s281 = sphi 0, %s280
      %s295 = sphi 0, %s281
      %s303 = sphi 0, %s305
      %s306 = sphi 0, %s303
      %s307 = sphi 0, %s306
      %s323 = sphi 0, %s307
    $region4: #{tpu_custom_call.1} parent=1 // loop_header_branch
      %23 = sbr.rel (%p21) target = $region8
    $region5: #{tpu_custom_call.1} parent=1 // loop_body
      %s25 = ssub.s32 %s20, 1
      %s26 = ssub.s32 %s20, 2
      %s36 = sadd.s32 1, %s29
      %p37 = scmp.ge.s32.totalorder %s36, 1
      %s38 = scalar_select %p37, 0, %s36
      %s39 = sadd.s32 1, %s28
      %s40 = scalar_select %p37, %s39, %s28
      %p41 = scmp.ge.s32.totalorder %s40, 1
      %s42 = scalar_select %p41, 0, %s40
      %s43 = sadd.s32 1, %s27
      %s44 = scalar_select %p41, %s43, %s27
      %p45 = scmp.ge.s32.totalorder %s44, 2
      %s46 = scalar_select %p45, 0, %s44
      %s47 = ssub.s32 %s27, %s46
      %s48 = ssub.s32 %s28, %s42
      %s49 = sor.u32 %s47, %s48
      %p50 = scmp.eq.s32.totalorder %s49, 0
      %s52 = sadd.s32 %s51, 1
      %s53 = scalar_select %p50, %s51, %s52
      %p56 = pneg %p50
      %p57 = scmp.eq.s32.totalorder %s20, 1
      %p58 = por %p56, %p57
      %p59 = scmp.ne.s32.totalorder %s51, %s54
      %p60 = scmp.eq.s32.totalorder %s20, 0
      %p61 = por %p59, %p60
      %p62 = scmp.ne.s32.totalorder %s51, %s54
      %p63 = scmp.eq.s32.totalorder %s25, 1
      %p64 = por %p62, %p63
      %p65 = scmp.ne.s32.totalorder %s54, %s55
      %p66 = scmp.eq.s32.totalorder %s25, 0
      %p67 = por %p65, %p66
      %p68 = scmp.ne.s32.totalorder %s54, %s55
      %p69 = scmp.eq.s32.totalorder %s26, 1
      %p70 = por %p68, %p69
      %p72 = scmp.ne.s32.totalorder %s55, %s71
      %p73 = scmp.eq.s32.totalorder %s26, 0
      %p74 = por %p72, %p73
      %s75 = ssub.s32 %s27, %s46
      %s76 = ssub.s32 %s29, %s38
      %s77 = sor.u32 %s75, %s76
      %p78 = scmp.eq.s32.totalorder %s77, 0
      %s80 = sadd.s32 %s79, 1
      %s81 = scalar_select %p78, %s79, %s80
      %p84 = pneg %p78
      %p85 = scmp.eq.s32.totalorder %s20, 1
      %p86 = por %p84, %p85
      %p87 = scmp.ne.s32.totalorder %s79, %s82
      %p88 = scmp.eq.s32.totalorder %s20, 0
      %p89 = por %p87, %p88
      %p90 = scmp.ne.s32.totalorder %s79, %s82
      %p91 = scmp.eq.s32.totalorder %s25, 1
      %p92 = por %p90, %p91
      %p93 = scmp.ne.s32.totalorder %s82, %s83
      %p94 = scmp.eq.s32.totalorder %s25, 0
      %p95 = por %p93, %p94
      %p96 = scmp.ne.s32.totalorder %s82, %s83
      %p97 = scmp.eq.s32.totalorder %s26, 1
      %p98 = por %p96, %p97
      %p100 = scmp.ne.s32.totalorder %s83, %s99
      %p101 = scmp.eq.s32.totalorder %s26, 0
      %p102 = por %p100, %p101
      %s103 = ssub.s32 %s27, %s46
      %s104 = ssub.s32 %s29, %s38
      %s105 = sor.u32 %s103, %s104
      %p106 = scmp.eq.s32.totalorder %s105, 0
      %s108 = sadd.s32 %s107, 1
      %s109 = scalar_select %p106, %s107, %s108
      %p112 = pneg %p106
      %p113 = scmp.eq.s32.totalorder %s20, 1
      %p114 = por %p112, %p113
      %p115 = scmp.ne.s32.totalorder %s107, %s110
      %p116 = scmp.eq.s32.totalorder %s20, 0
      %p117 = por %p115, %p116
      %p118 = scmp.ne.s32.totalorder %s107, %s110
      %p119 = scmp.eq.s32.totalorder %s25, 1
      %p120 = por %p118, %p119
      %p121 = scmp.ne.s32.totalorder %s110, %s111
      %p122 = scmp.eq.s32.totalorder %s25, 0
      %p123 = por %p121, %p122
      %p124 = scmp.ne.s32.totalorder %s110, %s111
      %p125 = scmp.eq.s32.totalorder %s26, 1
      %p126 = por %p124, %p125
      %p128 = scmp.ne.s32.totalorder %s111, %s127
      %p129 = scmp.eq.s32.totalorder %s26, 0
      %p130 = por %p128, %p129
      %s132 = sadd.s32 %s131, 1
      %p135 = scmp.eq.s32.totalorder %s20, 1
      %p136 = scmp.ne.s32.totalorder %s131, %s133
      %p137 = scmp.eq.s32.totalorder %s20, 0
      %p138 = por %p136, %p137
      %p139 = scmp.ne.s32.totalorder %s131, %s133
      %p140 = scmp.eq.s32.totalorder %s25, 1
      %p141 = por %p139, %p140
      %p142 = scmp.ne.s32.totalorder %s133, %s134
      %p143 = scmp.eq.s32.totalorder %s25, 0
      %p144 = por %p142, %p143
      %p145 = scmp.ne.s32.totalorder %s133, %s134
      %p146 = scmp.eq.s32.totalorder %s26, 1
      %p147 = por %p145, %p146
      %p149 = scmp.ne.s32.totalorder %s134, %s148
      %p150 = scmp.eq.s32.totalorder %s26, 0
      %p151 = por %p149, %p150
      %s153 = sadd.s32 %s152, 1
      %p156 = scmp.eq.s32.totalorder %s20, 1
      %p157 = scmp.ne.s32.totalorder %s152, %s154
      %p158 = scmp.eq.s32.totalorder %s20, 0
      %p159 = por %p157, %p158
      %p160 = scmp.ne.s32.totalorder %s152, %s154
      %p161 = scmp.eq.s32.totalorder %s25, 1
      %p162 = por %p160, %p161
      %p163 = scmp.ne.s32.totalorder %s154, %s155
      %p164 = scmp.eq.s32.totalorder %s25, 0
      %p165 = por %p163, %p164
      %p166 = scmp.ne.s32.totalorder %s154, %s155
      %p167 = scmp.eq.s32.totalorder %s26, 1
      %p168 = por %p166, %p167
      %p170 = scmp.ne.s32.totalorder %s155, %s169
      %p171 = scmp.eq.s32.totalorder %s26, 0
      %p172 = por %p170, %p171
      %s174 = sadd.s32 %s173, 1
      %p177 = scmp.eq.s32.totalorder %s20, 1
      %p178 = scmp.ne.s32.totalorder %s173, %s175
      %p179 = scmp.eq.s32.totalorder %s20, 0
      %p180 = por %p178, %p179
      %p181 = scmp.ne.s32.totalorder %s173, %s175
      %p182 = scmp.eq.s32.totalorder %s25, 1
      %p183 = por %p181, %p182
      %p184 = scmp.ne.s32.totalorder %s175, %s176
      %p185 = scmp.eq.s32.totalorder %s25, 0
      %p186 = por %p184, %p185
      %p187 = scmp.ne.s32.totalorder %s175, %s176
      %p188 = scmp.eq.s32.totalorder %s26, 1
      %p189 = por %p187, %p188
      %p191 = scmp.ne.s32.totalorder %s176, %s190
      %p192 = scmp.eq.s32.totalorder %s26, 0
      %p193 = por %p191, %p192
      %s195 = sadd.s32 %s194, 1
      %p198 = scmp.eq.s32.totalorder %s20, 1
      %p199 = scmp.ne.s32.totalorder %s194, %s196
      %p200 = scmp.eq.s32.totalorder %s20, 0
      %p201 = por %p199, %p200
      %p202 = scmp.ne.s32.totalorder %s194, %s196
      %p203 = scmp.eq.s32.totalorder %s25, 1
      %p204 = por %p202, %p203
      %p205 = scmp.ne.s32.totalorder %s196, %s197
      %p206 = scmp.eq.s32.totalorder %s25, 0
      %p207 = por %p205, %p206
      %p208 = scmp.ne.s32.totalorder %s196, %s197
      %p209 = scmp.eq.s32.totalorder %s26, 1
      %p210 = por %p208, %p209
      %p212 = scmp.ne.s32.totalorder %s197, %s211
      %p213 = scmp.eq.s32.totalorder %s26, 0
      %p214 = por %p212, %p213
      %s216 = sadd.s32 %s215, 1
      %p219 = scmp.eq.s32.totalorder %s20, 1
      %p220 = scmp.ne.s32.totalorder %s215, %s217
      %p221 = scmp.eq.s32.totalorder %s20, 0
      %p222 = por %p220, %p221
      %p223 = scmp.ne.s32.totalorder %s215, %s217
      %p224 = scmp.eq.s32.totalorder %s25, 1
      %p225 = por %p223, %p224
      %p226 = scmp.ne.s32.totalorder %s217, %s218
      %p227 = scmp.eq.s32.totalorder %s25, 0
      %p228 = por %p226, %p227
      %p229 = scmp.ne.s32.totalorder %s217, %s218
      %p230 = scmp.eq.s32.totalorder %s26, 1
      %p231 = por %p229, %p230
      %p233 = scmp.ne.s32.totalorder %s218, %s232
      %p234 = scmp.eq.s32.totalorder %s26, 0
      %p235 = por %p233, %p234
      %s237 = sadd.s32 %s236, 1
      %p240 = scmp.eq.s32.totalorder %s20, 1
      %p241 = scmp.ne.s32.totalorder %s236, %s238
      %p242 = scmp.eq.s32.totalorder %s20, 0
      %p243 = por %p241, %p242
      %p244 = scmp.ne.s32.totalorder %s236, %s238
      %p245 = scmp.eq.s32.totalorder %s25, 1
      %p246 = por %p244, %p245
      %p247 = scmp.ne.s32.totalorder %s238, %s239
      %p248 = scmp.eq.s32.totalorder %s25, 0
      %p249 = por %p247, %p248
      %p250 = scmp.ne.s32.totalorder %s238, %s239
      %p251 = scmp.eq.s32.totalorder %s26, 1
      %p252 = por %p250, %p251
      %p254 = scmp.ne.s32.totalorder %s239, %s253
      %p255 = scmp.eq.s32.totalorder %s26, 0
      %p256 = por %p254, %p255
      %s258 = sadd.s32 %s257, 1
      %p261 = scmp.eq.s32.totalorder %s20, 1
      %p262 = scmp.ne.s32.totalorder %s257, %s259
      %p263 = scmp.eq.s32.totalorder %s20, 0
      %p264 = por %p262, %p263
      %p265 = scmp.ne.s32.totalorder %s257, %s259
      %p266 = scmp.eq.s32.totalorder %s25, 1
      %p267 = por %p265, %p266
      %p268 = scmp.ne.s32.totalorder %s259, %s260
      %p269 = scmp.eq.s32.totalorder %s25, 0
      %p270 = por %p268, %p269
      %p271 = scmp.ne.s32.totalorder %s259, %s260
      %p272 = scmp.eq.s32.totalorder %s26, 1
      %p273 = por %p271, %p272
      %p275 = scmp.ne.s32.totalorder %s260, %s274
      %p276 = scmp.eq.s32.totalorder %s26, 0
      %p277 = por %p275, %p276
      %s279 = sadd.s32 %s278, 1
      %p282 = scmp.eq.s32.totalorder %s20, 1
      %p283 = scmp.ne.s32.totalorder %s278, %s280
      %p284 = scmp.eq.s32.totalorder %s20, 0
      %p285 = por %p283, %p284
      %p286 = scmp.ne.s32.totalorder %s278, %s280
      %p287 = scmp.eq.s32.totalorder %s25, 1
      %p288 = por %p286, %p287
      %p289 = scmp.ne.s32.totalorder %s280, %s281
      %p290 = scmp.eq.s32.totalorder %s25, 0
      %p291 = por %p289, %p290
      %p292 = scmp.ne.s32.totalorder %s280, %s281
      %p293 = scmp.eq.s32.totalorder %s26, 1
      %p294 = por %p292, %p293
      %p296 = scmp.ne.s32.totalorder %s281, %s295
      %p297 = scmp.eq.s32.totalorder %s26, 0
      %p298 = por %p296, %p297
      %s299 = ssub.s32 %s27, %s46
      %s300 = ssub.s32 %s28, %s42
      %s301 = sor.u32 %s299, %s300
      %p302 = scmp.eq.s32.totalorder %s301, 0
      %s304 = sadd.s32 %s303, 1
      %s305 = scalar_select %p302, %s303, %s304
      %p308 = pneg %p302
      %p309 = scmp.eq.s32.totalorder %s20, 1
      %p310 = por %p308, %p309
      %p311 = scmp.ne.s32.totalorder %s303, %s306
      %p312 = scmp.eq.s32.totalorder %s20, 0
      %p313 = por %p311, %p312
      %p314 = scmp.ne.s32.totalorder %s303, %s306
      %p315 = scmp.eq.s32.totalorder %s25, 1
      %p316 = por %p314, %p315
      %p317 = scmp.ne.s32.totalorder %s306, %s307
      %p318 = scmp.eq.s32.totalorder %s25, 0
      %p319 = por %p317, %p318
      %p320 = scmp.ne.s32.totalorder %s306, %s307
      %p321 = scmp.eq.s32.totalorder %s26, 1
      %p322 = por %p320, %p321
      %p324 = scmp.ne.s32.totalorder %s307, %s323
      %p325 = scmp.eq.s32.totalorder %s26, 0
      %p326 = por %p324, %p325
      %p327 = scmp.le.s32.totalorder 1, %s20
      %p328 = scmp.lt.s32.totalorder %s20, 3
      %p329 = pnand %p327, %p328
      %p330 = pneg %p329
      // Predicated region
      $region9: #{tpu_custom_call.1} parent=5 // pred_check
        _
      $region10: #{tpu_custom_call.1} parent=5 // pred_check_branch
        %332 = sbr.rel (%p329) target = $region12
      $region11: #{tpu_custom_call.1} parent=5 // pred_region
        %s333 = ssub.s32 %s20, 1
        // Predicated region
        $region13: #{tpu_custom_call.1} parent=11 // pred_check
          %p334 = pneg %p144
        $region14: #{tpu_custom_call.1} parent=11 // pred_check_branch
          %336 = sbr.rel (%p334) target = $region16
        $region15: #{tpu_custom_call.1} parent=11 // pred_region
          _
        $region16: #{tpu_custom_call.1} parent=11 // pred_fallthru
          _
        // Predicated region
        $region17: #{tpu_custom_call.1} parent=11 // pred_check
          %p337 = pneg %p165
        $region18: #{tpu_custom_call.1} parent=11 // pred_check_branch
          %339 = sbr.rel (%p337) target = $region20
        $region19: #{tpu_custom_call.1} parent=11 // pred_region
          _
        $region20: #{tpu_custom_call.1} parent=11 // pred_fallthru
          _
        // Predicated region
        $region21: #{tpu_custom_call.1} parent=11 // pred_check
          %p340 = pneg %p186
        $region22: #{tpu_custom_call.1} parent=11 // pred_check_branch
          %342 = sbr.rel (%p340) target = $region24
        $region23: #{tpu_custom_call.1} parent=11 // pred_region
          _
        $region24: #{tpu_custom_call.1} parent=11 // pred_fallthru
          _
        // Predicated region
        $region25: #{tpu_custom_call.1} parent=11 // pred_check
          %p343 = pneg %p207
        $region26: #{tpu_custom_call.1} parent=11 // pred_check_branch
          %345 = sbr.rel (%p343) target = $region28
        $region27: #{tpu_custom_call.1} parent=11 // pred_region
          _
        $region28: #{tpu_custom_call.1} parent=11 // pred_fallthru
          _
        // Predicated region
        $region29: #{tpu_custom_call.1} parent=11 // pred_check
          %p346 = pneg %p228
        $region30: #{tpu_custom_call.1} parent=11 // pred_check_branch
          %348 = sbr.rel (%p346) target = $region32
        $region31: #{tpu_custom_call.1} parent=11 // pred_region
          _
        $region32: #{tpu_custom_call.1} parent=11 // pred_fallthru
          _
        // Predicated region
        $region33: #{tpu_custom_call.1} parent=11 // pred_check
          %p349 = pneg %p249
        $region34: #{tpu_custom_call.1} parent=11 // pred_check_branch
          %351 = sbr.rel (%p349) target = $region36
        $region35: #{tpu_custom_call.1} parent=11 // pred_region
          _
        $region36: #{tpu_custom_call.1} parent=11 // pred_fallthru
          _
        // Predicated region
        $region37: #{tpu_custom_call.1} parent=11 // pred_check
          %p352 = pneg %p270
        $region38: #{tpu_custom_call.1} parent=11 // pred_check_branch
          %354 = sbr.rel (%p352) target = $region40
        $region39: #{tpu_custom_call.1} parent=11 // pred_region
          _
        $region40: #{tpu_custom_call.1} parent=11 // pred_fallthru
          _
        // Predicated region
        $region41: #{tpu_custom_call.1} parent=11 // pred_check
          %p355 = pneg %p291
        $region42: #{tpu_custom_call.1} parent=11 // pred_check_branch
          %357 = sbr.rel (%p355) target = $region44
        $region43: #{tpu_custom_call.1} parent=11 // pred_region
          _
        $region44: #{tpu_custom_call.1} parent=11 // pred_fallthru
          _
      $region12: #{tpu_custom_call.1} parent=5 // pred_fallthru
        _
      %p358 = scmp.lt.s32.totalorder %s20, 2
      // Predicated region
      $region45: #{tpu_custom_call.1} parent=5 // pred_check
        %p359 = pneg %p358
      $region46: #{tpu_custom_call.1} parent=5 // pred_check_branch
        %361 = sbr.rel (%p359) target = $region48
      $region47: #{tpu_custom_call.1} parent=5 // pred_region
        // Predicated region
        $region49: #{tpu_custom_call.1} parent=47 // pred_check
          %p362 = pneg %p61
        $region50: #{tpu_custom_call.1} parent=47 // pred_check_branch
          %364 = sbr.rel (%p362) target = $region52
        $region51: #{tpu_custom_call.1} parent=47 // pred_region
          %p365 = scmp.lt.s32.totalorder %s27, 1
          %s366 = scalar_select %p365, %s27, 1
          %p367 = scmp.lt.s32.totalorder %s28, 0
          %s368 = scalar_select %p367, %s28, 0
          %s369 = sadd.s32 %s368, %s366
          %s370 = smul.addr %s369, 8
          %s371 = scalar_lea.vmem %s0, %s370
        $region52: #{tpu_custom_call.1} parent=47 // pred_fallthru
          _
        // Predicated region
        $region53: #{tpu_custom_call.1} parent=47 // pred_check
          %p372 = pneg %p89
        $region54: #{tpu_custom_call.1} parent=47 // pred_check_branch
          %374 = sbr.rel (%p372) target = $region56
        $region55: #{tpu_custom_call.1} parent=47 // pred_region
          %p375 = scmp.lt.s32.totalorder %s27, 1
          %s376 = scalar_select %p375, %s27, 1
          %p377 = scmp.lt.s32.totalorder %s29, 0
          %s378 = scalar_select %p377, %s29, 0
          %s379 = sadd.s32 %s378, %s376
          %s380 = smul.addr %s379, 8
          %s381 = scalar_lea.vmem %s1, %s380
        $region56: #{tpu_custom_call.1} parent=47 // pred_fallthru
          _
        // Predicated region
        $region57: #{tpu_custom_call.1} parent=47 // pred_check
          %p382 = pneg %p117
        $region58: #{tpu_custom_call.1} parent=47 // pred_check_branch
          %384 = sbr.rel (%p382) target = $region60
        $region59: #{tpu_custom_call.1} parent=47 // pred_region
          %p385 = scmp.lt.s32.totalorder %s27, 1
          %s386 = scalar_select %p385, %s27, 1
          %p387 = scmp.lt.s32.totalorder %s29, 0
          %s388 = scalar_select %p387, %s29, 0
          %s389 = sadd.s32 %s388, %s386
          %s390 = smul.addr %s389, 8
          %s391 = scalar_lea.vmem %s2, %s390
        $region60: #{tpu_custom_call.1} parent=47 // pred_fallthru
          _
      $region48: #{tpu_custom_call.1} parent=5 // pred_fallthru
        _
      %p392 = scmp.le.s32.totalorder 1, %s20
      %p393 = scmp.lt.s32.totalorder %s20, 3
      %p394 = pnand %p392, %p393
      %p395 = pneg %p394
      // Predicated region
      $region61: #{tpu_custom_call.1} parent=5 // pred_check
        _
      $region62: #{tpu_custom_call.1} parent=5 // pred_check_branch
        %397 = sbr.rel (%p394) target = $region64
      $region63: #{tpu_custom_call.1} parent=5 // pred_region
        %s398 = ssub.s32 %s20, 1
        %p399 = scmp.lt.s32.totalorder %s30, 1
        %s400 = scalar_select %p399, %s30, 1
        %p401 = scmp.lt.s32.totalorder %s31, 0
        %s402 = scalar_select %p401, %s31, 0
        %s403 = sadd.s32 %s402, %s400
        %s404 = smul.addr %s403, 8
        %s405 = scalar_lea.vmem %s0, %s404
        %p406 = pneg %p67
        %p407 = pneg %p64
        %p408 = scmp.lt.s32.totalorder %s30, 1
        %s409 = scalar_select %p408, %s30, 1
        %p410 = scmp.lt.s32.totalorder %s32, 0
        %s411 = scalar_select %p410, %s32, 0
        %s412 = sadd.s32 %s411, %s409
        %s413 = smul.addr %s412, 8
        %s414 = scalar_lea.vmem %s1, %s413
        %p415 = pneg %p95
        %p416 = pneg %p92
        %p417 = scmp.lt.s32.totalorder %s30, 1
        %s418 = scalar_select %p417, %s30, 1
        %p419 = scmp.lt.s32.totalorder %s32, 0
        %s420 = scalar_select %p419, %s32, 0
        %s421 = sadd.s32 %s420, %s418
        %s422 = smul.addr %s421, 8
        %s423 = scalar_lea.vmem %s2, %s422
        %p424 = pneg %p123
        %p425 = pneg %p120
        %p426 = pneg %p144
        %p427 = pneg %p141
        %p428 = pneg %p165
        %p429 = pneg %p162
        %p430 = pneg %p186
        %p431 = pneg %p183
        %p432 = pneg %p207
        %p433 = pneg %p204
        %p434 = pneg %p228
        %p435 = pneg %p225
        %p436 = pneg %p249
        %p437 = pneg %p246
        %p438 = pneg %p270
        %p439 = pneg %p267
        %p440 = pneg %p291
        %p441 = pneg %p288
        %p442 = pneg %p319
        %p443 = pneg %p316
        %s444 = sand.u32 %s306, 1
        %s445 = scalar_lea.sflag [#allocation7], %s444
        %s446 = sand.u32 %s306, 1
        %s447 = smul.addr %s446, 8
        %s448 = scalar_lea.vmem [#allocation6], %s447
        %p449 = scmp.lt.s32.totalorder %s30, 1
        %s450 = scalar_select %p449, %s30, 1
        %p451 = scmp.lt.s32.totalorder %s31, 0
        %s452 = scalar_select %p451, %s31, 0
        %s453 = sadd.s32 %s452, %s450
        %s454 = smul.addr %s453, 8
        %s455 = scalar_lea.vmem %s0, %s454
        %p456 = scmp.lt.s32.totalorder %s30, 1
        %s457 = scalar_select %p456, %s30, 1
        %p458 = scmp.lt.s32.totalorder %s32, 0
        %s459 = scalar_select %p458, %s32, 0
        %s460 = sadd.s32 %s459, %s457
        %s461 = smul.addr %s460, 8
        %s462 = scalar_lea.vmem %s1, %s461
        %p463 = scmp.lt.s32.totalorder %s30, 1
        %s464 = scalar_select %p463, %s30, 1
        %p465 = scmp.lt.s32.totalorder %s32, 0
        %s466 = scalar_select %p465, %s32, 0
        %s467 = sadd.s32 %s466, %s464
        %s468 = smul.addr %s467, 8
        %s469 = scalar_lea.vmem %s2, %s468
        %p470 = scmp.eq.s32.totalorder %s32, 0
        // Predicated region
        $region65: #{tpu_custom_call.1} parent=63 // pred_check
          %p471 = pneg %p470
        $region66: #{tpu_custom_call.1} parent=63 // pred_check_branch
          %473 = sbr.rel (%p471) target = $region68
        $region67: #{tpu_custom_call.1} parent=63 // pred_region
          %vm474 = vcmask 7168
          %475 = vst.msk [vmem:[#allocation3] sm:$0xff] %vm474, -inf
          %476 = vst.msk [vmem:[#allocation3 + $0x8] sm:$0xff] %vm474, -inf
          %477 = vst.msk [vmem:[#allocation3 + $0x10] sm:$0xff] %vm474, -inf
          %478 = vst.msk [vmem:[#allocation3 + $0x18] sm:$0xff] %vm474, -inf
          %479 = vst.msk [vmem:[#allocation4] sm:$0xff] %vm474, 0.0
          %480 = vst.msk [vmem:[#allocation4 + $0x8] sm:$0xff] %vm474, 0.0
          %481 = vst.msk [vmem:[#allocation4 + $0x10] sm:$0xff] %vm474, 0.0
          %482 = vst.msk [vmem:[#allocation4 + $0x18] sm:$0xff] %vm474, 0.0
          %vm483 = vcmask 130048
          %484 = vst.msk [vmem:[#allocation5] sm:$0xff] %vm483, 0.0
          %485 = vst.msk [vmem:[#allocation5 + $0x8] sm:$0xff] %vm483, 0.0
          %486 = vst.msk [vmem:[#allocation5 + $0x10] sm:$0xff] %vm483, 0.0
          %487 = vst.msk [vmem:[#allocation5 + $0x18] sm:$0xff] %vm483, 0.0
          %v488 = vld [vmem:[%s455] sm:$0xff]
          %v489 = vld [vmem:[%s3] sm:$0xff]
          %v490 = vld [vmem:[%s3 + $0x8] sm:$0xff]
          %v491 = vld [vmem:[%s3 + $0x10] sm:$0xff]
          %v492 = vld [vmem:[%s3 + $0x18] sm:$0xff]
          %v493 = vld [vmem:[%s3 + $0x20] sm:$0xff]
          %v494 = vld [vmem:[%s3 + $0x28] sm:$0xff]
          %v495 = vld [vmem:[%s3 + $0x30] sm:$0xff]
          %v496 = vld [vmem:[%s3 + $0x38] sm:$0xff]
          %v497 = vld [vmem:[%s3 + $0x40] sm:$0xff]
          %v498 = vld [vmem:[%s3 + $0x48] sm:$0xff]
          %v499 = vld [vmem:[%s3 + $0x50] sm:$0xff]
          %v500 = vld [vmem:[%s3 + $0x58] sm:$0xff]
          %v501 = vld [vmem:[%s3 + $0x60] sm:$0xff]
          %v502 = vld [vmem:[%s3 + $0x68] sm:$0xff]
          %v503 = vld [vmem:[%s3 + $0x70] sm:$0xff]
          %v504 = vld [vmem:[%s3 + $0x78] sm:$0xff]
          %v505 = vld [vmem:[%s4] sm:$0x1]
          %v506 = vld [vmem:[%s4 + $0x1] sm:$0x1]
          %v507 = vld [vmem:[%s4 + $0x2] sm:$0x1]
          %v508 = vld [vmem:[%s4 + $0x3] sm:$0x1]
          %v513 = vlaneseq
          %v514 = vshrl.u32 %v513, 7
          %v515 = vsub.s32 0, %v514
          %v516 = vrot.slane %v505, %v515
          %v517 = vlaneseq
          %v518 = vshrl.u32 %v517, 7
          %v519 = vsub.s32 0, %v518
          %v520 = vrot.slane %v506, %v519
          %v521 = vlaneseq
          %v522 = vshrl.u32 %v521, 7
          %v523 = vsub.s32 0, %v522
          %v524 = vrot.slane %v507, %v523
          %v525 = vlaneseq
          %v526 = vshrl.u32 %v525, 7
          %v527 = vsub.s32 0, %v526
          %v528 = vrot.slane %v508, %v527
          %vm533 = vcmask 261120
          %v535 = vsel %vm533, %v488, 0
          %537 = vmatprep.subr.mxu0 0.0
          %538 = vmatpush1.msra.mxu0 %v489
          %539 = vmatprep.subr.mxu0 0.0
          %540 = vmatpush1.msra.mxu0 %v490
          %541 = vmatprep.subr.mxu0 0.0
          %542 = vmatpush1.msra.mxu0 %v491
          %543 = vmatprep.subr.mxu0 0.0
          %544 = vmatpush1.msra.mxu0 %v492
          %545 = vmatprep.subr.mxu0 0.0
          %546 = vmatpush1.msra.mxu0 0.0
          %547 = vmatprep.subr.mxu0 0.0
          %548 = vmatpush1.msra.mxu0 0.0
          %549 = vmatprep.subr.mxu0 0.0
          %550 = vmatpush1.msra.mxu0 0.0
          %551 = vmatprep.subr.mxu0 0.0
          %552 = vmatpush1.msra.mxu0 0.0
          %553 = vmatprep.subr.mxu0 0.0
          %554 = vmatpush1.msra.mxu0 0.0
          %555 = vmatprep.subr.mxu0 0.0
          %556 = vmatpush1.msra.mxu0 0.0
          %557 = vmatprep.subr.mxu0 0.0
          %558 = vmatpush1.msra.mxu0 0.0
          %559 = vmatprep.subr.mxu0 0.0
          %560 = vmatpush1.msra.mxu0 0.0
          %561 = vmatprep.subr.mxu0 0.0
          %562 = vmatpush1.msra.mxu0 0.0
          %563 = vmatprep.subr.mxu0 0.0
          %564 = vmatpush1.msra.mxu0 0.0
          %565 = vmatprep.subr.mxu0 0.0
          %566 = vmatpush1.msra.mxu0 0.0
          %567 = vmatprep.subr.mxu0 0.0
          %568 = vmatpush1.msra.mxu0 0.0
          %569 = vmatprep.subr.mxu0 0.0
          %570 = vmatpush1.msra.mxu0 0.0
          %571 = vmatprep.subr.mxu0 0.0
          %572 = vmatpush1.msra.mxu0 0.0
          %573 = vmatprep.subr.mxu0 0.0
          %574 = vmatpush1.msra.mxu0 0.0
          %575 = vmatprep.subr.mxu0 0.0
          %576 = vmatpush1.msra.mxu0 0.0
          %577 = vmatprep.subr.mxu0 0.0
          %578 = vmatpush1.msra.mxu0 0.0
          %579 = vmatprep.subr.mxu0 0.0
          %580 = vmatpush1.msra.mxu0 0.0
          %581 = vmatprep.subr.mxu0 0.0
          %582 = vmatpush1.msra.mxu0 0.0
          %583 = vmatprep.subr.mxu0 0.0
          %584 = vmatpush1.msra.mxu0 0.0
          %585 = vmatprep.subr.mxu0 0.0
          %586 = vmatpush1.msra.mxu0 0.0
          %587 = vmatprep.subr.mxu0 0.0
          %588 = vmatpush1.msra.mxu0 0.0
          %589 = vmatprep.subr.mxu0 0.0
          %590 = vmatpush1.msra.mxu0 0.0
          %591 = vmatprep.subr.mxu0 0.0
          %592 = vmatpush1.msra.mxu0 0.0
          %593 = vmatprep.subr.mxu0 0.0
          %594 = vmatpush1.msra.mxu0 0.0
          %595 = vmatprep.subr.mxu0 0.0
          %596 = vmatpush1.msra.mxu0 0.0
          %597 = vmatprep.subr.mxu0 0.0
          %598 = vmatpush1.msra.mxu0 0.0
          %599 = vmatprep.subr.mxu0 0.0
          %600 = vmatpush1.msra.mxu0 0.0
          %601 = vmatprep.mubr.f32.mxu0 0.0
          %602 = vmatmul.mubr.f32.gmra.mrb[0].mxu0 %v535
          %v603 = vpop.f32.mrb[0].mxu0
          %v604 = vadd.f32 %v516, %v603
          %v605 = vpop.f32.mrb[0].mxu0
          %606 = vdwg.mxu0
          %607 = vmatprep.subr.mxu0 0.0
          %608 = vmatpush1.msra.mxu0 %v493
          %609 = vmatprep.subr.mxu0 0.0
          %610 = vmatpush1.msra.mxu0 %v494
          %611 = vmatprep.subr.mxu0 0.0
          %612 = vmatpush1.msra.mxu0 %v495
          %613 = vmatprep.subr.mxu0 0.0
          %614 = vmatpush1.msra.mxu0 %v496
          %615 = vmatprep.subr.mxu0 0.0
          %616 = vmatpush1.msra.mxu0 0.0
          %617 = vmatprep.subr.mxu0 0.0
          %618 = vmatpush1.msra.mxu0 0.0
          %619 = vmatprep.subr.mxu0 0.0
          %620 = vmatpush1.msra.mxu0 0.0
          %621 = vmatprep.subr.mxu0 0.0
          %622 = vmatpush1.msra.mxu0 0.0
          %623 = vmatprep.subr.mxu0 0.0
          %624 = vmatpush1.msra.mxu0 0.0
          %625 = vmatprep.subr.mxu0 0.0
          %626 = vmatpush1.msra.mxu0 0.0
          %627 = vmatprep.subr.mxu0 0.0
          %628 = vmatpush1.msra.mxu0 0.0
          %629 = vmatprep.subr.mxu0 0.0
          %630 = vmatpush1.msra.mxu0 0.0
          %631 = vmatprep.subr.mxu0 0.0
          %632 = vmatpush1.msra.mxu0 0.0
          %633 = vmatprep.subr.mxu0 0.0
          %634 = vmatpush1.msra.mxu0 0.0
          %635 = vmatprep.subr.mxu0 0.0
          %636 = vmatpush1.msra.mxu0 0.0
          %637 = vmatprep.subr.mxu0 0.0
          %638 = vmatpush1.msra.mxu0 0.0
          %639 = vmatprep.subr.mxu0 0.0
          %640 = vmatpush1.msra.mxu0 0.0
          %641 = vmatprep.subr.mxu0 0.0
          %642 = vmatpush1.msra.mxu0 0.0
          %643 = vmatprep.subr.mxu0 0.0
          %644 = vmatpush1.msra.mxu0 0.0
          %645 = vmatprep.subr.mxu0 0.0
          %646 = vmatpush1.msra.mxu0 0.0
          %647 = vmatprep.subr.mxu0 0.0
          %648 = vmatpush1.msra.mxu0 0.0
          %649 = vmatprep.subr.mxu0 0.0
          %650 = vmatpush1.msra.mxu0 0.0
          %651 = vmatprep.subr.mxu0 0.0
          %652 = vmatpush1.msra.mxu0 0.0
          %653 = vmatprep.subr.mxu0 0.0
          %654 = vmatpush1.msra.mxu0 0.0
          %655 = vmatprep.subr.mxu0 0.0
          %656 = vmatpush1.msra.mxu0 0.0
          %657 = vmatprep.subr.mxu0 0.0
          %658 = vmatpush1.msra.mxu0 0.0
          %659 = vmatprep.subr.mxu0 0.0
          %660 = vmatpush1.msra.mxu0 0.0
          %661 = vmatprep.subr.mxu0 0.0
          %662 = vmatpush1.msra.mxu0 0.0
          %663 = vmatprep.subr.mxu0 0.0
          %664 = vmatpush1.msra.mxu0 0.0
          %665 = vmatprep.subr.mxu0 0.0
          %666 = vmatpush1.msra.mxu0 0.0
          %667 = vmatprep.subr.mxu0 0.0
          %668 = vmatpush1.msra.mxu0 0.0
          %669 = vmatprep.subr.mxu0 0.0
          %670 = vmatpush1.msra.mxu0 0.0
          %671 = vmatprep.mubr.f32.mxu0 0.0
          %672 = vmatmul.mubr.f32.gmra.mrb[0].mxu0 %v535
          %v673 = vpop.f32.mrb[0].mxu0
          %v674 = vadd.f32 %v520, %v673
          %v675 = vpop.f32.mrb[0].mxu0
          %676 = vdwg.mxu0
          %677 = vmatprep.subr.mxu0 0.0
          %678 = vmatpush1.msra.mxu0 %v497
          %679 = vmatprep.subr.mxu0 0.0
          %680 = vmatpush1.msra.mxu0 %v498
          %681 = vmatprep.subr.mxu0 0.0
          %682 = vmatpush1.msra.mxu0 %v499
          %683 = vmatprep.subr.mxu0 0.0
          %684 = vmatpush1.msra.mxu0 %v500
          %685 = vmatprep.subr.mxu0 0.0
          %686 = vmatpush1.msra.mxu0 0.0
          %687 = vmatprep.subr.mxu0 0.0
          %688 = vmatpush1.msra.mxu0 0.0
          %689 = vmatprep.subr.mxu0 0.0
          %690 = vmatpush1.msra.mxu0 0.0
          %691 = vmatprep.subr.mxu0 0.0
          %692 = vmatpush1.msra.mxu0 0.0
          %693 = vmatprep.subr.mxu0 0.0
          %694 = vmatpush1.msra.mxu0 0.0
          %695 = vmatprep.subr.mxu0 0.0
          %696 = vmatpush1.msra.mxu0 0.0
          %697 = vmatprep.subr.mxu0 0.0
          %698 = vmatpush1.msra.mxu0 0.0
          %699 = vmatprep.subr.mxu0 0.0
          %700 = vmatpush1.msra.mxu0 0.0
          %701 = vmatprep.subr.mxu0 0.0
          %702 = vmatpush1.msra.mxu0 0.0
          %703 = vmatprep.subr.mxu0 0.0
          %704 = vmatpush1.msra.mxu0 0.0
          %705 = vmatprep.subr.mxu0 0.0
          %706 = vmatpush1.msra.mxu0 0.0
          %707 = vmatprep.subr.mxu0 0.0
          %708 = vmatpush1.msra.mxu0 0.0
          %709 = vmatprep.subr.mxu0 0.0
          %710 = vmatpush1.msra.mxu0 0.0
          %711 = vmatprep.subr.mxu0 0.0
          %712 = vmatpush1.msra.mxu0 0.0
          %713 = vmatprep.subr.mxu0 0.0
          %714 = vmatpush1.msra.mxu0 0.0
          %715 = vmatprep.subr.mxu0 0.0
          %716 = vmatpush1.msra.mxu0 0.0
          %717 = vmatprep.subr.mxu0 0.0
          %718 = vmatpush1.msra.mxu0 0.0
          %719 = vmatprep.subr.mxu0 0.0
          %720 = vmatpush1.msra.mxu0 0.0
          %721 = vmatprep.subr.mxu0 0.0
          %722 = vmatpush1.msra.mxu0 0.0
          %723 = vmatprep.subr.mxu0 0.0
          %724 = vmatpush1.msra.mxu0 0.0
          %725 = vmatprep.subr.mxu0 0.0
          %726 = vmatpush1.msra.mxu0 0.0
          %727 = vmatprep.subr.mxu0 0.0
          %728 = vmatpush1.msra.mxu0 0.0
          %729 = vmatprep.subr.mxu0 0.0
          %730 = vmatpush1.msra.mxu0 0.0
          %731 = vmatprep.subr.mxu0 0.0
          %732 = vmatpush1.msra.mxu0 0.0
          %733 = vmatprep.subr.mxu0 0.0
          %734 = vmatpush1.msra.mxu0 0.0
          %735 = vmatprep.subr.mxu0 0.0
          %736 = vmatpush1.msra.mxu0 0.0
          %737 = vmatprep.subr.mxu0 0.0
          %738 = vmatpush1.msra.mxu0 0.0
          %739 = vmatprep.subr.mxu0 0.0
          %740 = vmatpush1.msra.mxu0 0.0
          %741 = vmatprep.mubr.f32.mxu0 0.0
          %742 = vmatmul.mubr.f32.gmra.mrb[0].mxu0 %v535
          %v743 = vpop.f32.mrb[0].mxu0
          %v744 = vadd.f32 %v524, %v743
          %v745 = vpop.f32.mrb[0].mxu0
          %746 = vdwg.mxu0
          %747 = vmatprep.subr.mxu0 0.0
          %748 = vmatpush1.msra.mxu0 %v501
          %749 = vmatprep.subr.mxu0 0.0
          %750 = vmatpush1.msra.mxu0 %v502
          %751 = vmatprep.subr.mxu0 0.0
          %752 = vmatpush1.msra.mxu0 %v503
          %753 = vmatprep.subr.mxu0 0.0
          %754 = vmatpush1.msra.mxu0 %v504
          %755 = vmatprep.subr.mxu0 0.0
          %756 = vmatpush1.msra.mxu0 0.0
          %757 = vmatprep.subr.mxu0 0.0
          %758 = vmatpush1.msra.mxu0 0.0
          %759 = vmatprep.subr.mxu0 0.0
          %760 = vmatpush1.msra.mxu0 0.0
          %761 = vmatprep.subr.mxu0 0.0
          %762 = vmatpush1.msra.mxu0 0.0
          %763 = vmatprep.subr.mxu0 0.0
          %764 = vmatpush1.msra.mxu0 0.0
          %765 = vmatprep.subr.mxu0 0.0
          %766 = vmatpush1.msra.mxu0 0.0
          %767 = vmatprep.subr.mxu0 0.0
          %768 = vmatpush1.msra.mxu0 0.0
          %769 = vmatprep.subr.mxu0 0.0
          %770 = vmatpush1.msra.mxu0 0.0
          %771 = vmatprep.subr.mxu0 0.0
          %772 = vmatpush1.msra.mxu0 0.0
          %773 = vmatprep.subr.mxu0 0.0
          %774 = vmatpush1.msra.mxu0 0.0
          %775 = vmatprep.subr.mxu0 0.0
          %776 = vmatpush1.msra.mxu0 0.0
          %777 = vmatprep.subr.mxu0 0.0
          %778 = vmatpush1.msra.mxu0 0.0
          %779 = vmatprep.subr.mxu0 0.0
          %780 = vmatpush1.msra.mxu0 0.0
          %781 = vmatprep.subr.mxu0 0.0
          %782 = vmatpush1.msra.mxu0 0.0
          %783 = vmatprep.subr.mxu0 0.0
          %784 = vmatpush1.msra.mxu0 0.0
          %785 = vmatprep.subr.mxu0 0.0
          %786 = vmatpush1.msra.mxu0 0.0
          %787 = vmatprep.subr.mxu0 0.0
          %788 = vmatpush1.msra.mxu0 0.0
          %789 = vmatprep.subr.mxu0 0.0
          %790 = vmatpush1.msra.mxu0 0.0
          %791 = vmatprep.subr.mxu0 0.0
          %792 = vmatpush1.msra.mxu0 0.0
          %793 = vmatprep.subr.mxu0 0.0
          %794 = vmatpush1.msra.mxu0 0.0
          %795 = vmatprep.subr.mxu0 0.0
          %796 = vmatpush1.msra.mxu0 0.0
          %797 = vmatprep.subr.mxu0 0.0
          %798 = vmatpush1.msra.mxu0 0.0
          %799 = vmatprep.subr.mxu0 0.0
          %800 = vmatpush1.msra.mxu0 0.0
          %801 = vmatprep.subr.mxu0 0.0
          %802 = vmatpush1.msra.mxu0 0.0
          %803 = vmatprep.subr.mxu0 0.0
          %804 = vmatpush1.msra.mxu0 0.0
          %805 = vmatprep.subr.mxu0 0.0
          %806 = vmatpush1.msra.mxu0 0.0
          %807 = vmatprep.subr.mxu0 0.0
          %808 = vmatpush1.msra.mxu0 0.0
          %809 = vmatprep.subr.mxu0 0.0
          %810 = vmatpush1.msra.mxu0 0.0
          %811 = vmatprep.mubr.f32.mxu0 0.0
          %812 = vmatmul.mubr.f32.gmra.mrb[0].mxu0 %v535
          %v813 = vpop.f32.mrb[0].mxu0
          %v814 = vadd.f32 %v528, %v813
          %v815 = vpop.f32.mrb[0].mxu0
          %816 = vdwg.mxu0
          %v817 = vmul.f32 %v604, 0.25
          %v818 = vmul.f32 %v674, 0.25
          %v819 = vmul.f32 %v744, 0.25
          %v820 = vmul.f32 %v814, 0.25
          %821 = vst.msk [vmem:[#allocation2] sm:$0xff] %vm483, %v817
          %822 = vst.msk [vmem:[#allocation2 + $0x8] sm:$0xff] %vm483, %v818
          %823 = vst.msk [vmem:[#allocation2 + $0x10] sm:$0xff] %vm483, %v819
          %824 = vst.msk [vmem:[#allocation2 + $0x18] sm:$0xff] %vm483, %v820
        $region68: #{tpu_custom_call.1} parent=63 // pred_fallthru
          _
        %v825 = vld [vmem:[%s462] sm:$0xff]
        %v826 = vld [vmem:[%s469] sm:$0xff]
        %v827 = vld [vmem:[%s5] sm:$0xff]
        %v828 = vld [vmem:[%s5 + $0x8] sm:$0xff]
        %v829 = vld [vmem:[%s5 + $0x10] sm:$0xff]
        %v830 = vld [vmem:[%s5 + $0x18] sm:$0xff]
        %v831 = vld [vmem:[%s5 + $0x20] sm:$0xff]
        %v832 = vld [vmem:[%s5 + $0x28] sm:$0xff]
        %v833 = vld [vmem:[%s5 + $0x30] sm:$0xff]
        %v834 = vld [vmem:[%s5 + $0x38] sm:$0xff]
        %v835 = vld [vmem:[%s5 + $0x40] sm:$0xff]
        %v836 = vld [vmem:[%s5 + $0x48] sm:$0xff]
        %v837 = vld [vmem:[%s5 + $0x50] sm:$0xff]
        %v838 = vld [vmem:[%s5 + $0x58] sm:$0xff]
        %v839 = vld [vmem:[%s5 + $0x60] sm:$0xff]
        %v840 = vld [vmem:[%s5 + $0x68] sm:$0xff]
        %v841 = vld [vmem:[%s5 + $0x70] sm:$0xff]
        %v842 = vld [vmem:[%s5 + $0x78] sm:$0xff]
        %v843 = vld [vmem:[%s6] sm:$0x1]
        %v844 = vld [vmem:[%s6 + $0x1] sm:$0x1]
        %v845 = vld [vmem:[%s6 + $0x2] sm:$0x1]
        %v846 = vld [vmem:[%s6 + $0x3] sm:$0x1]
        %v851 = vlaneseq
        %v852 = vshrl.u32 %v851, 7
        %v853 = vsub.s32 0, %v852
        %v854 = vrot.slane %v843, %v853
        %v855 = vlaneseq
        %v856 = vshrl.u32 %v855, 7
        %v857 = vsub.s32 0, %v856
        %v858 = vrot.slane %v844, %v857
        %v859 = vlaneseq
        %v860 = vshrl.u32 %v859, 7
        %v861 = vsub.s32 0, %v860
        %v862 = vrot.slane %v845, %v861
        %v863 = vlaneseq
        %v864 = vshrl.u32 %v863, 7
        %v865 = vsub.s32 0, %v864
        %v866 = vrot.slane %v846, %v865
        %vm871 = vcmask 261120
        %v873 = vsel %vm871, %v825, 0
        %875 = vmatprep.subr.mxu0 0.0
        %876 = vmatpush1.msra.mxu0 %v827
        %877 = vmatprep.subr.mxu0 0.0
        %878 = vmatpush1.msra.mxu0 %v828
        %879 = vmatprep.subr.mxu0 0.0
        %880 = vmatpush1.msra.mxu0 %v829
        %881 = vmatprep.subr.mxu0 0.0
        %882 = vmatpush1.msra.mxu0 %v830
        %883 = vmatprep.subr.mxu0 0.0
        %884 = vmatpush1.msra.mxu0 0.0
        %885 = vmatprep.subr.mxu0 0.0
        %886 = vmatpush1.msra.mxu0 0.0
        %887 = vmatprep.subr.mxu0 0.0
        %888 = vmatpush1.msra.mxu0 0.0
        %889 = vmatprep.subr.mxu0 0.0
        %890 = vmatpush1.msra.mxu0 0.0
        %891 = vmatprep.subr.mxu0 0.0
        %892 = vmatpush1.msra.mxu0 0.0
        %893 = vmatprep.subr.mxu0 0.0
        %894 = vmatpush1.msra.mxu0 0.0
        %895 = vmatprep.subr.mxu0 0.0
        %896 = vmatpush1.msra.mxu0 0.0
        %897 = vmatprep.subr.mxu0 0.0
        %898 = vmatpush1.msra.mxu0 0.0
        %899 = vmatprep.subr.mxu0 0.0
        %900 = vmatpush1.msra.mxu0 0.0
        %901 = vmatprep.subr.mxu0 0.0
        %902 = vmatpush1.msra.mxu0 0.0
        %903 = vmatprep.subr.mxu0 0.0
        %904 = vmatpush1.msra.mxu0 0.0
        %905 = vmatprep.subr.mxu0 0.0
        %906 = vmatpush1.msra.mxu0 0.0
        %907 = vmatprep.subr.mxu0 0.0
        %908 = vmatpush1.msra.mxu0 0.0
        %909 = vmatprep.subr.mxu0 0.0
        %910 = vmatpush1.msra.mxu0 0.0
        %911 = vmatprep.subr.mxu0 0.0
        %912 = vmatpush1.msra.mxu0 0.0
        %913 = vmatprep.subr.mxu0 0.0
        %914 = vmatpush1.msra.mxu0 0.0
        %915 = vmatprep.subr.mxu0 0.0
        %916 = vmatpush1.msra.mxu0 0.0
        %917 = vmatprep.subr.mxu0 0.0
        %918 = vmatpush1.msra.mxu0 0.0
        %919 = vmatprep.subr.mxu0 0.0
        %920 = vmatpush1.msra.mxu0 0.0
        %921 = vmatprep.subr.mxu0 0.0
        %922 = vmatpush1.msra.mxu0 0.0
        %923 = vmatprep.subr.mxu0 0.0
        %924 = vmatpush1.msra.mxu0 0.0
        %925 = vmatprep.subr.mxu0 0.0
        %926 = vmatpush1.msra.mxu0 0.0
        %927 = vmatprep.subr.mxu0 0.0
        %928 = vmatpush1.msra.mxu0 0.0
        %929 = vmatprep.subr.mxu0 0.0
        %930 = vmatpush1.msra.mxu0 0.0
        %931 = vmatprep.subr.mxu0 0.0
        %932 = vmatpush1.msra.mxu0 0.0
        %933 = vmatprep.subr.mxu0 0.0
        %934 = vmatpush1.msra.mxu0 0.0
        %935 = vmatprep.subr.mxu0 0.0
        %936 = vmatpush1.msra.mxu0 0.0
        %937 = vmatprep.subr.mxu0 0.0
        %938 = vmatpush1.msra.mxu0 0.0
        %939 = vmatprep.mubr.f32.mxu0 0.0
        %940 = vmatmul.mubr.f32.gmra.mrb[0].mxu0 %v873
        %v941 = vpop.f32.mrb[0].mxu0
        %v942 = vadd.f32 %v854, %v941
        %v943 = vpop.f32.mrb[0].mxu0
        %944 = vdwg.mxu0
        %945 = vmatprep.subr.mxu0 0.0
        %946 = vmatpush1.msra.mxu0 %v831
        %947 = vmatprep.subr.mxu0 0.0
        %948 = vmatpush1.msra.mxu0 %v832
        %949 = vmatprep.subr.mxu0 0.0
        %950 = vmatpush1.msra.mxu0 %v833
        %951 = vmatprep.subr.mxu0 0.0
        %952 = vmatpush1.msra.mxu0 %v834
        %953 = vmatprep.subr.mxu0 0.0
        %954 = vmatpush1.msra.mxu0 0.0
        %955 = vmatprep.subr.mxu0 0.0
        %956 = vmatpush1.msra.mxu0 0.0
        %957 = vmatprep.subr.mxu0 0.0
        %958 = vmatpush1.msra.mxu0 0.0
        %959 = vmatprep.subr.mxu0 0.0
        %960 = vmatpush1.msra.mxu0 0.0
        %961 = vmatprep.subr.mxu0 0.0
        %962 = vmatpush1.msra.mxu0 0.0
        %963 = vmatprep.subr.mxu0 0.0
        %964 = vmatpush1.msra.mxu0 0.0
        %965 = vmatprep.subr.mxu0 0.0
        %966 = vmatpush1.msra.mxu0 0.0
        %967 = vmatprep.subr.mxu0 0.0
        %968 = vmatpush1.msra.mxu0 0.0
        %969 = vmatprep.subr.mxu0 0.0
        %970 = vmatpush1.msra.mxu0 0.0
        %971 = vmatprep.subr.mxu0 0.0
        %972 = vmatpush1.msra.mxu0 0.0
        %973 = vmatprep.subr.mxu0 0.0
        %974 = vmatpush1.msra.mxu0 0.0
        %975 = vmatprep.subr.mxu0 0.0
        %976 = vmatpush1.msra.mxu0 0.0
        %977 = vmatprep.subr.mxu0 0.0
        %978 = vmatpush1.msra.mxu0 0.0
        %979 = vmatprep.subr.mxu0 0.0
        %980 = vmatpush1.msra.mxu0 0.0
        %981 = vmatprep.subr.mxu0 0.0
        %982 = vmatpush1.msra.mxu0 0.0
        %983 = vmatprep.subr.mxu0 0.0
        %984 = vmatpush1.msra.mxu0 0.0
        %985 = vmatprep.subr.mxu0 0.0
        %986 = vmatpush1.msra.mxu0 0.0
        %987 = vmatprep.subr.mxu0 0.0
        %988 = vmatpush1.msra.mxu0 0.0
        %989 = vmatprep.subr.mxu0 0.0
        %990 = vmatpush1.msra.mxu0 0.0
        %991 = vmatprep.subr.mxu0 0.0
        %992 = vmatpush1.msra.mxu0 0.0
        %993 = vmatprep.subr.mxu0 0.0
        %994 = vmatpush1.msra.mxu0 0.0
        %995 = vmatprep.subr.mxu0 0.0
        %996 = vmatpush1.msra.mxu0 0.0
        %997 = vmatprep.subr.mxu0 0.0
        %998 = vmatpush1.msra.mxu0 0.0
        %999 = vmatprep.subr.mxu0 0.0
        %1000 = vmatpush1.msra.mxu0 0.0
        %1001 = vmatprep.subr.mxu0 0.0
        %1002 = vmatpush1.msra.mxu0 0.0
        %1003 = vmatprep.subr.mxu0 0.0
        %1004 = vmatpush1.msra.mxu0 0.0
        %1005 = vmatprep.subr.mxu0 0.0
        %1006 = vmatpush1.msra.mxu0 0.0
        %1007 = vmatprep.subr.mxu0 0.0
        %1008 = vmatpush1.msra.mxu0 0.0
        %1009 = vmatprep.mubr.f32.mxu0 0.0
        %1010 = vmatmul.mubr.f32.gmra.mrb[0].mxu0 %v873
        %v1011 = vpop.f32.mrb[0].mxu0
        %v1012 = vadd.f32 %v858, %v1011
        %v1013 = vpop.f32.mrb[0].mxu0
        %1014 = vdwg.mxu0
        %1015 = vmatprep.subr.mxu0 0.0
        %1016 = vmatpush1.msra.mxu0 %v835
        %1017 = vmatprep.subr.mxu0 0.0
        %1018 = vmatpush1.msra.mxu0 %v836
        %1019 = vmatprep.subr.mxu0 0.0
        %1020 = vmatpush1.msra.mxu0 %v837
        %1021 = vmatprep.subr.mxu0 0.0
        %1022 = vmatpush1.msra.mxu0 %v838
        %1023 = vmatprep.subr.mxu0 0.0
        %1024 = vmatpush1.msra.mxu0 0.0
        %1025 = vmatprep.subr.mxu0 0.0
        %1026 = vmatpush1.msra.mxu0 0.0
        %1027 = vmatprep.subr.mxu0 0.0
        %1028 = vmatpush1.msra.mxu0 0.0
        %1029 = vmatprep.subr.mxu0 0.0
        %1030 = vmatpush1.msra.mxu0 0.0
        %1031 = vmatprep.subr.mxu0 0.0
        %1032 = vmatpush1.msra.mxu0 0.0
        %1033 = vmatprep.subr.mxu0 0.0
        %1034 = vmatpush1.msra.mxu0 0.0
        %1035 = vmatprep.subr.mxu0 0.0
        %1036 = vmatpush1.msra.mxu0 0.0
        %1037 = vmatprep.subr.mxu0 0.0
        %1038 = vmatpush1.msra.mxu0 0.0
        %1039 = vmatprep.subr.mxu0 0.0
        %1040 = vmatpush1.msra.mxu0 0.0
        %1041 = vmatprep.subr.mxu0 0.0
        %1042 = vmatpush1.msra.mxu0 0.0
        %1043 = vmatprep.subr.mxu0 0.0
        %1044 = vmatpush1.msra.mxu0 0.0
        %1045 = vmatprep.subr.mxu0 0.0
        %1046 = vmatpush1.msra.mxu0 0.0
        %1047 = vmatprep.subr.mxu0 0.0
        %1048 = vmatpush1.msra.mxu0 0.0
        %1049 = vmatprep.subr.mxu0 0.0
        %1050 = vmatpush1.msra.mxu0 0.0
        %1051 = vmatprep.subr.mxu0 0.0
        %1052 = vmatpush1.msra.mxu0 0.0
        %1053 = vmatprep.subr.mxu0 0.0
        %1054 = vmatpush1.msra.mxu0 0.0
        %1055 = vmatprep.subr.mxu0 0.0
        %1056 = vmatpush1.msra.mxu0 0.0
        %1057 = vmatprep.subr.mxu0 0.0
        %1058 = vmatpush1.msra.mxu0 0.0
        %1059 = vmatprep.subr.mxu0 0.0
        %1060 = vmatpush1.msra.mxu0 0.0
        %1061 = vmatprep.subr.mxu0 0.0
        %1062 = vmatpush1.msra.mxu0 0.0
        %1063 = vmatprep.subr.mxu0 0.0
        %1064 = vmatpush1.msra.mxu0 0.0
        %1065 = vmatprep.subr.mxu0 0.0
        %1066 = vmatpush1.msra.mxu0 0.0
        %1067 = vmatprep.subr.mxu0 0.0
        %1068 = vmatpush1.msra.mxu0 0.0
        %1069 = vmatprep.subr.mxu0 0.0
        %1070 = vmatpush1.msra.mxu0 0.0
        %1071 = vmatprep.subr.mxu0 0.0
        %1072 = vmatpush1.msra.mxu0 0.0
        %1073 = vmatprep.subr.mxu0 0.0
        %1074 = vmatpush1.msra.mxu0 0.0
        %1075 = vmatprep.subr.mxu0 0.0
        %1076 = vmatpush1.msra.mxu0 0.0
        %1077 = vmatprep.subr.mxu0 0.0
        %1078 = vmatpush1.msra.mxu0 0.0
        %1079 = vmatprep.mubr.f32.mxu0 0.0
        %1080 = vmatmul.mubr.f32.gmra.mrb[0].mxu0 %v873
        %v1081 = vpop.f32.mrb[0].mxu0
        %v1082 = vadd.f32 %v862, %v1081
        %v1083 = vpop.f32.mrb[0].mxu0
        %1084 = vdwg.mxu0
        %1085 = vmatprep.subr.mxu0 0.0
        %1086 = vmatpush1.msra.mxu0 %v839
        %1087 = vmatprep.subr.mxu0 0.0
        %1088 = vmatpush1.msra.mxu0 %v840
        %1089 = vmatprep.subr.mxu0 0.0
        %1090 = vmatpush1.msra.mxu0 %v841
        %1091 = vmatprep.subr.mxu0 0.0
        %1092 = vmatpush1.msra.mxu0 %v842
        %1093 = vmatprep.subr.mxu0 0.0
        %1094 = vmatpush1.msra.mxu0 0.0
        %1095 = vmatprep.subr.mxu0 0.0
        %1096 = vmatpush1.msra.mxu0 0.0
        %1097 = vmatprep.subr.mxu0 0.0
        %1098 = vmatpush1.msra.mxu0 0.0
        %1099 = vmatprep.subr.mxu0 0.0
        %1100 = vmatpush1.msra.mxu0 0.0
        %1101 = vmatprep.subr.mxu0 0.0
        %1102 = vmatpush1.msra.mxu0 0.0
        %1103 = vmatprep.subr.mxu0 0.0
        %1104 = vmatpush1.msra.mxu0 0.0
        %1105 = vmatprep.subr.mxu0 0.0
        %1106 = vmatpush1.msra.mxu0 0.0
        %1107 = vmatprep.subr.mxu0 0.0
        %1108 = vmatpush1.msra.mxu0 0.0
        %1109 = vmatprep.subr.mxu0 0.0
        %1110 = vmatpush1.msra.mxu0 0.0
        %1111 = vmatprep.subr.mxu0 0.0
        %1112 = vmatpush1.msra.mxu0 0.0
        %1113 = vmatprep.subr.mxu0 0.0
        %1114 = vmatpush1.msra.mxu0 0.0
        %1115 = vmatprep.subr.mxu0 0.0
        %1116 = vmatpush1.msra.mxu0 0.0
        %1117 = vmatprep.subr.mxu0 0.0
        %1118 = vmatpush1.msra.mxu0 0.0
        %1119 = vmatprep.subr.mxu0 0.0
        %1120 = vmatpush1.msra.mxu0 0.0
        %1121 = vmatprep.subr.mxu0 0.0
        %1122 = vmatpush1.msra.mxu0 0.0
        %1123 = vmatprep.subr.mxu0 0.0
        %1124 = vmatpush1.msra.mxu0 0.0
        %1125 = vmatprep.subr.mxu0 0.0
        %1126 = vmatpush1.msra.mxu0 0.0
        %1127 = vmatprep.subr.mxu0 0.0
        %1128 = vmatpush1.msra.mxu0 0.0
        %1129 = vmatprep.subr.mxu0 0.0
        %1130 = vmatpush1.msra.mxu0 0.0
        %1131 = vmatprep.subr.mxu0 0.0
        %1132 = vmatpush1.msra.mxu0 0.0
        %1133 = vmatprep.subr.mxu0 0.0
        %1134 = vmatpush1.msra.mxu0 0.0
        %1135 = vmatprep.subr.mxu0 0.0
        %1136 = vmatpush1.msra.mxu0 0.0
        %1137 = vmatprep.subr.mxu0 0.0
        %1138 = vmatpush1.msra.mxu0 0.0
        %1139 = vmatprep.subr.mxu0 0.0
        %1140 = vmatpush1.msra.mxu0 0.0
        %1141 = vmatprep.subr.mxu0 0.0
        %1142 = vmatpush1.msra.mxu0 0.0
        %1143 = vmatprep.subr.mxu0 0.0
        %1144 = vmatpush1.msra.mxu0 0.0
        %1145 = vmatprep.subr.mxu0 0.0
        %1146 = vmatpush1.msra.mxu0 0.0
        %1147 = vmatprep.subr.mxu0 0.0
        %1148 = vmatpush1.msra.mxu0 0.0
        %1149 = vmatprep.mubr.f32.mxu0 0.0
        %1150 = vmatmul.mubr.f32.gmra.mrb[0].mxu0 %v873
        %v1151 = vpop.f32.mrb[0].mxu0
        %v1152 = vadd.f32 %v866, %v1151
        %v1153 = vpop.f32.mrb[0].mxu0
        %1154 = vdwg.mxu0
        %v1155 = vld [vmem:[%s7] sm:$0xff]
        %v1156 = vld [vmem:[%s7 + $0x8] sm:$0xff]
        %v1157 = vld [vmem:[%s7 + $0x10] sm:$0xff]
        %v1158 = vld [vmem:[%s7 + $0x18] sm:$0xff]
        %v1159 = vld [vmem:[%s7 + $0x20] sm:$0xff]
        %v1160 = vld [vmem:[%s7 + $0x28] sm:$0xff]
        %v1161 = vld [vmem:[%s7 + $0x30] sm:$0xff]
        %v1162 = vld [vmem:[%s7 + $0x38] sm:$0xff]
        %v1163 = vld [vmem:[%s7 + $0x40] sm:$0xff]
        %v1164 = vld [vmem:[%s7 + $0x48] sm:$0xff]
        %v1165 = vld [vmem:[%s7 + $0x50] sm:$0xff]
        %v1166 = vld [vmem:[%s7 + $0x58] sm:$0xff]
        %v1167 = vld [vmem:[%s7 + $0x60] sm:$0xff]
        %v1168 = vld [vmem:[%s7 + $0x68] sm:$0xff]
        %v1169 = vld [vmem:[%s7 + $0x70] sm:$0xff]
        %v1170 = vld [vmem:[%s7 + $0x78] sm:$0xff]
        %v1171 = vld [vmem:[%s8] sm:$0x1]
        %v1172 = vld [vmem:[%s8 + $0x1] sm:$0x1]
        %v1173 = vld [vmem:[%s8 + $0x2] sm:$0x1]
        %v1174 = vld [vmem:[%s8 + $0x3] sm:$0x1]
        %v1179 = vlaneseq
        %v1180 = vshrl.u32 %v1179, 7
        %v1181 = vsub.s32 0, %v1180
        %v1182 = vrot.slane %v1171, %v1181
        %v1183 = vlaneseq
        %v1184 = vshrl.u32 %v1183, 7
        %v1185 = vsub.s32 0, %v1184
        %v1186 = vrot.slane %v1172, %v1185
        %v1187 = vlaneseq
        %v1188 = vshrl.u32 %v1187, 7
        %v1189 = vsub.s32 0, %v1188
        %v1190 = vrot.slane %v1173, %v1189
        %v1191 = vlaneseq
        %v1192 = vshrl.u32 %v1191, 7
        %v1193 = vsub.s32 0, %v1192
        %v1194 = vrot.slane %v1174, %v1193
        %v1200 = vsel %vm871, %v826, 0
        %1202 = vmatprep.subr.mxu0 0.0
        %1203 = vmatpush1.msra.mxu0 %v1155
        %1204 = vmatprep.subr.mxu0 0.0
        %1205 = vmatpush1.msra.mxu0 %v1156
        %1206 = vmatprep.subr.mxu0 0.0
        %1207 = vmatpush1.msra.mxu0 %v1157
        %1208 = vmatprep.subr.mxu0 0.0
        %1209 = vmatpush1.msra.mxu0 %v1158
        %1210 = vmatprep.subr.mxu0 0.0
        %1211 = vmatpush1.msra.mxu0 0.0
        %1212 = vmatprep.subr.mxu0 0.0
        %1213 = vmatpush1.msra.mxu0 0.0
        %1214 = vmatprep.subr.mxu0 0.0
        %1215 = vmatpush1.msra.mxu0 0.0
        %1216 = vmatprep.subr.mxu0 0.0
        %1217 = vmatpush1.msra.mxu0 0.0
        %1218 = vmatprep.subr.mxu0 0.0
        %1219 = vmatpush1.msra.mxu0 0.0
        %1220 = vmatprep.subr.mxu0 0.0
        %1221 = vmatpush1.msra.mxu0 0.0
        %1222 = vmatprep.subr.mxu0 0.0
        %1223 = vmatpush1.msra.mxu0 0.0
        %1224 = vmatprep.subr.mxu0 0.0
        %1225 = vmatpush1.msra.mxu0 0.0
        %1226 = vmatprep.subr.mxu0 0.0
        %1227 = vmatpush1.msra.mxu0 0.0
        %1228 = vmatprep.subr.mxu0 0.0
        %1229 = vmatpush1.msra.mxu0 0.0
        %1230 = vmatprep.subr.mxu0 0.0
        %1231 = vmatpush1.msra.mxu0 0.0
        %1232 = vmatprep.subr.mxu0 0.0
        %1233 = vmatpush1.msra.mxu0 0.0
        %1234 = vmatprep.subr.mxu0 0.0
        %1235 = vmatpush1.msra.mxu0 0.0
        %1236 = vmatprep.subr.mxu0 0.0
        %1237 = vmatpush1.msra.mxu0 0.0
        %1238 = vmatprep.subr.mxu0 0.0
        %1239 = vmatpush1.msra.mxu0 0.0
        %1240 = vmatprep.subr.mxu0 0.0
        %1241 = vmatpush1.msra.mxu0 0.0
        %1242 = vmatprep.subr.mxu0 0.0
        %1243 = vmatpush1.msra.mxu0 0.0
        %1244 = vmatprep.subr.mxu0 0.0
        %1245 = vmatpush1.msra.mxu0 0.0
        %1246 = vmatprep.subr.mxu0 0.0
        %1247 = vmatpush1.msra.mxu0 0.0
        %1248 = vmatprep.subr.mxu0 0.0
        %1249 = vmatpush1.msra.mxu0 0.0
        %1250 = vmatprep.subr.mxu0 0.0
        %1251 = vmatpush1.msra.mxu0 0.0
        %1252 = vmatprep.subr.mxu0 0.0
        %1253 = vmatpush1.msra.mxu0 0.0
        %1254 = vmatprep.subr.mxu0 0.0
        %1255 = vmatpush1.msra.mxu0 0.0
        %1256 = vmatprep.subr.mxu0 0.0
        %1257 = vmatpush1.msra.mxu0 0.0
        %1258 = vmatprep.subr.mxu0 0.0
        %1259 = vmatpush1.msra.mxu0 0.0
        %1260 = vmatprep.subr.mxu0 0.0
        %1261 = vmatpush1.msra.mxu0 0.0
        %1262 = vmatprep.subr.mxu0 0.0
        %1263 = vmatpush1.msra.mxu0 0.0
        %1264 = vmatprep.subr.mxu0 0.0
        %1265 = vmatpush1.msra.mxu0 0.0
        %1266 = vmatprep.mubr.f32.mxu0 0.0
        %1267 = vmatmul.mubr.f32.gmra.mrb[0].mxu0 %v1200
        %v1268 = vpop.f32.mrb[0].mxu0
        %v1269 = vadd.f32 %v1182, %v1268
        %v1270 = vpop.f32.mrb[0].mxu0
        %1271 = vdwg.mxu0
        %1272 = vmatprep.subr.mxu0 0.0
        %1273 = vmatpush1.msra.mxu0 %v1159
        %1274 = vmatprep.subr.mxu0 0.0
        %1275 = vmatpush1.msra.mxu0 %v1160
        %1276 = vmatprep.subr.mxu0 0.0
        %1277 = vmatpush1.msra.mxu0 %v1161
        %1278 = vmatprep.subr.mxu0 0.0
        %1279 = vmatpush1.msra.mxu0 %v1162
        %1280 = vmatprep.subr.mxu0 0.0
        %1281 = vmatpush1.msra.mxu0 0.0
        %1282 = vmatprep.subr.mxu0 0.0
        %1283 = vmatpush1.msra.mxu0 0.0
        %1284 = vmatprep.subr.mxu0 0.0
        %1285 = vmatpush1.msra.mxu0 0.0
        %1286 = vmatprep.subr.mxu0 0.0
        %1287 = vmatpush1.msra.mxu0 0.0
        %1288 = vmatprep.subr.mxu0 0.0
        %1289 = vmatpush1.msra.mxu0 0.0
        %1290 = vmatprep.subr.mxu0 0.0
        %1291 = vmatpush1.msra.mxu0 0.0
        %1292 = vmatprep.subr.mxu0 0.0
        %1293 = vmatpush1.msra.mxu0 0.0
        %1294 = vmatprep.subr.mxu0 0.0
        %1295 = vmatpush1.msra.mxu0 0.0
        %1296 = vmatprep.subr.mxu0 0.0
        %1297 = vmatpush1.msra.mxu0 0.0
        %1298 = vmatprep.subr.mxu0 0.0
        %1299 = vmatpush1.msra.mxu0 0.0
        %1300 = vmatprep.subr.mxu0 0.0
        %1301 = vmatpush1.msra.mxu0 0.0
        %1302 = vmatprep.subr.mxu0 0.0
        %1303 = vmatpush1.msra.mxu0 0.0
        %1304 = vmatprep.subr.mxu0 0.0
        %1305 = vmatpush1.msra.mxu0 0.0
        %1306 = vmatprep.subr.mxu0 0.0
        %1307 = vmatpush1.msra.mxu0 0.0
        %1308 = vmatprep.subr.mxu0 0.0
        %1309 = vmatpush1.msra.mxu0 0.0
        %1310 = vmatprep.subr.mxu0 0.0
        %1311 = vmatpush1.msra.mxu0 0.0
        %1312 = vmatprep.subr.mxu0 0.0
        %1313 = vmatpush1.msra.mxu0 0.0
        %1314 = vmatprep.subr.mxu0 0.0
        %1315 = vmatpush1.msra.mxu0 0.0
        %1316 = vmatprep.subr.mxu0 0.0
        %1317 = vmatpush1.msra.mxu0 0.0
        %1318 = vmatprep.subr.mxu0 0.0
        %1319 = vmatpush1.msra.mxu0 0.0
        %1320 = vmatprep.subr.mxu0 0.0
        %1321 = vmatpush1.msra.mxu0 0.0
        %1322 = vmatprep.subr.mxu0 0.0
        %1323 = vmatpush1.msra.mxu0 0.0
        %1324 = vmatprep.subr.mxu0 0.0
        %1325 = vmatpush1.msra.mxu0 0.0
        %1326 = vmatprep.subr.mxu0 0.0
        %1327 = vmatpush1.msra.mxu0 0.0
        %1328 = vmatprep.subr.mxu0 0.0
        %1329 = vmatpush1.msra.mxu0 0.0
        %1330 = vmatprep.subr.mxu0 0.0
        %1331 = vmatpush1.msra.mxu0 0.0
        %1332 = vmatprep.subr.mxu0 0.0
        %1333 = vmatpush1.msra.mxu0 0.0
        %1334 = vmatprep.subr.mxu0 0.0
        %1335 = vmatpush1.msra.mxu0 0.0
        %1336 = vmatprep.mubr.f32.mxu0 0.0
        %1337 = vmatmul.mubr.f32.gmra.mrb[0].mxu0 %v1200
        %v1338 = vpop.f32.mrb[0].mxu0
        %v1339 = vadd.f32 %v1186, %v1338
        %v1340 = vpop.f32.mrb[0].mxu0
        %1341 = vdwg.mxu0
        %1342 = vmatprep.subr.mxu0 0.0
        %1343 = vmatpush1.msra.mxu0 %v1163
        %1344 = vmatprep.subr.mxu0 0.0
        %1345 = vmatpush1.msra.mxu0 %v1164
        %1346 = vmatprep.subr.mxu0 0.0
        %1347 = vmatpush1.msra.mxu0 %v1165
        %1348 = vmatprep.subr.mxu0 0.0
        %1349 = vmatpush1.msra.mxu0 %v1166
        %1350 = vmatprep.subr.mxu0 0.0
        %1351 = vmatpush1.msra.mxu0 0.0
        %1352 = vmatprep.subr.mxu0 0.0
        %1353 = vmatpush1.msra.mxu0 0.0
        %1354 = vmatprep.subr.mxu0 0.0
        %1355 = vmatpush1.msra.mxu0 0.0
        %1356 = vmatprep.subr.mxu0 0.0
        %1357 = vmatpush1.msra.mxu0 0.0
        %1358 = vmatprep.subr.mxu0 0.0
        %1359 = vmatpush1.msra.mxu0 0.0
        %1360 = vmatprep.subr.mxu0 0.0
        %1361 = vmatpush1.msra.mxu0 0.0
        %1362 = vmatprep.subr.mxu0 0.0
        %1363 = vmatpush1.msra.mxu0 0.0
        %1364 = vmatprep.subr.mxu0 0.0
        %1365 = vmatpush1.msra.mxu0 0.0
        %1366 = vmatprep.subr.mxu0 0.0
        %1367 = vmatpush1.msra.mxu0 0.0
        %1368 = vmatprep.subr.mxu0 0.0
        %1369 = vmatpush1.msra.mxu0 0.0
        %1370 = vmatprep.subr.mxu0 0.0
        %1371 = vmatpush1.msra.mxu0 0.0
        %1372 = vmatprep.subr.mxu0 0.0
        %1373 = vmatpush1.msra.mxu0 0.0
        %1374 = vmatprep.subr.mxu0 0.0
        %1375 = vmatpush1.msra.mxu0 0.0
        %1376 = vmatprep.subr.mxu0 0.0
        %1377 = vmatpush1.msra.mxu0 0.0
        %1378 = vmatprep.subr.mxu0 0.0
        %1379 = vmatpush1.msra.mxu0 0.0
        %1380 = vmatprep.subr.mxu0 0.0
        %1381 = vmatpush1.msra.mxu0 0.0
        %1382 = vmatprep.subr.mxu0 0.0
        %1383 = vmatpush1.msra.mxu0 0.0
        %1384 = vmatprep.subr.mxu0 0.0
        %1385 = vmatpush1.msra.mxu0 0.0
        %1386 = vmatprep.subr.mxu0 0.0
        %1387 = vmatpush1.msra.mxu0 0.0
        %1388 = vmatprep.subr.mxu0 0.0
        %1389 = vmatpush1.msra.mxu0 0.0
        %1390 = vmatprep.subr.mxu0 0.0
        %1391 = vmatpush1.msra.mxu0 0.0
        %1392 = vmatprep.subr.mxu0 0.0
        %1393 = vmatpush1.msra.mxu0 0.0
        %1394 = vmatprep.subr.mxu0 0.0
        %1395 = vmatpush1.msra.mxu0 0.0
        %1396 = vmatprep.subr.mxu0 0.0
        %1397 = vmatpush1.msra.mxu0 0.0
        %1398 = vmatprep.subr.mxu0 0.0
        %1399 = vmatpush1.msra.mxu0 0.0
        %1400 = vmatprep.subr.mxu0 0.0
        %1401 = vmatpush1.msra.mxu0 0.0
        %1402 = vmatprep.subr.mxu0 0.0
        %1403 = vmatpush1.msra.mxu0 0.0
        %1404 = vmatprep.subr.mxu0 0.0
        %1405 = vmatpush1.msra.mxu0 0.0
        %1406 = vmatprep.mubr.f32.mxu0 0.0
        %1407 = vmatmul.mubr.f32.gmra.mrb[0].mxu0 %v1200
        %v1408 = vpop.f32.mrb[0].mxu0
        %v1409 = vadd.f32 %v1190, %v1408
        %v1410 = vpop.f32.mrb[0].mxu0
        %1411 = vdwg.mxu0
        %1412 = vmatprep.subr.mxu0 0.0
        %1413 = vmatpush1.msra.mxu0 %v1167
        %1414 = vmatprep.subr.mxu0 0.0
        %1415 = vmatpush1.msra.mxu0 %v1168
        %1416 = vmatprep.subr.mxu0 0.0
        %1417 = vmatpush1.msra.mxu0 %v1169
        %1418 = vmatprep.subr.mxu0 0.0
        %1419 = vmatpush1.msra.mxu0 %v1170
        %1420 = vmatprep.subr.mxu0 0.0
        %1421 = vmatpush1.msra.mxu0 0.0
        %1422 = vmatprep.subr.mxu0 0.0
        %1423 = vmatpush1.msra.mxu0 0.0
        %1424 = vmatprep.subr.mxu0 0.0
        %1425 = vmatpush1.msra.mxu0 0.0
        %1426 = vmatprep.subr.mxu0 0.0
        %1427 = vmatpush1.msra.mxu0 0.0
        %1428 = vmatprep.subr.mxu0 0.0
        %1429 = vmatpush1.msra.mxu0 0.0
        %1430 = vmatprep.subr.mxu0 0.0
        %1431 = vmatpush1.msra.mxu0 0.0
        %1432 = vmatprep.subr.mxu0 0.0
        %1433 = vmatpush1.msra.mxu0 0.0
        %1434 = vmatprep.subr.mxu0 0.0
        %1435 = vmatpush1.msra.mxu0 0.0
        %1436 = vmatprep.subr.mxu0 0.0
        %1437 = vmatpush1.msra.mxu0 0.0
        %1438 = vmatprep.subr.mxu0 0.0
        %1439 = vmatpush1.msra.mxu0 0.0
        %1440 = vmatprep.subr.mxu0 0.0
        %1441 = vmatpush1.msra.mxu0 0.0
        %1442 = vmatprep.subr.mxu0 0.0
        %1443 = vmatpush1.msra.mxu0 0.0
        %1444 = vmatprep.subr.mxu0 0.0
        %1445 = vmatpush1.msra.mxu0 0.0
        %1446 = vmatprep.subr.mxu0 0.0
        %1447 = vmatpush1.msra.mxu0 0.0
        %1448 = vmatprep.subr.mxu0 0.0
        %1449 = vmatpush1.msra.mxu0 0.0
        %1450 = vmatprep.subr.mxu0 0.0
        %1451 = vmatpush1.msra.mxu0 0.0
        %1452 = vmatprep.subr.mxu0 0.0
        %1453 = vmatpush1.msra.mxu0 0.0
        %1454 = vmatprep.subr.mxu0 0.0
        %1455 = vmatpush1.msra.mxu0 0.0
        %1456 = vmatprep.subr.mxu0 0.0
        %1457 = vmatpush1.msra.mxu0 0.0
        %1458 = vmatprep.subr.mxu0 0.0
        %1459 = vmatpush1.msra.mxu0 0.0
        %1460 = vmatprep.subr.mxu0 0.0
        %1461 = vmatpush1.msra.mxu0 0.0
        %1462 = vmatprep.subr.mxu0 0.0
        %1463 = vmatpush1.msra.mxu0 0.0
        %1464 = vmatprep.subr.mxu0 0.0
        %1465 = vmatpush1.msra.mxu0 0.0
        %1466 = vmatprep.subr.mxu0 0.0
        %1467 = vmatpush1.msra.mxu0 0.0
        %1468 = vmatprep.subr.mxu0 0.0
        %1469 = vmatpush1.msra.mxu0 0.0
        %1470 = vmatprep.subr.mxu0 0.0
        %1471 = vmatpush1.msra.mxu0 0.0
        %1472 = vmatprep.subr.mxu0 0.0
        %1473 = vmatpush1.msra.mxu0 0.0
        %1474 = vmatprep.subr.mxu0 0.0
        %1475 = vmatpush1.msra.mxu0 0.0
        %1476 = vmatprep.mubr.f32.mxu0 0.0
        %1477 = vmatmul.mubr.f32.gmra.mrb[0].mxu0 %v1200
        %v1478 = vpop.f32.mrb[0].mxu0
        %v1479 = vadd.f32 %v1194, %v1478
        %v1480 = vpop.f32.mrb[0].mxu0
        %1481 = vdwg.mxu0
        %v1482 = vld [vmem:[#allocation2] sm:$0xff]
        %v1483 = vld [vmem:[#allocation2 + $0x8] sm:$0xff]
        %v1484 = vld [vmem:[#allocation2 + $0x10] sm:$0xff]
        %v1485 = vld [vmem:[#allocation2 + $0x18] sm:$0xff]
        %vm1486 = vcmask 130048
        %v1488 = vsel %vm1486, %v1482, 0
        %v1491 = vsel %vm1486, %v942, 0
        %1493 = vmatprep.subr.mxu0 0.0
        %1494 = vmatpush1.xpose.msra.mxu0 %v1491
        %1495 = vmatprep.subr.mxu0 0.0
        %1496 = vmatpush1.xpose.msra.mxu0 0.0
        %1497 = vmatprep.subr.mxu0 0.0
        %1498 = vmatpush1.xpose.msra.mxu0 0.0
        %1499 = vmatprep.subr.mxu0 0.0
        %1500 = vmatpush1.xpose.msra.mxu0 0.0
        %1501 = vmatprep.subr.mxu0 0.0
        %1502 = vmatpush1.xpose.msra.mxu0 0.0
        %1503 = vmatprep.subr.mxu0 0.0
        %1504 = vmatpush1.xpose.msra.mxu0 0.0
        %1505 = vmatprep.subr.mxu0 0.0
        %1506 = vmatpush1.xpose.msra.mxu0 0.0
        %1507 = vmatprep.subr.mxu0 0.0
        %1508 = vmatpush1.xpose.msra.mxu0 0.0
        %1509 = vmatprep.subr.mxu0 0.0
        %1510 = vmatpush1.xpose.msra.mxu0 0.0
        %1511 = vmatprep.subr.mxu0 0.0
        %1512 = vmatpush1.xpose.msra.mxu0 0.0
        %1513 = vmatprep.subr.mxu0 0.0
        %1514 = vmatpush1.xpose.msra.mxu0 0.0
        %1515 = vmatprep.subr.mxu0 0.0
        %1516 = vmatpush1.xpose.msra.mxu0 0.0
        %1517 = vmatprep.subr.mxu0 0.0
        %1518 = vmatpush1.xpose.msra.mxu0 0.0
        %1519 = vmatprep.subr.mxu0 0.0
        %1520 = vmatpush1.xpose.msra.mxu0 0.0
        %1521 = vmatprep.subr.mxu0 0.0
        %1522 = vmatpush1.xpose.msra.mxu0 0.0
        %1523 = vmatprep.subr.mxu0 0.0
        %1524 = vmatpush1.xpose.msra.mxu0 0.0
        %1525 = vmatprep.subr.mxu0 0.0
        %1526 = vmatpush1.xpose.msra.mxu0 0.0
        %1527 = vmatprep.subr.mxu0 0.0
        %1528 = vmatpush1.xpose.msra.mxu0 0.0
        %1529 = vmatprep.subr.mxu0 0.0
        %1530 = vmatpush1.xpose.msra.mxu0 0.0
        %1531 = vmatprep.subr.mxu0 0.0
        %1532 = vmatpush1.xpose.msra.mxu0 0.0
        %1533 = vmatprep.subr.mxu0 0.0
        %1534 = vmatpush1.xpose.msra.mxu0 0.0
        %1535 = vmatprep.subr.mxu0 0.0
        %1536 = vmatpush1.xpose.msra.mxu0 0.0
        %1537 = vmatprep.subr.mxu0 0.0
        %1538 = vmatpush1.xpose.msra.mxu0 0.0
        %1539 = vmatprep.subr.mxu0 0.0
        %1540 = vmatpush1.xpose.msra.mxu0 0.0
        %1541 = vmatprep.subr.mxu0 0.0
        %1542 = vmatpush1.xpose.msra.mxu0 0.0
        %1543 = vmatprep.subr.mxu0 0.0
        %1544 = vmatpush1.xpose.msra.mxu0 0.0
        %1545 = vmatprep.subr.mxu0 0.0
        %1546 = vmatpush1.xpose.msra.mxu0 0.0
        %1547 = vmatprep.subr.mxu0 0.0
        %1548 = vmatpush1.xpose.msra.mxu0 0.0
        %1549 = vmatprep.subr.mxu0 0.0
        %1550 = vmatpush1.xpose.msra.mxu0 0.0
        %1551 = vmatprep.subr.mxu0 0.0
        %1552 = vmatpush1.xpose.msra.mxu0 0.0
        %1553 = vmatprep.subr.mxu0 0.0
        %1554 = vmatpush1.xpose.msra.mxu0 0.0
        %1555 = vmatprep.subr.mxu0 0.0
        %1556 = vmatpush1.xpose.msra.mxu0 0.0
        %1557 = vmatprep.mubr.f32.mxu0 0.0
        %1558 = vmatmul.mubr.f32.gmra.mrb[0].mxu0 %v1488
        %v1559 = vpop.f32.mrb[0].mxu0
        %v1560 = vadd.f32 0.0, %v1559
        %v1561 = vpop.f32.mrb[0].mxu0
        %1562 = vdwg.mxu0
        %v1564 = vsel %vm1486, %v1483, 0
        %v1567 = vsel %vm1486, %v1012, 0
        %1569 = vmatprep.subr.mxu0 0.0
        %1570 = vmatpush1.xpose.msra.mxu0 %v1567
        %1571 = vmatprep.subr.mxu0 0.0
        %1572 = vmatpush1.xpose.msra.mxu0 0.0
        %1573 = vmatprep.subr.mxu0 0.0
        %1574 = vmatpush1.xpose.msra.mxu0 0.0
        %1575 = vmatprep.subr.mxu0 0.0
        %1576 = vmatpush1.xpose.msra.mxu0 0.0
        %1577 = vmatprep.subr.mxu0 0.0
        %1578 = vmatpush1.xpose.msra.mxu0 0.0
        %1579 = vmatprep.subr.mxu0 0.0
        %1580 = vmatpush1.xpose.msra.mxu0 0.0
        %1581 = vmatprep.subr.mxu0 0.0
        %1582 = vmatpush1.xpose.msra.mxu0 0.0
        %1583 = vmatprep.subr.mxu0 0.0
        %1584 = vmatpush1.xpose.msra.mxu0 0.0
        %1585 = vmatprep.subr.mxu0 0.0
        %1586 = vmatpush1.xpose.msra.mxu0 0.0
        %1587 = vmatprep.subr.mxu0 0.0
        %1588 = vmatpush1.xpose.msra.mxu0 0.0
        %1589 = vmatprep.subr.mxu0 0.0
        %1590 = vmatpush1.xpose.msra.mxu0 0.0
        %1591 = vmatprep.subr.mxu0 0.0
        %1592 = vmatpush1.xpose.msra.mxu0 0.0
        %1593 = vmatprep.subr.mxu0 0.0
        %1594 = vmatpush1.xpose.msra.mxu0 0.0
        %1595 = vmatprep.subr.mxu0 0.0
        %1596 = vmatpush1.xpose.msra.mxu0 0.0
        %1597 = vmatprep.subr.mxu0 0.0
        %1598 = vmatpush1.xpose.msra.mxu0 0.0
        %1599 = vmatprep.subr.mxu0 0.0
        %1600 = vmatpush1.xpose.msra.mxu0 0.0
        %1601 = vmatprep.subr.mxu0 0.0
        %1602 = vmatpush1.xpose.msra.mxu0 0.0
        %1603 = vmatprep.subr.mxu0 0.0
        %1604 = vmatpush1.xpose.msra.mxu0 0.0
        %1605 = vmatprep.subr.mxu0 0.0
        %1606 = vmatpush1.xpose.msra.mxu0 0.0
        %1607 = vmatprep.subr.mxu0 0.0
        %1608 = vmatpush1.xpose.msra.mxu0 0.0
        %1609 = vmatprep.subr.mxu0 0.0
        %1610 = vmatpush1.xpose.msra.mxu0 0.0
        %1611 = vmatprep.subr.mxu0 0.0
        %1612 = vmatpush1.xpose.msra.mxu0 0.0
        %1613 = vmatprep.subr.mxu0 0.0
        %1614 = vmatpush1.xpose.msra.mxu0 0.0
        %1615 = vmatprep.subr.mxu0 0.0
        %1616 = vmatpush1.xpose.msra.mxu0 0.0
        %1617 = vmatprep.subr.mxu0 0.0
        %1618 = vmatpush1.xpose.msra.mxu0 0.0
        %1619 = vmatprep.subr.mxu0 0.0
        %1620 = vmatpush1.xpose.msra.mxu0 0.0
        %1621 = vmatprep.subr.mxu0 0.0
        %1622 = vmatpush1.xpose.msra.mxu0 0.0
        %1623 = vmatprep.subr.mxu0 0.0
        %1624 = vmatpush1.xpose.msra.mxu0 0.0
        %1625 = vmatprep.subr.mxu0 0.0
        %1626 = vmatpush1.xpose.msra.mxu0 0.0
        %1627 = vmatprep.subr.mxu0 0.0
        %1628 = vmatpush1.xpose.msra.mxu0 0.0
        %1629 = vmatprep.subr.mxu0 0.0
        %1630 = vmatpush1.xpose.msra.mxu0 0.0
        %1631 = vmatprep.subr.mxu0 0.0
        %1632 = vmatpush1.xpose.msra.mxu0 0.0
        %1633 = vmatprep.mubr.f32.mxu0 0.0
        %1634 = vmatmul.mubr.f32.gmra.mrb[0].mxu0 %v1564
        %v1635 = vpop.f32.mrb[0].mxu0
        %v1636 = vadd.f32 0.0, %v1635
        %v1637 = vpop.f32.mrb[0].mxu0
        %1638 = vdwg.mxu0
        %v1640 = vsel %vm1486, %v1484, 0
        %v1643 = vsel %vm1486, %v1082, 0
        %1645 = vmatprep.subr.mxu0 0.0
        %1646 = vmatpush1.xpose.msra.mxu0 %v1643
        %1647 = vmatprep.subr.mxu0 0.0
        %1648 = vmatpush1.xpose.msra.mxu0 0.0
        %1649 = vmatprep.subr.mxu0 0.0
        %1650 = vmatpush1.xpose.msra.mxu0 0.0
        %1651 = vmatprep.subr.mxu0 0.0
        %1652 = vmatpush1.xpose.msra.mxu0 0.0
        %1653 = vmatprep.subr.mxu0 0.0
        %1654 = vmatpush1.xpose.msra.mxu0 0.0
        %1655 = vmatprep.subr.mxu0 0.0
        %1656 = vmatpush1.xpose.msra.mxu0 0.0
        %1657 = vmatprep.subr.mxu0 0.0
        %1658 = vmatpush1.xpose.msra.mxu0 0.0
        %1659 = vmatprep.subr.mxu0 0.0
        %1660 = vmatpush1.xpose.msra.mxu0 0.0
        %1661 = vmatprep.subr.mxu0 0.0
        %1662 = vmatpush1.xpose.msra.mxu0 0.0
        %1663 = vmatprep.subr.mxu0 0.0
        %1664 = vmatpush1.xpose.msra.mxu0 0.0
        %1665 = vmatprep.subr.mxu0 0.0
        %1666 = vmatpush1.xpose.msra.mxu0 0.0
        %1667 = vmatprep.subr.mxu0 0.0
        %1668 = vmatpush1.xpose.msra.mxu0 0.0
        %1669 = vmatprep.subr.mxu0 0.0
        %1670 = vmatpush1.xpose.msra.mxu0 0.0
        %1671 = vmatprep.subr.mxu0 0.0
        %1672 = vmatpush1.xpose.msra.mxu0 0.0
        %1673 = vmatprep.subr.mxu0 0.0
        %1674 = vmatpush1.xpose.msra.mxu0 0.0
        %1675 = vmatprep.subr.mxu0 0.0
        %1676 = vmatpush1.xpose.msra.mxu0 0.0
        %1677 = vmatprep.subr.mxu0 0.0
        %1678 = vmatpush1.xpose.msra.mxu0 0.0
        %1679 = vmatprep.subr.mxu0 0.0
        %1680 = vmatpush1.xpose.msra.mxu0 0.0
        %1681 = vmatprep.subr.mxu0 0.0
        %1682 = vmatpush1.xpose.msra.mxu0 0.0
        %1683 = vmatprep.subr.mxu0 0.0
        %1684 = vmatpush1.xpose.msra.mxu0 0.0
        %1685 = vmatprep.subr.mxu0 0.0
        %1686 = vmatpush1.xpose.msra.mxu0 0.0
        %1687 = vmatprep.subr.mxu0 0.0
        %1688 = vmatpush1.xpose.msra.mxu0 0.0
        %1689 = vmatprep.subr.mxu0 0.0
        %1690 = vmatpush1.xpose.msra.mxu0 0.0
        %1691 = vmatprep.subr.mxu0 0.0
        %1692 = vmatpush1.xpose.msra.mxu0 0.0
        %1693 = vmatprep.subr.mxu0 0.0
        %1694 = vmatpush1.xpose.msra.mxu0 0.0
        %1695 = vmatprep.subr.mxu0 0.0
        %1696 = vmatpush1.xpose.msra.mxu0 0.0
        %1697 = vmatprep.subr.mxu0 0.0
        %1698 = vmatpush1.xpose.msra.mxu0 0.0
        %1699 = vmatprep.subr.mxu0 0.0
        %1700 = vmatpush1.xpose.msra.mxu0 0.0
        %1701 = vmatprep.subr.mxu0 0.0
        %1702 = vmatpush1.xpose.msra.mxu0 0.0
        %1703 = vmatprep.subr.mxu0 0.0
        %1704 = vmatpush1.xpose.msra.mxu0 0.0
        %1705 = vmatprep.subr.mxu0 0.0
        %1706 = vmatpush1.xpose.msra.mxu0 0.0
        %1707 = vmatprep.subr.mxu0 0.0
        %1708 = vmatpush1.xpose.msra.mxu0 0.0
        %1709 = vmatprep.mubr.f32.mxu0 0.0
        %1710 = vmatmul.mubr.f32.gmra.mrb[0].mxu0 %v1640
        %v1711 = vpop.f32.mrb[0].mxu0
        %v1712 = vadd.f32 0.0, %v1711
        %v1713 = vpop.f32.mrb[0].mxu0
        %1714 = vdwg.mxu0
        %v1716 = vsel %vm1486, %v1485, 0
        %v1719 = vsel %vm1486, %v1152, 0
        %1721 = vmatprep.subr.mxu0 0.0
        %1722 = vmatpush1.xpose.msra.mxu0 %v1719
        %1723 = vmatprep.subr.mxu0 0.0
        %1724 = vmatpush1.xpose.msra.mxu0 0.0
        %1725 = vmatprep.subr.mxu0 0.0
        %1726 = vmatpush1.xpose.msra.mxu0 0.0
        %1727 = vmatprep.subr.mxu0 0.0
        %1728 = vmatpush1.xpose.msra.mxu0 0.0
        %1729 = vmatprep.subr.mxu0 0.0
        %1730 = vmatpush1.xpose.msra.mxu0 0.0
        %1731 = vmatprep.subr.mxu0 0.0
        %1732 = vmatpush1.xpose.msra.mxu0 0.0
        %1733 = vmatprep.subr.mxu0 0.0
        %1734 = vmatpush1.xpose.msra.mxu0 0.0
        %1735 = vmatprep.subr.mxu0 0.0
        %1736 = vmatpush1.xpose.msra.mxu0 0.0
        %1737 = vmatprep.subr.mxu0 0.0
        %1738 = vmatpush1.xpose.msra.mxu0 0.0
        %1739 = vmatprep.subr.mxu0 0.0
        %1740 = vmatpush1.xpose.msra.mxu0 0.0
        %1741 = vmatprep.subr.mxu0 0.0
        %1742 = vmatpush1.xpose.msra.mxu0 0.0
        %1743 = vmatprep.subr.mxu0 0.0
        %1744 = vmatpush1.xpose.msra.mxu0 0.0
        %1745 = vmatprep.subr.mxu0 0.0
        %1746 = vmatpush1.xpose.msra.mxu0 0.0
        %1747 = vmatprep.subr.mxu0 0.0
        %1748 = vmatpush1.xpose.msra.mxu0 0.0
        %1749 = vmatprep.subr.mxu0 0.0
        %1750 = vmatpush1.xpose.msra.mxu0 0.0
        %1751 = vmatprep.subr.mxu0 0.0
        %1752 = vmatpush1.xpose.msra.mxu0 0.0
        %1753 = vmatprep.subr.mxu0 0.0
        %1754 = vmatpush1.xpose.msra.mxu0 0.0
        %1755 = vmatprep.subr.mxu0 0.0
        %1756 = vmatpush1.xpose.msra.mxu0 0.0
        %1757 = vmatprep.subr.mxu0 0.0
        %1758 = vmatpush1.xpose.msra.mxu0 0.0
        %1759 = vmatprep.subr.mxu0 0.0
        %1760 = vmatpush1.xpose.msra.mxu0 0.0
        %1761 = vmatprep.subr.mxu0 0.0
        %1762 = vmatpush1.xpose.msra.mxu0 0.0
        %1763 = vmatprep.subr.mxu0 0.0
        %1764 = vmatpush1.xpose.msra.mxu0 0.0
        %1765 = vmatprep.subr.mxu0 0.0
        %1766 = vmatpush1.xpose.msra.mxu0 0.0
        %1767 = vmatprep.subr.mxu0 0.0
        %1768 = vmatpush1.xpose.msra.mxu0 0.0
        %1769 = vmatprep.subr.mxu0 0.0
        %1770 = vmatpush1.xpose.msra.mxu0 0.0
        %1771 = vmatprep.subr.mxu0 0.0
        %1772 = vmatpush1.xpose.msra.mxu0 0.0
        %1773 = vmatprep.subr.mxu0 0.0
        %1774 = vmatpush1.xpose.msra.mxu0 0.0
        %1775 = vmatprep.subr.mxu0 0.0
        %1776 = vmatpush1.xpose.msra.mxu0 0.0
        %1777 = vmatprep.subr.mxu0 0.0
        %1778 = vmatpush1.xpose.msra.mxu0 0.0
        %1779 = vmatprep.subr.mxu0 0.0
        %1780 = vmatpush1.xpose.msra.mxu0 0.0
        %1781 = vmatprep.subr.mxu0 0.0
        %1782 = vmatpush1.xpose.msra.mxu0 0.0
        %1783 = vmatprep.subr.mxu0 0.0
        %1784 = vmatpush1.xpose.msra.mxu0 0.0
        %1785 = vmatprep.mubr.f32.mxu0 0.0
        %1786 = vmatmul.mubr.f32.gmra.mrb[0].mxu0 %v1716
        %v1787 = vpop.f32.mrb[0].mxu0
        %v1788 = vadd.f32 0.0, %v1787
        %v1789 = vpop.f32.mrb[0].mxu0
        %1790 = vdwg.mxu0
        %v1791 = vld [vmem:[#allocation3] sm:$0xff]
        %v1792 = vld [vmem:[#allocation3 + $0x8] sm:$0xff]
        %v1793 = vld [vmem:[#allocation3 + $0x10] sm:$0xff]
        %v1794 = vld [vmem:[#allocation3 + $0x18] sm:$0xff]
        %vm1795 = vcmask 64512
        %v1796 = vsel %vm1795, %v1560, -inf
        %1797 = vmax.xlane.f32.xlu0 %v1796
        %v1798 = vpop.xlane.xlu0 %1797
        %v1799 = vsel %vm1795, %v1636, -inf
        %1800 = vmax.xlane.f32.xlu0 %v1799
        %v1801 = vpop.xlane.xlu0 %1800
        %v1802 = vsel %vm1795, %v1712, -inf
        %1803 = vmax.xlane.f32.xlu0 %v1802
        %v1804 = vpop.xlane.xlu0 %1803
        %v1805 = vsel %vm1795, %v1788, -inf
        %1806 = vmax.xlane.f32.xlu0 %v1805
        %v1807 = vpop.xlane.xlu0 %1806
        %v1808 = vmax.f32 %v1791, %v1798
        %v1809 = vmax.f32 %v1792, %v1801
        %v1810 = vmax.f32 %v1793, %v1804
        %v1811 = vmax.f32 %v1794, %v1807
        %v1812 = vsub.f32 %v1791, %v1808
        %v1813 = vsub.f32 %v1792, %v1809
        %v1814 = vsub.f32 %v1793, %v1810
        %v1815 = vsub.f32 %v1794, %v1811
        %v1816 = vmul.f32 %v1812, 1.442695
        %v1817 = vpow.pop %v1816
        %v1818 = vmul.f32 %v1813, 1.442695
        %v1819 = vpow.pop %v1818
        %v1820 = vmul.f32 %v1814, 1.442695
        %v1821 = vpow.pop %v1820
        %v1822 = vmul.f32 %v1815, 1.442695
        %v1823 = vpow.pop %v1822
        %1825 = vset.pattern.permute.xlu0 0
        %1826 = vperm.xlu0 %1825, %v1808
        %v1827 = vpop.permute.xlu0 %1826
        %1830 = vset.pattern.permute.xlu0 0
        %1831 = vperm.xlu0 %1830, %v1809
        %v1832 = vpop.permute.xlu0 %1831
        %1835 = vset.pattern.permute.xlu0 0
        %1836 = vperm.xlu0 %1835, %v1810
        %v1837 = vpop.permute.xlu0 %1836
        %1840 = vset.pattern.permute.xlu0 0
        %1841 = vperm.xlu0 %1840, %v1811
        %v1842 = vpop.permute.xlu0 %1841
        %v1844 = vsub.f32 %v1560, %v1827
        %v1845 = vsub.f32 %v1636, %v1832
        %v1846 = vsub.f32 %v1712, %v1837
        %v1847 = vsub.f32 %v1788, %v1842
        %v1848 = vmul.f32 %v1844, 1.442695
        %v1849 = vpow.pop %v1848
        %v1850 = vmul.f32 %v1845, 1.442695
        %v1851 = vpow.pop %v1850
        %v1852 = vmul.f32 %v1846, 1.442695
        %v1853 = vpow.pop %v1852
        %v1854 = vmul.f32 %v1847, 1.442695
        %v1855 = vpow.pop %v1854
        %v1856 = vld [vmem:[#allocation4] sm:$0xff]
        %v1857 = vld [vmem:[#allocation4 + $0x8] sm:$0xff]
        %v1858 = vld [vmem:[#allocation4 + $0x10] sm:$0xff]
        %v1859 = vld [vmem:[#allocation4 + $0x18] sm:$0xff]
        %v1860 = vmul.f32 %v1817, %v1856
        %v1861 = vmul.f32 %v1819, %v1857
        %v1862 = vmul.f32 %v1821, %v1858
        %v1863 = vmul.f32 %v1823, %v1859
        %v1864 = vsel %vm1795, %v1849, 0.0
        %1865 = vadd.xlane.f32.xlu0 %v1864
        %v1866 = vpop.xlane.xlu0 %1865
        %v1867 = vsel %vm1795, %v1851, 0.0
        %1868 = vadd.xlane.f32.xlu0 %v1867
        %v1869 = vpop.xlane.xlu0 %1868
        %v1870 = vsel %vm1795, %v1853, 0.0
        %1871 = vadd.xlane.f32.xlu0 %v1870
        %v1872 = vpop.xlane.xlu0 %1871
        %v1873 = vsel %vm1795, %v1855, 0.0
        %1874 = vadd.xlane.f32.xlu0 %v1873
        %v1875 = vpop.xlane.xlu0 %1874
        %v1876 = vadd.f32 %v1860, %v1866
        %v1877 = vadd.f32 %v1861, %v1869
        %v1878 = vadd.f32 %v1862, %v1872
        %v1879 = vadd.f32 %v1863, %v1875
        %vm1880 = vcmask 7168
        %1881 = vst.msk [vmem:[#allocation4] sm:$0xff] %vm1880, %v1876
        %1882 = vst.msk [vmem:[#allocation4 + $0x8] sm:$0xff] %vm1880, %v1877
        %1883 = vst.msk [vmem:[#allocation4 + $0x10] sm:$0xff] %vm1880, %v1878
        %1884 = vst.msk [vmem:[#allocation4 + $0x18] sm:$0xff] %vm1880, %v1879
        %v1885 = vld [vmem:[#allocation5] sm:$0xff]
        %v1886 = vld [vmem:[#allocation5 + $0x8] sm:$0xff]
        %v1887 = vld [vmem:[#allocation5 + $0x10] sm:$0xff]
        %v1888 = vld [vmem:[#allocation5 + $0x18] sm:$0xff]
        %1890 = vset.pattern.permute.xlu0 0
        %1891 = vperm.xlu0 %1890, %v1817
        %v1892 = vpop.permute.xlu0 %1891
        %1895 = vset.pattern.permute.xlu0 0
        %1896 = vperm.xlu0 %1895, %v1819
        %v1897 = vpop.permute.xlu0 %1896
        %1900 = vset.pattern.permute.xlu0 0
        %1901 = vperm.xlu0 %1900, %v1821
        %v1902 = vpop.permute.xlu0 %1901
        %1905 = vset.pattern.permute.xlu0 0
        %1906 = vperm.xlu0 %1905, %v1823
        %v1907 = vpop.permute.xlu0 %1906
        %v1909 = vmul.f32 %v1892, %v1885
        %v1910 = vmul.f32 %v1897, %v1886
        %v1911 = vmul.f32 %v1902, %v1887
        %v1912 = vmul.f32 %v1907, %v1888
        %v1914 = vsel %vm1795, %v1849, 0
        %1916 = vmatprep.subr.mxu0 0.0
        %1917 = vmatpush1.msra.mxu0 %v1269
        %1918 = vmatprep.subr.mxu0 0.0
        %1919 = vmatpush1.msra.mxu0 0.0
        %1920 = vmatprep.subr.mxu0 0.0
        %1921 = vmatpush1.msra.mxu0 0.0
        %1922 = vmatprep.subr.mxu0 0.0
        %1923 = vmatpush1.msra.mxu0 0.0
        %1924 = vmatprep.subr.mxu0 0.0
        %1925 = vmatpush1.msra.mxu0 0.0
        %1926 = vmatprep.subr.mxu0 0.0
        %1927 = vmatpush1.msra.mxu0 0.0
        %1928 = vmatprep.subr.mxu0 0.0
        %1929 = vmatpush1.msra.mxu0 0.0
        %1930 = vmatprep.subr.mxu0 0.0
        %1931 = vmatpush1.msra.mxu0 0.0
        %1932 = vmatprep.subr.mxu0 0.0
        %1933 = vmatpush1.msra.mxu0 0.0
        %1934 = vmatprep.subr.mxu0 0.0
        %1935 = vmatpush1.msra.mxu0 0.0
        %1936 = vmatprep.subr.mxu0 0.0
        %1937 = vmatpush1.msra.mxu0 0.0
        %1938 = vmatprep.subr.mxu0 0.0
        %1939 = vmatpush1.msra.mxu0 0.0
        %1940 = vmatprep.subr.mxu0 0.0
        %1941 = vmatpush1.msra.mxu0 0.0
        %1942 = vmatprep.subr.mxu0 0.0
        %1943 = vmatpush1.msra.mxu0 0.0
        %1944 = vmatprep.subr.mxu0 0.0
        %1945 = vmatpush1.msra.mxu0 0.0
        %1946 = vmatprep.subr.mxu0 0.0
        %1947 = vmatpush1.msra.mxu0 0.0
        %1948 = vmatprep.subr.mxu0 0.0
        %1949 = vmatpush1.msra.mxu0 0.0
        %1950 = vmatprep.subr.mxu0 0.0
        %1951 = vmatpush1.msra.mxu0 0.0
        %1952 = vmatprep.subr.mxu0 0.0
        %1953 = vmatpush1.msra.mxu0 0.0
        %1954 = vmatprep.subr.mxu0 0.0
        %1955 = vmatpush1.msra.mxu0 0.0
        %1956 = vmatprep.subr.mxu0 0.0
        %1957 = vmatpush1.msra.mxu0 0.0
        %1958 = vmatprep.subr.mxu0 0.0
        %1959 = vmatpush1.msra.mxu0 0.0
        %1960 = vmatprep.subr.mxu0 0.0
        %1961 = vmatpush1.msra.mxu0 0.0
        %1962 = vmatprep.subr.mxu0 0.0
        %1963 = vmatpush1.msra.mxu0 0.0
        %1964 = vmatprep.subr.mxu0 0.0
        %1965 = vmatpush1.msra.mxu0 0.0
        %1966 = vmatprep.subr.mxu0 0.0
        %1967 = vmatpush1.msra.mxu0 0.0
        %1968 = vmatprep.subr.mxu0 0.0
        %1969 = vmatpush1.msra.mxu0 0.0
        %1970 = vmatprep.subr.mxu0 0.0
        %1971 = vmatpush1.msra.mxu0 0.0
        %1972 = vmatprep.subr.mxu0 0.0
        %1973 = vmatpush1.msra.mxu0 0.0
        %1974 = vmatprep.subr.mxu0 0.0
        %1975 = vmatpush1.msra.mxu0 0.0
        %1976 = vmatprep.subr.mxu0 0.0
        %1977 = vmatpush1.msra.mxu0 0.0
        %1978 = vmatprep.subr.mxu0 0.0
        %1979 = vmatpush1.msra.mxu0 0.0
        %1980 = vmatprep.mubr.f32.mxu0 0.0
        %1981 = vmatmul.mubr.f32.gmra.mrb[0].mxu0 %v1914
        %v1982 = vpop.f32.mrb[0].mxu0
        %v1983 = vadd.f32 0.0, %v1982
        %v1984 = vpop.f32.mrb[0].mxu0
        %1985 = vdwg.mxu0
        %v1987 = vsel %vm1795, %v1851, 0
        %1989 = vmatprep.subr.mxu0 0.0
        %1990 = vmatpush1.msra.mxu0 %v1339
        %1991 = vmatprep.subr.mxu0 0.0
        %1992 = vmatpush1.msra.mxu0 0.0
        %1993 = vmatprep.subr.mxu0 0.0
        %1994 = vmatpush1.msra.mxu0 0.0
        %1995 = vmatprep.subr.mxu0 0.0
        %1996 = vmatpush1.msra.mxu0 0.0
        %1997 = vmatprep.subr.mxu0 0.0
        %1998 = vmatpush1.msra.mxu0 0.0
        %1999 = vmatprep.subr.mxu0 0.0
        %2000 = vmatpush1.msra.mxu0 0.0
        %2001 = vmatprep.subr.mxu0 0.0
        %2002 = vmatpush1.msra.mxu0 0.0
        %2003 = vmatprep.subr.mxu0 0.0
        %2004 = vmatpush1.msra.mxu0 0.0
        %2005 = vmatprep.subr.mxu0 0.0
        %2006 = vmatpush1.msra.mxu0 0.0
        %2007 = vmatprep.subr.mxu0 0.0
        %2008 = vmatpush1.msra.mxu0 0.0
        %2009 = vmatprep.subr.mxu0 0.0
        %2010 = vmatpush1.msra.mxu0 0.0
        %2011 = vmatprep.subr.mxu0 0.0
        %2012 = vmatpush1.msra.mxu0 0.0
        %2013 = vmatprep.subr.mxu0 0.0
        %2014 = vmatpush1.msra.mxu0 0.0
        %2015 = vmatprep.subr.mxu0 0.0
        %2016 = vmatpush1.msra.mxu0 0.0
        %2017 = vmatprep.subr.mxu0 0.0
        %2018 = vmatpush1.msra.mxu0 0.0
        %2019 = vmatprep.subr.mxu0 0.0
        %2020 = vmatpush1.msra.mxu0 0.0
        %2021 = vmatprep.subr.mxu0 0.0
        %2022 = vmatpush1.msra.mxu0 0.0
        %2023 = vmatprep.subr.mxu0 0.0
        %2024 = vmatpush1.msra.mxu0 0.0
        %2025 = vmatprep.subr.mxu0 0.0
        %2026 = vmatpush1.msra.mxu0 0.0
        %2027 = vmatprep.subr.mxu0 0.0
        %2028 = vmatpush1.msra.mxu0 0.0
        %2029 = vmatprep.subr.mxu0 0.0
        %2030 = vmatpush1.msra.mxu0 0.0
        %2031 = vmatprep.subr.mxu0 0.0
        %2032 = vmatpush1.msra.mxu0 0.0
        %2033 = vmatprep.subr.mxu0 0.0
        %2034 = vmatpush1.msra.mxu0 0.0
        %2035 = vmatprep.subr.mxu0 0.0
        %2036 = vmatpush1.msra.mxu0 0.0
        %2037 = vmatprep.subr.mxu0 0.0
        %2038 = vmatpush1.msra.mxu0 0.0
        %2039 = vmatprep.subr.mxu0 0.0
        %2040 = vmatpush1.msra.mxu0 0.0
        %2041 = vmatprep.subr.mxu0 0.0
        %2042 = vmatpush1.msra.mxu0 0.0
        %2043 = vmatprep.subr.mxu0 0.0
        %2044 = vmatpush1.msra.mxu0 0.0
        %2045 = vmatprep.subr.mxu0 0.0
        %2046 = vmatpush1.msra.mxu0 0.0
        %2047 = vmatprep.subr.mxu0 0.0
        %2048 = vmatpush1.msra.mxu0 0.0
        %2049 = vmatprep.subr.mxu0 0.0
        %2050 = vmatpush1.msra.mxu0 0.0
        %2051 = vmatprep.subr.mxu0 0.0
        %2052 = vmatpush1.msra.mxu0 0.0
        %2053 = vmatprep.mubr.f32.mxu0 0.0
        %2054 = vmatmul.mubr.f32.gmra.mrb[0].mxu0 %v1987
        %v2055 = vpop.f32.mrb[0].mxu0
        %v2056 = vadd.f32 0.0, %v2055
        %v2057 = vpop.f32.mrb[0].mxu0
        %2058 = vdwg.mxu0
        %v2060 = vsel %vm1795, %v1853, 0
        %2062 = vmatprep.subr.mxu0 0.0
        %2063 = vmatpush1.msra.mxu0 %v1409
        %2064 = vmatprep.subr.mxu0 0.0
        %2065 = vmatpush1.msra.mxu0 0.0
        %2066 = vmatprep.subr.mxu0 0.0
        %2067 = vmatpush1.msra.mxu0 0.0
        %2068 = vmatprep.subr.mxu0 0.0
        %2069 = vmatpush1.msra.mxu0 0.0
        %2070 = vmatprep.subr.mxu0 0.0
        %2071 = vmatpush1.msra.mxu0 0.0
        %2072 = vmatprep.subr.mxu0 0.0
        %2073 = vmatpush1.msra.mxu0 0.0
        %2074 = vmatprep.subr.mxu0 0.0
        %2075 = vmatpush1.msra.mxu0 0.0
        %2076 = vmatprep.subr.mxu0 0.0
        %2077 = vmatpush1.msra.mxu0 0.0
        %2078 = vmatprep.subr.mxu0 0.0
        %2079 = vmatpush1.msra.mxu0 0.0
        %2080 = vmatprep.subr.mxu0 0.0
        %2081 = vmatpush1.msra.mxu0 0.0
        %2082 = vmatprep.subr.mxu0 0.0
        %2083 = vmatpush1.msra.mxu0 0.0
        %2084 = vmatprep.subr.mxu0 0.0
        %2085 = vmatpush1.msra.mxu0 0.0
        %2086 = vmatprep.subr.mxu0 0.0
        %2087 = vmatpush1.msra.mxu0 0.0
        %2088 = vmatprep.subr.mxu0 0.0
        %2089 = vmatpush1.msra.mxu0 0.0
        %2090 = vmatprep.subr.mxu0 0.0
        %2091 = vmatpush1.msra.mxu0 0.0
        %2092 = vmatprep.subr.mxu0 0.0
        %2093 = vmatpush1.msra.mxu0 0.0
        %2094 = vmatprep.subr.mxu0 0.0
        %2095 = vmatpush1.msra.mxu0 0.0
        %2096 = vmatprep.subr.mxu0 0.0
        %2097 = vmatpush1.msra.mxu0 0.0
        %2098 = vmatprep.subr.mxu0 0.0
        %2099 = vmatpush1.msra.mxu0 0.0
        %2100 = vmatprep.subr.mxu0 0.0
        %2101 = vmatpush1.msra.mxu0 0.0
        %2102 = vmatprep.subr.mxu0 0.0
        %2103 = vmatpush1.msra.mxu0 0.0
        %2104 = vmatprep.subr.mxu0 0.0
        %2105 = vmatpush1.msra.mxu0 0.0
        %2106 = vmatprep.subr.mxu0 0.0
        %2107 = vmatpush1.msra.mxu0 0.0
        %2108 = vmatprep.subr.mxu0 0.0
        %2109 = vmatpush1.msra.mxu0 0.0
        %2110 = vmatprep.subr.mxu0 0.0
        %2111 = vmatpush1.msra.mxu0 0.0
        %2112 = vmatprep.subr.mxu0 0.0
        %2113 = vmatpush1.msra.mxu0 0.0
        %2114 = vmatprep.subr.mxu0 0.0
        %2115 = vmatpush1.msra.mxu0 0.0
        %2116 = vmatprep.subr.mxu0 0.0
        %2117 = vmatpush1.msra.mxu0 0.0
        %2118 = vmatprep.subr.mxu0 0.0
        %2119 = vmatpush1.msra.mxu0 0.0
        %2120 = vmatprep.subr.mxu0 0.0
        %2121 = vmatpush1.msra.mxu0 0.0
        %2122 = vmatprep.subr.mxu0 0.0
        %2123 = vmatpush1.msra.mxu0 0.0
        %2124 = vmatprep.subr.mxu0 0.0
        %2125 = vmatpush1.msra.mxu0 0.0
        %2126 = vmatprep.mubr.f32.mxu0 0.0
        %2127 = vmatmul.mubr.f32.gmra.mrb[0].mxu0 %v2060
        %v2128 = vpop.f32.mrb[0].mxu0
        %v2129 = vadd.f32 0.0, %v2128
        %v2130 = vpop.f32.mrb[0].mxu0
        %2131 = vdwg.mxu0
        %v2133 = vsel %vm1795, %v1855, 0
        %2135 = vmatprep.subr.mxu0 0.0
        %2136 = vmatpush1.msra.mxu0 %v1479
        %2137 = vmatprep.subr.mxu0 0.0
        %2138 = vmatpush1.msra.mxu0 0.0
        %2139 = vmatprep.subr.mxu0 0.0
        %2140 = vmatpush1.msra.mxu0 0.0
        %2141 = vmatprep.subr.mxu0 0.0
        %2142 = vmatpush1.msra.mxu0 0.0
        %2143 = vmatprep.subr.mxu0 0.0
        %2144 = vmatpush1.msra.mxu0 0.0
        %2145 = vmatprep.subr.mxu0 0.0
        %2146 = vmatpush1.msra.mxu0 0.0
        %2147 = vmatprep.subr.mxu0 0.0
        %2148 = vmatpush1.msra.mxu0 0.0
        %2149 = vmatprep.subr.mxu0 0.0
        %2150 = vmatpush1.msra.mxu0 0.0
        %2151 = vmatprep.subr.mxu0 0.0
        %2152 = vmatpush1.msra.mxu0 0.0
        %2153 = vmatprep.subr.mxu0 0.0
        %2154 = vmatpush1.msra.mxu0 0.0
        %2155 = vmatprep.subr.mxu0 0.0
        %2156 = vmatpush1.msra.mxu0 0.0
        %2157 = vmatprep.subr.mxu0 0.0
        %2158 = vmatpush1.msra.mxu0 0.0
        %2159 = vmatprep.subr.mxu0 0.0
        %2160 = vmatpush1.msra.mxu0 0.0
        %2161 = vmatprep.subr.mxu0 0.0
        %2162 = vmatpush1.msra.mxu0 0.0
        %2163 = vmatprep.subr.mxu0 0.0
        %2164 = vmatpush1.msra.mxu0 0.0
        %2165 = vmatprep.subr.mxu0 0.0
        %2166 = vmatpush1.msra.mxu0 0.0
        %2167 = vmatprep.subr.mxu0 0.0
        %2168 = vmatpush1.msra.mxu0 0.0
        %2169 = vmatprep.subr.mxu0 0.0
        %2170 = vmatpush1.msra.mxu0 0.0
        %2171 = vmatprep.subr.mxu0 0.0
        %2172 = vmatpush1.msra.mxu0 0.0
        %2173 = vmatprep.subr.mxu0 0.0
        %2174 = vmatpush1.msra.mxu0 0.0
        %2175 = vmatprep.subr.mxu0 0.0
        %2176 = vmatpush1.msra.mxu0 0.0
        %2177 = vmatprep.subr.mxu0 0.0
        %2178 = vmatpush1.msra.mxu0 0.0
        %2179 = vmatprep.subr.mxu0 0.0
        %2180 = vmatpush1.msra.mxu0 0.0
        %2181 = vmatprep.subr.mxu0 0.0
        %2182 = vmatpush1.msra.mxu0 0.0
        %2183 = vmatprep.subr.mxu0 0.0
        %2184 = vmatpush1.msra.mxu0 0.0
        %2185 = vmatprep.subr.mxu0 0.0
        %2186 = vmatpush1.msra.mxu0 0.0
        %2187 = vmatprep.subr.mxu0 0.0
        %2188 = vmatpush1.msra.mxu0 0.0
        %2189 = vmatprep.subr.mxu0 0.0
        %2190 = vmatpush1.msra.mxu0 0.0
        %2191 = vmatprep.subr.mxu0 0.0
        %2192 = vmatpush1.msra.mxu0 0.0
        %2193 = vmatprep.subr.mxu0 0.0
        %2194 = vmatpush1.msra.mxu0 0.0
        %2195 = vmatprep.subr.mxu0 0.0
        %2196 = vmatpush1.msra.mxu0 0.0
        %2197 = vmatprep.subr.mxu0 0.0
        %2198 = vmatpush1.msra.mxu0 0.0
        %2199 = vmatprep.mubr.f32.mxu0 0.0
        %2200 = vmatmul.mubr.f32.gmra.mrb[0].mxu0 %v2133
        %v2201 = vpop.f32.mrb[0].mxu0
        %v2202 = vadd.f32 0.0, %v2201
        %v2203 = vpop.f32.mrb[0].mxu0
        %2204 = vdwg.mxu0
        %v2205 = vadd.f32 %v1909, %v1983
        %v2206 = vadd.f32 %v1910, %v2056
        %v2207 = vadd.f32 %v1911, %v2129
        %v2208 = vadd.f32 %v1912, %v2202
        %2209 = vst.msk [vmem:[#allocation5] sm:$0xff] %vm1486, %v2205
        %2210 = vst.msk [vmem:[#allocation5 + $0x8] sm:$0xff] %vm1486, %v2206
        %2211 = vst.msk [vmem:[#allocation5 + $0x10] sm:$0xff] %vm1486, %v2207
        %2212 = vst.msk [vmem:[#allocation5 + $0x18] sm:$0xff] %vm1486, %v2208
        %2213 = vst.msk [vmem:[#allocation3] sm:$0xff] %vm1880, %v1808
        %2214 = vst.msk [vmem:[#allocation3 + $0x8] sm:$0xff] %vm1880, %v1809
        %2215 = vst.msk [vmem:[#allocation3 + $0x10] sm:$0xff] %vm1880, %v1810
        %2216 = vst.msk [vmem:[#allocation3 + $0x18] sm:$0xff] %vm1880, %v1811
        // Predicated region
        $region69: #{tpu_custom_call.1} parent=63 // pred_check
          %p2217 = pneg %p470
        $region70: #{tpu_custom_call.1} parent=63 // pred_check_branch
          %2219 = sbr.rel (%p2217) target = $region72
        $region71: #{tpu_custom_call.1} parent=63 // pred_region
          %v2220 = vld [vmem:[#allocation5] sm:$0xff]
          %v2221 = vld [vmem:[#allocation5 + $0x8] sm:$0xff]
          %v2222 = vld [vmem:[#allocation5 + $0x10] sm:$0xff]
          %v2223 = vld [vmem:[#allocation5 + $0x18] sm:$0xff]
          %v2224 = vld [vmem:[#allocation4] sm:$0xff]
          %v2225 = vld [vmem:[#allocation4 + $0x8] sm:$0xff]
          %v2226 = vld [vmem:[#allocation4 + $0x10] sm:$0xff]
          %v2227 = vld [vmem:[#allocation4 + $0x18] sm:$0xff]
          %v2228 = vrcp.pop %v2224
          %v2229 = vrcp.pop %v2225
          %v2230 = vrcp.pop %v2226
          %v2231 = vrcp.pop %v2227
          %2233 = vset.pattern.permute.xlu0 0
          %2234 = vperm.xlu0 %2233, %v2228
          %v2235 = vpop.permute.xlu0 %2234
          %2238 = vset.pattern.permute.xlu0 0
          %2239 = vperm.xlu0 %2238, %v2229
          %v2240 = vpop.permute.xlu0 %2239
          %2243 = vset.pattern.permute.xlu0 0
          %2244 = vperm.xlu0 %2243, %v2230
          %v2245 = vpop.permute.xlu0 %2244
          %2248 = vset.pattern.permute.xlu0 0
          %2249 = vperm.xlu0 %2248, %v2231
          %v2250 = vpop.permute.xlu0 %2249
          %v2252 = vmul.f32 %v2220, %v2235
          %v2253 = vmul.f32 %v2221, %v2240
          %v2254 = vmul.f32 %v2222, %v2245
          %v2255 = vmul.f32 %v2223, %v2250
          %v2256 = vld [vmem:[%s9] sm:$0xff]
          %v2257 = vld [vmem:[%s9 + $0x8] sm:$0xff]
          %v2258 = vld [vmem:[%s9 + $0x10] sm:$0xff]
          %v2259 = vld [vmem:[%s9 + $0x18] sm:$0xff]
          %v2260 = vld [vmem:[%s9 + $0x20] sm:$0xff]
          %v2261 = vld [vmem:[%s9 + $0x28] sm:$0xff]
          %v2262 = vld [vmem:[%s9 + $0x30] sm:$0xff]
          %v2263 = vld [vmem:[%s9 + $0x38] sm:$0xff]
          %v2265 = vsel %vm1486, %v2252, 0
          %2267 = vmatprep.subr.mxu0 0.0
          %2268 = vmatpush1.msra.mxu0 %v2256
          %2269 = vmatprep.subr.mxu0 0.0
          %2270 = vmatpush1.msra.mxu0 %v2257
          %2271 = vmatprep.subr.mxu0 0.0
          %2272 = vmatpush1.msra.mxu0 0.0
          %2273 = vmatprep.subr.mxu0 0.0
          %2274 = vmatpush1.msra.mxu0 0.0
          %2275 = vmatprep.subr.mxu0 0.0
          %2276 = vmatpush1.msra.mxu0 0.0
          %2277 = vmatprep.subr.mxu0 0.0
          %2278 = vmatpush1.msra.mxu0 0.0
          %2279 = vmatprep.subr.mxu0 0.0
          %2280 = vmatpush1.msra.mxu0 0.0
          %2281 = vmatprep.subr.mxu0 0.0
          %2282 = vmatpush1.msra.mxu0 0.0
          %2283 = vmatprep.subr.mxu0 0.0
          %2284 = vmatpush1.msra.mxu0 0.0
          %2285 = vmatprep.subr.mxu0 0.0
          %2286 = vmatpush1.msra.mxu0 0.0
          %2287 = vmatprep.subr.mxu0 0.0
          %2288 = vmatpush1.msra.mxu0 0.0
          %2289 = vmatprep.subr.mxu0 0.0
          %2290 = vmatpush1.msra.mxu0 0.0
          %2291 = vmatprep.subr.mxu0 0.0
          %2292 = vmatpush1.msra.mxu0 0.0
          %2293 = vmatprep.subr.mxu0 0.0
          %2294 = vmatpush1.msra.mxu0 0.0
          %2295 = vmatprep.subr.mxu0 0.0
          %2296 = vmatpush1.msra.mxu0 0.0
          %2297 = vmatprep.subr.mxu0 0.0
          %2298 = vmatpush1.msra.mxu0 0.0
          %2299 = vmatprep.subr.mxu0 0.0
          %2300 = vmatpush1.msra.mxu0 0.0
          %2301 = vmatprep.subr.mxu0 0.0
          %2302 = vmatpush1.msra.mxu0 0.0
          %2303 = vmatprep.subr.mxu0 0.0
          %2304 = vmatpush1.msra.mxu0 0.0
          %2305 = vmatprep.subr.mxu0 0.0
          %2306 = vmatpush1.msra.mxu0 0.0
          %2307 = vmatprep.subr.mxu0 0.0
          %2308 = vmatpush1.msra.mxu0 0.0
          %2309 = vmatprep.subr.mxu0 0.0
          %2310 = vmatpush1.msra.mxu0 0.0
          %2311 = vmatprep.subr.mxu0 0.0
          %2312 = vmatpush1.msra.mxu0 0.0
          %2313 = vmatprep.subr.mxu0 0.0
          %2314 = vmatpush1.msra.mxu0 0.0
          %2315 = vmatprep.subr.mxu0 0.0
          %2316 = vmatpush1.msra.mxu0 0.0
          %2317 = vmatprep.subr.mxu0 0.0
          %2318 = vmatpush1.msra.mxu0 0.0
          %2319 = vmatprep.subr.mxu0 0.0
          %2320 = vmatpush1.msra.mxu0 0.0
          %2321 = vmatprep.subr.mxu0 0.0
          %2322 = vmatpush1.msra.mxu0 0.0
          %2323 = vmatprep.subr.mxu0 0.0
          %2324 = vmatpush1.msra.mxu0 0.0
          %2325 = vmatprep.subr.mxu0 0.0
          %2326 = vmatpush1.msra.mxu0 0.0
          %2327 = vmatprep.subr.mxu0 0.0
          %2328 = vmatpush1.msra.mxu0 0.0
          %2329 = vmatprep.subr.mxu0 0.0
          %2330 = vmatpush1.msra.mxu0 0.0
          %2331 = vmatprep.mubr.f32.mxu0 0.0
          %2332 = vmatmul.mubr.f32.gmra.mrb[0].mxu0 %v2265
          %v2333 = vpop.f32.mrb[0].mxu0
          %v2334 = vadd.f32 0.0, %v2333
          %v2335 = vpop.f32.mrb[0].mxu0
          %2336 = vdwg.mxu0
          %v2338 = vsel %vm1486, %v2253, 0
          %2340 = vmatprep.subr.mxu0 0.0
          %2341 = vmatpush1.msra.mxu0 %v2258
          %2342 = vmatprep.subr.mxu0 0.0
          %2343 = vmatpush1.msra.mxu0 %v2259
          %2344 = vmatprep.subr.mxu0 0.0
          %2345 = vmatpush1.msra.mxu0 0.0
          %2346 = vmatprep.subr.mxu0 0.0
          %2347 = vmatpush1.msra.mxu0 0.0
          %2348 = vmatprep.subr.mxu0 0.0
          %2349 = vmatpush1.msra.mxu0 0.0
          %2350 = vmatprep.subr.mxu0 0.0
          %2351 = vmatpush1.msra.mxu0 0.0
          %2352 = vmatprep.subr.mxu0 0.0
          %2353 = vmatpush1.msra.mxu0 0.0
          %2354 = vmatprep.subr.mxu0 0.0
          %2355 = vmatpush1.msra.mxu0 0.0
          %2356 = vmatprep.subr.mxu0 0.0
          %2357 = vmatpush1.msra.mxu0 0.0
          %2358 = vmatprep.subr.mxu0 0.0
          %2359 = vmatpush1.msra.mxu0 0.0
          %2360 = vmatprep.subr.mxu0 0.0
          %2361 = vmatpush1.msra.mxu0 0.0
          %2362 = vmatprep.subr.mxu0 0.0
          %2363 = vmatpush1.msra.mxu0 0.0
          %2364 = vmatprep.subr.mxu0 0.0
          %2365 = vmatpush1.msra.mxu0 0.0
          %2366 = vmatprep.subr.mxu0 0.0
          %2367 = vmatpush1.msra.mxu0 0.0
          %2368 = vmatprep.subr.mxu0 0.0
          %2369 = vmatpush1.msra.mxu0 0.0
          %2370 = vmatprep.subr.mxu0 0.0
          %2371 = vmatpush1.msra.mxu0 0.0
          %2372 = vmatprep.subr.mxu0 0.0
          %2373 = vmatpush1.msra.mxu0 0.0
          %2374 = vmatprep.subr.mxu0 0.0
          %2375 = vmatpush1.msra.mxu0 0.0
          %2376 = vmatprep.subr.mxu0 0.0
          %2377 = vmatpush1.msra.mxu0 0.0
          %2378 = vmatprep.subr.mxu0 0.0
          %2379 = vmatpush1.msra.mxu0 0.0
          %2380 = vmatprep.subr.mxu0 0.0
          %2381 = vmatpush1.msra.mxu0 0.0
          %2382 = vmatprep.subr.mxu0 0.0
          %2383 = vmatpush1.msra.mxu0 0.0
          %2384 = vmatprep.subr.mxu0 0.0
          %2385 = vmatpush1.msra.mxu0 0.0
          %2386 = vmatprep.subr.mxu0 0.0
          %2387 = vmatpush1.msra.mxu0 0.0
          %2388 = vmatprep.subr.mxu0 0.0
          %2389 = vmatpush1.msra.mxu0 0.0
          %2390 = vmatprep.subr.mxu0 0.0
          %2391 = vmatpush1.msra.mxu0 0.0
          %2392 = vmatprep.subr.mxu0 0.0
          %2393 = vmatpush1.msra.mxu0 0.0
          %2394 = vmatprep.subr.mxu0 0.0
          %2395 = vmatpush1.msra.mxu0 0.0
          %2396 = vmatprep.subr.mxu0 0.0
          %2397 = vmatpush1.msra.mxu0 0.0
          %2398 = vmatprep.subr.mxu0 0.0
          %2399 = vmatpush1.msra.mxu0 0.0
          %2400 = vmatprep.subr.mxu0 0.0
          %2401 = vmatpush1.msra.mxu0 0.0
          %2402 = vmatprep.subr.mxu0 0.0
          %2403 = vmatpush1.msra.mxu0 0.0
          %2404 = vmatprep.mubr.f32.mxu0 0.0
          %2405 = vmatmul.mubr.f32.gmra.mrb[0].mxu0 %v2338
          %v2406 = vpop.f32.mrb[0].mxu0
          %v2407 = vadd.f32 0.0, %v2406
          %v2408 = vpop.f32.mrb[0].mxu0
          %2409 = vdwg.mxu0
          %v2411 = vsel %vm1486, %v2254, 0
          %2413 = vmatprep.subr.mxu0 0.0
          %2414 = vmatpush1.msra.mxu0 %v2260
          %2415 = vmatprep.subr.mxu0 0.0
          %2416 = vmatpush1.msra.mxu0 %v2261
          %2417 = vmatprep.subr.mxu0 0.0
          %2418 = vmatpush1.msra.mxu0 0.0
          %2419 = vmatprep.subr.mxu0 0.0
          %2420 = vmatpush1.msra.mxu0 0.0
          %2421 = vmatprep.subr.mxu0 0.0
          %2422 = vmatpush1.msra.mxu0 0.0
          %2423 = vmatprep.subr.mxu0 0.0
          %2424 = vmatpush1.msra.mxu0 0.0
          %2425 = vmatprep.subr.mxu0 0.0
          %2426 = vmatpush1.msra.mxu0 0.0
          %2427 = vmatprep.subr.mxu0 0.0
          %2428 = vmatpush1.msra.mxu0 0.0
          %2429 = vmatprep.subr.mxu0 0.0
          %2430 = vmatpush1.msra.mxu0 0.0
          %2431 = vmatprep.subr.mxu0 0.0
          %2432 = vmatpush1.msra.mxu0 0.0
          %2433 = vmatprep.subr.mxu0 0.0
          %2434 = vmatpush1.msra.mxu0 0.0
          %2435 = vmatprep.subr.mxu0 0.0
          %2436 = vmatpush1.msra.mxu0 0.0
          %2437 = vmatprep.subr.mxu0 0.0
          %2438 = vmatpush1.msra.mxu0 0.0
          %2439 = vmatprep.subr.mxu0 0.0
          %2440 = vmatpush1.msra.mxu0 0.0
          %2441 = vmatprep.subr.mxu0 0.0
          %2442 = vmatpush1.msra.mxu0 0.0
          %2443 = vmatprep.subr.mxu0 0.0
          %2444 = vmatpush1.msra.mxu0 0.0
          %2445 = vmatprep.subr.mxu0 0.0
          %2446 = vmatpush1.msra.mxu0 0.0
          %2447 = vmatprep.subr.mxu0 0.0
          %2448 = vmatpush1.msra.mxu0 0.0
          %2449 = vmatprep.subr.mxu0 0.0
          %2450 = vmatpush1.msra.mxu0 0.0
          %2451 = vmatprep.subr.mxu0 0.0
          %2452 = vmatpush1.msra.mxu0 0.0
          %2453 = vmatprep.subr.mxu0 0.0
          %2454 = vmatpush1.msra.mxu0 0.0
          %2455 = vmatprep.subr.mxu0 0.0
          %2456 = vmatpush1.msra.mxu0 0.0
          %2457 = vmatprep.subr.mxu0 0.0
          %2458 = vmatpush1.msra.mxu0 0.0
          %2459 = vmatprep.subr.mxu0 0.0
          %2460 = vmatpush1.msra.mxu0 0.0
          %2461 = vmatprep.subr.mxu0 0.0
          %2462 = vmatpush1.msra.mxu0 0.0
          %2463 = vmatprep.subr.mxu0 0.0
          %2464 = vmatpush1.msra.mxu0 0.0
          %2465 = vmatprep.subr.mxu0 0.0
          %2466 = vmatpush1.msra.mxu0 0.0
          %2467 = vmatprep.subr.mxu0 0.0
          %2468 = vmatpush1.msra.mxu0 0.0
          %2469 = vmatprep.subr.mxu0 0.0
          %2470 = vmatpush1.msra.mxu0 0.0
          %2471 = vmatprep.subr.mxu0 0.0
          %2472 = vmatpush1.msra.mxu0 0.0
          %2473 = vmatprep.subr.mxu0 0.0
          %2474 = vmatpush1.msra.mxu0 0.0
          %2475 = vmatprep.subr.mxu0 0.0
          %2476 = vmatpush1.msra.mxu0 0.0
          %2477 = vmatprep.mubr.f32.mxu0 0.0
          %2478 = vmatmul.mubr.f32.gmra.mrb[0].mxu0 %v2411
          %v2479 = vpop.f32.mrb[0].mxu0
          %v2480 = vadd.f32 0.0, %v2479
          %v2481 = vpop.f32.mrb[0].mxu0
          %2482 = vdwg.mxu0
          %v2484 = vsel %vm1486, %v2255, 0
          %2486 = vmatprep.subr.mxu0 0.0
          %2487 = vmatpush1.msra.mxu0 %v2262
          %2488 = vmatprep.subr.mxu0 0.0
          %2489 = vmatpush1.msra.mxu0 %v2263
          %2490 = vmatprep.subr.mxu0 0.0
          %2491 = vmatpush1.msra.mxu0 0.0
          %2492 = vmatprep.subr.mxu0 0.0
          %2493 = vmatpush1.msra.mxu0 0.0
          %2494 = vmatprep.subr.mxu0 0.0
          %2495 = vmatpush1.msra.mxu0 0.0
          %2496 = vmatprep.subr.mxu0 0.0
          %2497 = vmatpush1.msra.mxu0 0.0
          %2498 = vmatprep.subr.mxu0 0.0
          %2499 = vmatpush1.msra.mxu0 0.0
          %2500 = vmatprep.subr.mxu0 0.0
          %2501 = vmatpush1.msra.mxu0 0.0
          %2502 = vmatprep.subr.mxu0 0.0
          %2503 = vmatpush1.msra.mxu0 0.0
          %2504 = vmatprep.subr.mxu0 0.0
          %2505 = vmatpush1.msra.mxu0 0.0
          %2506 = vmatprep.subr.mxu0 0.0
          %2507 = vmatpush1.msra.mxu0 0.0
          %2508 = vmatprep.subr.mxu0 0.0
          %2509 = vmatpush1.msra.mxu0 0.0
          %2510 = vmatprep.subr.mxu0 0.0
          %2511 = vmatpush1.msra.mxu0 0.0
          %2512 = vmatprep.subr.mxu0 0.0
          %2513 = vmatpush1.msra.mxu0 0.0
          %2514 = vmatprep.subr.mxu0 0.0
          %2515 = vmatpush1.msra.mxu0 0.0
          %2516 = vmatprep.subr.mxu0 0.0
          %2517 = vmatpush1.msra.mxu0 0.0
          %2518 = vmatprep.subr.mxu0 0.0
          %2519 = vmatpush1.msra.mxu0 0.0
          %2520 = vmatprep.subr.mxu0 0.0
          %2521 = vmatpush1.msra.mxu0 0.0
          %2522 = vmatprep.subr.mxu0 0.0
          %2523 = vmatpush1.msra.mxu0 0.0
          %2524 = vmatprep.subr.mxu0 0.0
          %2525 = vmatpush1.msra.mxu0 0.0
          %2526 = vmatprep.subr.mxu0 0.0
          %2527 = vmatpush1.msra.mxu0 0.0
          %2528 = vmatprep.subr.mxu0 0.0
          %2529 = vmatpush1.msra.mxu0 0.0
          %2530 = vmatprep.subr.mxu0 0.0
          %2531 = vmatpush1.msra.mxu0 0.0
          %2532 = vmatprep.subr.mxu0 0.0
          %2533 = vmatpush1.msra.mxu0 0.0
          %2534 = vmatprep.subr.mxu0 0.0
          %2535 = vmatpush1.msra.mxu0 0.0
          %2536 = vmatprep.subr.mxu0 0.0
          %2537 = vmatpush1.msra.mxu0 0.0
          %2538 = vmatprep.subr.mxu0 0.0
          %2539 = vmatpush1.msra.mxu0 0.0
          %2540 = vmatprep.subr.mxu0 0.0
          %2541 = vmatpush1.msra.mxu0 0.0
          %2542 = vmatprep.subr.mxu0 0.0
          %2543 = vmatpush1.msra.mxu0 0.0
          %2544 = vmatprep.subr.mxu0 0.0
          %2545 = vmatpush1.msra.mxu0 0.0
          %2546 = vmatprep.subr.mxu0 0.0
          %2547 = vmatpush1.msra.mxu0 0.0
          %2548 = vmatprep.subr.mxu0 0.0
          %2549 = vmatpush1.msra.mxu0 0.0
          %2550 = vmatprep.mubr.f32.mxu0 0.0
          %2551 = vmatmul.mubr.f32.gmra.mrb[0].mxu0 %v2484
          %v2552 = vpop.f32.mrb[0].mxu0
          %v2553 = vadd.f32 0.0, %v2552
          %v2554 = vpop.f32.mrb[0].mxu0
          %2555 = vdwg.mxu0
          %v2556 = vsel %vm871, %v2334, 0.0
          %v2557 = vsel %vm871, %v2407, 0.0
          %v2558 = vadd.f32 %v2556, %v2557
          %v2559 = vsel %vm871, %v2480, 0.0
          %v2560 = vadd.f32 %v2558, %v2559
          %v2561 = vsel %vm871, %v2553, 0.0
          %v2562 = vadd.f32 %v2560, %v2561
          %v2563 = vld [vmem:[%s10] sm:$0x1]
          %v2565 = vlaneseq
          %v2566 = vshrl.u32 %v2565, 7
          %v2567 = vsub.s32 0, %v2566
          %v2568 = vrot.slane %v2563, %v2567
          %v2570 = vadd.f32 %v2562, %v2568
          %2571 = vst.msk [vmem:[%s448] sm:$0xff] %vm871, %v2570
        $region72: #{tpu_custom_call.1} parent=63 // pred_fallthru
          _
        %s2572 = sand.u32 %s306, 1
        %s2573 = scalar_lea.sflag [#allocation7], %s2572
        %s2574 = sand.u32 %s306, 1
        %s2575 = smul.addr %s2574, 8
        %s2576 = scalar_lea.vmem [#allocation6], %s2575
        // Predicated region
        $region73: #{tpu_custom_call.1} parent=63 // pred_check
          %p2577 = pneg %p316
        $region74: #{tpu_custom_call.1} parent=63 // pred_check_branch
          %2579 = sbr.rel (%p2577) target = $region76
        $region75: #{tpu_custom_call.1} parent=63 // pred_region
          %s2581 = ssub.s32 128, 128
          %2582 = vsyncadd %s2573, %s2581
          %s2583 = sadd.s32 %s31, %s30
          %s2584 = smul.addr %s2583, 128
          %s2585 = scalar_lea.hbm %s11, %s2584
          %s2587 = sshll.u32 %s2576, 4
          %s2588 = int_to_ptr.vmem [resolvable:$true] %s2587
          %2590 = dma.vmem_to_hbm [thread:$0]  %s2588, 128, %s2585, %s2573
        $region76: #{tpu_custom_call.1} parent=63 // pred_fallthru
          _
      $region64: #{tpu_custom_call.1} parent=5 // pred_fallthru
        _
      %p2591 = scmp.le.s32.totalorder 2, %s20
      // Predicated region
      $region77: #{tpu_custom_call.1} parent=5 // pred_check
        %p2592 = pneg %p2591
      $region78: #{tpu_custom_call.1} parent=5 // pred_check_branch
        %2594 = sbr.rel (%p2592) target = $region80
      $region79: #{tpu_custom_call.1} parent=5 // pred_region
        %s2595 = ssub.s32 %s20, 2
        // Predicated region
        $region81: #{tpu_custom_call.1} parent=79 // pred_check
          %p2596 = pneg %p322
        $region82: #{tpu_custom_call.1} parent=79 // pred_check_branch
          %2598 = sbr.rel (%p2596) target = $region84
        $region83: #{tpu_custom_call.1} parent=79 // pred_region
          %s2599 = sand.u32 %s307, 1
          %s2600 = scalar_lea.sflag [#allocation7], %s2599
          %s2601 = sand.u32 %s307, 1
          %s2602 = smul.addr %s2601, 8
          %s2603 = scalar_lea.vmem [#allocation6], %s2602
          %2604 = dma.done %s2600, 128
        $region84: #{tpu_custom_call.1} parent=79 // pred_fallthru
          _
      $region80: #{tpu_custom_call.1} parent=5 // pred_fallthru
        _
    $region6: #{tpu_custom_call.1} parent=1 // loop_footer
      %s24 = sadd.s32 1, %s20
    $region7: #{tpu_custom_call.1} parent=1 // loop_footer_branch
      %19 = sbr.rel target = $region3
    $region8: #{tpu_custom_call.1} parent=1 // loop_exit
      _
    %2605 = vsyncpa [#allocation7], 1
    %s2606 = scalar_lea.sflag [#allocation7], 1
    %2607 = vsyncpa %s2606, 1

</llo_original>
